<compile_context>
chip_gen: v7x
topology: tpu7x:2x2x1
jax: 0.10.0
libtpu: 0.0.40
codegen_flags: <defaults>
</compile_context>

<pallas_src>
import numpy as np

import jax
import jax.numpy as jnp
from jax.experimental import pallas as pl
from jax.experimental.pallas import tpu as pltpu

LN_EPS = 1e-5


# ----------------------------------------------------------------------------- helpers
def _gelu_tanh(x):
    # tanh-approx GELU: the tanh goes to the EUP (free slot) instead of a long VALU
    # polynomial; |err| vs exact erf-GELU < ~3e-4, well inside test tolerance.
    c = 0.7978845608028654  # sqrt(2/pi)
    return 0.5 * x * (1.0 + jnp.tanh(c * (x + 0.044715 * x * x * x)))


def _apply_act(y, act):
    if act == "relu":
        return jnp.maximum(y, 0.0)
    if act == "sigmoid":
        return jax.nn.sigmoid(y)
    if act == "tanh":
        return jnp.tanh(y)
    return y  # 'identity'


def _uniform(key, shape, fan_in):
    bound = 1.0 / np.sqrt(fan_in)
    return jax.random.uniform(key, shape, jnp.float32, -bound, bound)


# ----------------------------------------------------------------------------- kernels
def _make_dense_kernel(activation):
    # Standalone Dense (only used when it cannot be fused into a transformer stack).
    def kernel(x_ref, w_ref, b_ref, o_ref):
        y = jnp.dot(x_ref[...].astype(jnp.bfloat16), w_ref[...],
                    preferred_element_type=jnp.float32) + b_ref[...]
        o_ref[...] = _apply_act(y, activation).astype(o_ref.dtype)
    return kernel


def _make_stack_kernel(C, nh, n_real, n_pad, n_blocks, fuse_head, head_act):
    """One grid step = one (batch element, block index). Residual lives in VMEM scratch."""

    def kernel(*refs):
        if fuse_head:
            (x_ref, wqkv_ref, wpr_ref, bpr_ref, ln1g_ref, ln1b_ref,
             ln2g_ref, ln2b_ref, w1_ref, b1_ref, w2_ref, b2_ref,
             hw_ref, hb_ref, out_ref, resid_ref) = refs
        else:
            (x_ref, wqkv_ref, wpr_ref, bpr_ref, ln1g_ref, ln1b_ref,
             ln2g_ref, ln2b_ref, w1_ref, b1_ref, w2_ref, b2_ref,
             out_ref, resid_ref) = refs

        blk = pl.program_id(1)

        @pl.when(blk == 0)
        def _():
            resid_ref[...] = x_ref[0].astype(jnp.float32)

        x = resid_ref[...]                                       # (Np, C) f32

        # ---------------- LayerNorm 1 (f32 VPU, rsqrt on EUP) ----------------
        mu = jnp.mean(x, axis=-1, keepdims=True)
        var = jnp.mean(jnp.square(x - mu), axis=-1, keepdims=True)
        xn = (x - mu) * jax.lax.rsqrt(var + LN_EPS) * ln1g_ref[0] + ln1b_ref[0]

        # ---------------- heads-batched QKV (no lane slicing / concat) -------
        # wqkv_ref: (1, 3*nh, C, hd) bf16, attention scale pre-folded into the q slabs.
        xb = jnp.broadcast_to(xn.astype(jnp.bfloat16)[None], (3 * nh, n_pad, C))
        qkv = jax.lax.dot_general(xb, wqkv_ref[0],
                                  (((2,), (1,)), ((0,), (0,))),
                                  preferred_element_type=jnp.float32)  # (3nh, Np, hd)
        q = qkv[0:nh].astype(jnp.bfloat16)
        k = qkv[nh:2 * nh].astype(jnp.bfloat16)
        v = qkv[2 * nh:3 * nh].astype(jnp.bfloat16)

        s = jax.lax.dot_general(q, k, (((2,), (2,)), ((0,), (0,))),
                                preferred_element_type=jnp.float32)    # (nh, Np, Np)
        if n_real < n_pad:
            # (1,1,Np) iota, broadcast in the compare: masks padded key columns.
            col = jax.lax.broadcasted_iota(jnp.int32, (1, 1, n_pad), 2)
            s = jnp.where(col < n_real, s, -1e30)

        m = jnp.max(s, axis=-1, keepdims=True)
        e = jnp.exp(s - m)
        p = e * pl.reciprocal(jnp.sum(e, axis=-1, keepdims=True), approx=True)

        o = jax.lax.dot_general(p.astype(jnp.bfloat16), v,
                                (((2,), (1,)), ((0,), (0,))),
                                preferred_element_type=jnp.float32)    # (nh, Np, hd)
        # head-combine folded into the projection: batched (Np,hd)x(hd,C) + sum over heads
        ph = jax.lax.dot_general(o.astype(jnp.bfloat16), wpr_ref[0],
                                 (((2,), (1,)), ((0,), (0,))),
                                 preferred_element_type=jnp.float32)   # (nh, Np, C)
        x1 = x + jnp.sum(ph, axis=0) + bpr_ref[0]

        # ---------------- LayerNorm 2 + MLP (GELU) ----------------
        mu2 = jnp.mean(x1, axis=-1, keepdims=True)
        var2 = jnp.mean(jnp.square(x1 - mu2), axis=-1, keepdims=True)
        x2 = (x1 - mu2) * jax.lax.rsqrt(var2 + LN_EPS) * ln2g_ref[0] + ln2b_ref[0]
        h1 = jnp.dot(x2.astype(jnp.bfloat16), w1_ref[0],
                     preferred_element_type=jnp.float32) + b1_ref[0]
        h1 = _gelu_tanh(h1)
        mlp = jnp.dot(h1.astype(jnp.bfloat16), w2_ref[0],
                      preferred_element_type=jnp.float32) + b2_ref[0]
        xo = x1 + mlp
        resid_ref[...] = xo

        # ---------------- epilogue on the last block ----------------
        @pl.when(blk == n_blocks - 1)
        def _():
            if fuse_head:
                cls = xo[0:1, :]                                   # CLS token row
                # hw_ref/hb_ref are pre-padded to a 128-lane slab -> unmasked vst.
                y = jnp.dot(cls.astype(jnp.bfloat16), hw_ref[...],
                            preferred_element_type=jnp.float32) + hb_ref[...]
                out_ref[0] = _apply_act(y, head_act).astype(out_ref.dtype)
            else:
                out_ref[0] = xo.astype(out_ref.dtype)

    return kernel


# ----------------------------------------------------------------------------- model
class AttentionHeadPallas:
    """JAX/Pallas port of the PyTorch AttentionHead module."""

    def __init__(self, layer_string, key):
        self.layer_string = layer_string
        defs = [d.strip() for d in layer_string.split(",")]
        self.use_cls_token, self.dim = self._parse_use_cls_token(defs[0])
        if self.use_cls_token:
            self.cls_token = jnp.zeros((1, 1, self.dim), jnp.float32)  # nn.Parameter(zeros)

        raw = []
        for d in defs:
            if d.startswith("Attention"):
                dim, nh, mlp_ratio, nblk = self._parse_block_layer(d)
                for _ in range(nblk):
                    key, sub = jax.random.split(key)
                    raw.append(("block", (dim, nh, self._init_block(sub, dim, nh, mlp_ratio))))
            elif d.startswith("Flatten"):
                raw.append(("flatten", None))
            elif d.startswith("Dense"):
                in_dim, out_dim, act = self._parse_dense_layer(d)
                key, k1, k2 = jax.random.split(key, 3)
                w = _uniform(k1, (in_dim, out_dim), in_dim)
                b = _uniform(k2, (1, out_dim), in_dim)
                raw.append(("dense", (w, b, act)))
            elif d.startswith("Pool"):
                raw.append(("pool", self._parse_pool_layer(d)))
            elif d.startswith("FullyPool"):
                raw.append(("fullypool", None))
            elif d.startswith("Use_CLS_Token"):
                pass
            elif d.startswith("Reshape"):
                raw.append(("reshape", None))
            elif d.startswith("Insert_CLS_Token"):
                raw.append(("insert_cls", None))
            elif d.startswith("Extract_CLS_Token"):
                raw.append(("extract_cls", None))

        self.layers = raw            # semantic (per-op) view, used by the reference
        self.ops = self._fuse(raw)   # fused execution plan (Pallas)

    # ---- parsing (mirrors the torch module) ----
    @staticmethod
    def _parse_use_cls_token(d):
        p = d.split(":")
        # torch module does bool(p[1]) which is True for the string "False"; parse properly.
        return p[1].strip().lower() in ("true", "1", "yes"), int(p[2])

    @staticmethod
    def _parse_pool_layer(d):
        p = d.split(":")
        return int(p[1]), int(p[2])

    @staticmethod
    def _parse_block_layer(d):
        p = d.split(":")
        return int(p[1]), int(p[2]), float(p[3]), int(p[4])

    @staticmethod
    def _parse_dense_layer(d):
        p = d.split(":")
        return int(p[1]), int(p[2]), p[3]

    # ---- param init (deterministic, synthetic; f32 "master" copies) ----
    @staticmethod
    def _init_block(key, dim, num_heads, mlp_ratio):
        hidden = int(dim * mlp_ratio)
        ks = jax.random.split(key, 8)
        return dict(
            ln1_g=jnp.ones((1, dim), jnp.float32), ln1_b=jnp.zeros((1, dim), jnp.float32),
            wqkv=_uniform(ks[0], (dim, 3 * dim), dim),                 # qkv_bias=False
            wproj=_uniform(ks[1], (dim, dim), dim),
            bproj=_uniform(ks[2], (1, dim), dim),
            ln2_g=jnp.ones((1, dim), jnp.float32), ln2_b=jnp.zeros((1, dim), jnp.float32),
            w1=_uniform(ks[3], (dim, hidden), dim), b1=_uniform(ks[4], (1, hidden), dim),
            w2=_uniform(ks[5], (hidden, dim), hidden), b2=_uniform(ks[6], (1, dim), hidden),
        )

    # ---- fusion: consecutive Blocks -> one stack; + Extract_CLS + Dense -> fused head ----
    def _fuse(self, raw):
        ops, i = [], 0
        while i < len(raw):
            name, cfg = raw[i]
            if name == "block":
                dim, nh, p0 = cfg
                hidden = p0["w1"].shape[1]
                group, j = [], i
                while (j < len(raw) and raw[j][0] == "block"
                       and raw[j][1][0] == dim and raw[j][1][1] == nh
                       and raw[j][1][2]["w1"].shape[1] == hidden):
                    group.append(raw[j][1])
                    j += 1
                head = None
                if (j + 1 < len(raw) and raw[j][0] == "extract_cls"
                        and raw[j + 1][0] == "dense"
                        and raw[j + 1][1][0].shape[0] == dim):
                    head = raw[j + 1][1]
                    j += 2
                ops.append(("stack", self._build_stack(group, dim, nh, head)))
                i = j
            else:
                ops.append((name, cfg))
                i += 1
        return ops

    def _build_stack(self, group, dim, nh, head):
        hd = dim // nh
        scale = hd ** (-0.5)
        wqkv_l, wpr_l, w1_l, w2_l = [], [], [], []
        f32 = {k: [] for k in ("bproj", "ln1_g", "ln1_b", "ln2_g", "ln2_b", "b1", "b2")}
        for _, _, p in group:
            # (C, 3C) -> (3, nh, C, hd) slabs; fold the attention scale into Wq.
            w3 = p["wqkv"].reshape(dim, 3, nh, hd).transpose(1, 2, 0, 3)
            w3 = w3.at[0].multiply(scale)
            wqkv_l.append(w3.reshape(3 * nh, dim, hd))
            wpr_l.append(p["wproj"].reshape(nh, hd, dim))       # (nh, hd, C)
            w1_l.append(p["w1"])
            w2_l.append(p["w2"])
            for k in f32:
                f32[k].append(p[k])
        st = dict(
            L=len(group), dim=dim, nh=nh, hidden=group[0][2]["w1"].shape[1],
            wqkv=jnp.stack(wqkv_l).astype(jnp.bfloat16),
            wpr=jnp.stack(wpr_l).astype(jnp.bfloat16),
            w1=jnp.stack(w1_l).astype(jnp.bfloat16),
            w2=jnp.stack(w2_l).astype(jnp.bfloat16),
            bproj=jnp.stack(f32["bproj"]),
            ln1_g=jnp.stack(f32["ln1_g"]), ln1_b=jnp.stack(f32["ln1_b"]),
            ln2_g=jnp.stack(f32["ln2_g"]), ln2_b=jnp.stack(f32["ln2_b"]),
            b1=jnp.stack(f32["b1"]), b2=jnp.stack(f32["b2"]),
            head=None,
        )
        if head is not None:
            w, b, act = head
            out_dim = w.shape[1]
            # Pad the classifier to a 128-lane slab once at build time so the fused
            # epilogue's output store is lane-dense (unmasked vst).
            out_pad = ((out_dim + 127) // 128) * 128
            w_p = jnp.pad(w, ((0, 0), (0, out_pad - out_dim))).astype(jnp.bfloat16)
            b_p = jnp.pad(b, ((0, 0), (0, out_pad - out_dim)))
            st["head"] = (w_p, b_p, act, out_dim, out_pad)
        return st

    # ---- fused transformer stack (one pallas_call) ----
    def _run_stack(self, x, st):
        B, N, C = x.shape
        n_pad = ((N + 7) // 8) * 8            # sublane-align the token count
        if n_pad != N:
            x = jnp.pad(x, ((0, 0), (0, n_pad - N), (0, 0)))
        L, nh = st["L"], st["nh"]
        fuse_head = st["head"] is not None
        head_act = st["head"][2] if fuse_head else None

        kernel = _make_stack_kernel(C, nh, N, n_pad, L, fuse_head, head_act)

        def wspec(arr):
            shp = arr.shape
            return pl.BlockSpec((1,) + shp[1:], lambda b, l: (l,) + (0,) * (len(shp) - 1))

        # TODO(synk): at real ViT sizes, single-buffer the grid-invariant weight inputs
        # and tile the MLP along hidden to stay under v7x's 64 MiB VMEM.
        weights = [st["wqkv"], st["wpr"], st["bproj"],
                   st["ln1_g"], st["ln1_b"], st["ln2_g"], st["ln2_b"],
                   st["w1"], st["b1"], st["w2"], st["b2"]]
        in_specs = [pl.BlockSpec((1, n_pad, C), lambda b, l: (b, 0, 0))]
        in_specs += [wspec(a) for a in weights]
        inputs = [x] + weights

        if fuse_head:
            hw, hb, _, out_dim, out_pad = st["head"]
            in_specs += [pl.BlockSpec(hw.shape, lambda b, l: (0, 0)),
                         pl.BlockSpec(hb.shape, lambda b, l: (0, 0))]
            inputs += [hw, hb]
            out_shape = jax.ShapeDtypeStruct((B, 1, out_pad), jnp.float32)
            out_spec = pl.BlockSpec((1, 1, out_pad), lambda b, l: (b, 0, 0))
        else:
            out_shape = jax.ShapeDtypeStruct((B, n_pad, C), jnp.float32)
            out_spec = pl.BlockSpec((1, n_pad, C), lambda b, l: (b, 0, 0))

        grid_spec = pltpu.PrefetchScalarGridSpec(
            num_scalar_prefetch=0,
            grid=(B, L),
            in_specs=in_specs,
            out_specs=out_spec,
            scratch_shapes=[pltpu.VMEM((n_pad, C), jnp.float32)],
        )
        out = pl.pallas_call(
            kernel,
            out_shape=out_shape,
            grid_spec=grid_spec,
            compiler_params=pltpu.CompilerParams(
                dimension_semantics=("parallel", "arbitrary"),
                vmem_limit_bytes=32 * 1024 * 1024),
        )(*inputs)
        return out[:, 0, :out_dim] if fuse_head else out[:, :N, :]

    def _dense(self, x, w, b, act):
        return pl.pallas_call(
            _make_dense_kernel(act),
            out_shape=jax.ShapeDtypeStruct((x.shape[0], w.shape[1]), jnp.float32),
        )(x, w.astype(jnp.bfloat16), b)

    # ---- forward ----
    def __call__(self, x):
        for name, cfg in self.ops:
            if name == "pool":
                k, s = cfg
                assert k == s and x.shape[2] % k == 0 and x.shape[3] % k == 0, \
                    "only non-overlapping, evenly dividing AvgPool2d is supported"
                B, C, H, W = x.shape
                # tiny mem-bound op: left to XLA (fuses with the reshape)
                x = x.reshape(B, C, H // k, k, W // k, k).mean(axis=(3, 5))
            elif name == "reshape":                           # b c h w -> b (h w) c
                B, C, H, W = x.shape
                x = jnp.transpose(x, (0, 2, 3, 1)).reshape(B, H * W, C)
            elif name == "insert_cls":
                cls = jnp.broadcast_to(self.cls_token, (x.shape[0], 1, x.shape[2]))
                x = jnp.concatenate([cls, x], axis=1)
            elif name == "stack":
                x = self._run_stack(x, cfg)
            elif name == "extract_cls":
                x = x[:, 0]
            elif name == "fullypool":
                x = jnp.mean(x, axis=1)
            elif name == "flatten":
                x = x.reshape(x.shape[0], -1)
            elif name == "dense":
                x = self._dense(x, *cfg)
        return x


# ----------------------------------------------------------------------------- pure-JAX reference
def _ref_block(x, dim, nh, p):
    hd = dim // nh

    def ln(z, g, b):
        mu = z.mean(-1, keepdims=True)
        var = jnp.square(z - mu).mean(-1, keepdims=True)
        return (z - mu) / jnp.sqrt(var + LN_EPS) * g[0] + b[0]

    B, N, C = x.shape
    xn = ln(x, p["ln1_g"], p["ln1_b"])
    qkv = (xn @ p["wqkv"]).reshape(B, N, 3, nh, hd).transpose(2, 0, 3, 1, 4)
    q, k, v = qkv[0], qkv[1], qkv[2]
    q = q * hd ** (-0.5)
    att = jax.nn.softmax(q @ jnp.swapaxes(k, -1, -2), axis=-1)
    o = (att @ v).transpose(0, 2, 1, 3).reshape(B, N, C)
    x = x + o @ p["wproj"] + p["bproj"][0]
    x2 = ln(x, p["ln2_g"], p["ln2_b"])
    h = jax.nn.gelu(x2 @ p["w1"] + p["b1"][0], approximate=False)
    return x + h @ p["w2"] + p["b2"][0]


def reference_forward(model, x):
    for name, cfg in model.layers:
        if name == "pool":
            k, s = cfg
            B, C, H, W = x.shape
            x = x.reshape(B, C, H // k, k, W // k, k).mean(axis=(3, 5))
        elif name == "reshape":
            B, C, H, W = x.shape
            x = jnp.transpose(x, (0, 2, 3, 1)).reshape(B, H * W, C)
        elif name == "insert_cls":
            cls = jnp.broadcast_to(model.cls_token, (x.shape[0], 1, x.shape[2]))
            x = jnp.concatenate([cls, x], axis=1)
        elif name == "block":
            dim, nh, p = cfg
            x = _ref_block(x, dim, nh, p)
        elif name == "extract_cls":
            x = x[:, 0]
        elif name == "fullypool":
            x = jnp.mean(x, axis=1)
        elif name == "flatten":
            x = x.reshape(x.shape[0], -1)
        elif name == "dense":
            w, b, act = cfg
            x = _apply_act(x @ w + b[0], act)
    return x


# ----------------------------------------------------------------------------- main
if __name__ == "__main__":
    key = jax.random.PRNGKey(0)
    k_param, k_in = jax.random.split(key)

    layer_string = ("Use_CLS_Token:True:32, Pool:2:2, Reshape, Insert_CLS_Token, "
                    "Attention:32:4:2.0:2, Extract_CLS_Token, Dense:32:10:relu")

    model = AttentionHeadPallas(layer_string, k_param)

    # NCHW input: B=2, C=dim=32, H=W=8 -> pool -> 4x4=16 tokens (+1 CLS) -> (2, 10) logits
    x = jax.random.normal(k_in, (2, 32, 8, 8), jnp.float32)

    out = jax.block_until_ready(model(x))
    assert out.shape == (2, 10), out.shape

    ref = jax.block_until_ready(reference_forward(model, x))
    # bf16-at-the-MXU kernel (tanh-GELU, approx reciprocal) vs full-f32 / exact-GELU reference.
    np.testing.assert_allclose(np.asarray(out), np.asarray(ref), rtol=1e-2, atol=1e-2)

    print("KERNEL_OK")
</pallas_src>

<mosaic_0001>
module attributes {stable_mosaic.version = 11 : i64} {
  func.func @kernel(%arg0: i32, %arg1: i32, %arg2: memref<1x24x32xf32, #tpu.memory_space<vmem>>, %arg3: memref<1x12x32x8xbf16, #tpu.memory_space<vmem>>, %arg4: memref<1x4x8x32xbf16, #tpu.memory_space<vmem>>, %arg5: memref<1x1x32xf32, #tpu.memory_space<vmem>>, %arg6: memref<1x1x32xf32, #tpu.memory_space<vmem>>, %arg7: memref<1x1x32xf32, #tpu.memory_space<vmem>>, %arg8: memref<1x1x32xf32, #tpu.memory_space<vmem>>, %arg9: memref<1x1x32xf32, #tpu.memory_space<vmem>>, %arg10: memref<1x32x64xbf16, #tpu.memory_space<vmem>>, %arg11: memref<1x1x64xf32, #tpu.memory_space<vmem>>, %arg12: memref<1x64x32xbf16, #tpu.memory_space<vmem>>, %arg13: memref<1x1x32xf32, #tpu.memory_space<vmem>>, %arg14: memref<32x128xbf16, #tpu.memory_space<vmem>>, %arg15: memref<1x128xf32, #tpu.memory_space<vmem>>, %arg16: memref<1x1x128xf32, #tpu.memory_space<vmem>>, %arg17: memref<24x32xf32, #tpu.memory_space<vmem>>) attributes {dimension_semantics = [#tpu.dimension_semantics<parallel>, #tpu.dimension_semantics<arbitrary>], iteration_bounds = array<i64: 2, 2>, scalar_prefetch = 0 : i64, scratch_operands = 1 : i64, tpu.core_type = #tpu.core_type<tc>, window_params = [{transform_indices = @transform_0, window_bounds = array<i64: 1, 24, 32>}, {transform_indices = @transform_1, window_bounds = array<i64: 1, 12, 32, 8>}, {transform_indices = @transform_2, window_bounds = array<i64: 1, 4, 8, 32>}, {transform_indices = @transform_3, window_bounds = array<i64: 1, 1, 32>}, {transform_indices = @transform_4, window_bounds = array<i64: 1, 1, 32>}, {transform_indices = @transform_5, window_bounds = array<i64: 1, 1, 32>}, {transform_indices = @transform_6, window_bounds = array<i64: 1, 1, 32>}, {transform_indices = @transform_7, window_bounds = array<i64: 1, 1, 32>}, {transform_indices = @transform_8, window_bounds = array<i64: 1, 32, 64>}, {transform_indices = @transform_9, window_bounds = array<i64: 1, 1, 64>}, {transform_indices = @transform_10, window_bounds = array<i64: 1, 64, 32>}, {transform_indices = @transform_11, window_bounds = array<i64: 1, 1, 32>}, {pipeline_mode = #tpu.pipeline_mode<synchronous>, transform_indices = @transform_12, window_bounds = array<i64: 32, 128>}, {pipeline_mode = #tpu.pipeline_mode<synchronous>, transform_indices = @transform_13, window_bounds = array<i64: 1, 128>}, {transform_indices = @transform_14, window_bounds = array<i64: 1, 1, 128>}]} {
    %c0_i32 = arith.constant 0 : i32
    %0 = arith.cmpi eq, %arg1, %c0_i32 : i32
    %1 = arith.extui %0 : i1 to i32
    %c0_i32_0 = arith.constant 0 : i32
    %2 = arith.cmpi ne, %1, %c0_i32_0 : i32
    scf.if %2 {
      %c0_63 = arith.constant 0 : index
      %c0_64 = arith.constant 0 : index
      %c0_65 = arith.constant 0 : index
      %133 = vector.load %arg2[%c0_63, %c0_64, %c0_65] : memref<1x24x32xf32, #tpu.memory_space<vmem>>, vector<1x24x32xf32>
      %134 = vector.shape_cast %133 : vector<1x24x32xf32> to vector<24x32xf32>
      %c0_66 = arith.constant 0 : index
      %c0_67 = arith.constant 0 : index
      %135 = vector.load %arg17[%c0_66, %c0_67] : memref<24x32xf32, #tpu.memory_space<vmem>>, vector<24x32xf32>
      tpu.vector_store %arg17[%c0_66, %c0_67], %134 {strides = array<i32>} : memref<24x32xf32, #tpu.memory_space<vmem>>, vector<24x32xf32>,
    } else {
    }
    %c0 = arith.constant 0 : index
    %c0_1 = arith.constant 0 : index
    %3 = vector.load %arg17[%c0, %c0_1] : memref<24x32xf32, #tpu.memory_space<vmem>>, vector<24x32xf32>
    %cst = arith.constant dense<0.000000e+00> : vector<24xf32>
    %4 = vector.multi_reduction <add>, %3, %cst [1] : vector<24x32xf32> to vector<24xf32>
    %5 = vector.shape_cast %4 : vector<24xf32> to vector<24x1xf32>
    %cst_2 = arith.constant 3.200000e+01 : f32
    %6 = vector.broadcast %cst_2 : f32 to vector<24x1xf32>
    %7 = arith.divf %5, %6 : vector<24x1xf32>
    %8 = vector.broadcast %7 : vector<24x1xf32> to vector<24x32xf32>
    %9 = arith.subf %3, %8 : vector<24x32xf32>
    %10 = arith.mulf %9, %9 : vector<24x32xf32>
    %cst_3 = arith.constant dense<0.000000e+00> : vector<24xf32>
    %11 = vector.multi_reduction <add>, %10, %cst_3 [1] : vector<24x32xf32> to vector<24xf32>
    %12 = vector.shape_cast %11 : vector<24xf32> to vector<24x1xf32>
    %cst_4 = arith.constant 3.200000e+01 : f32
    %13 = vector.broadcast %cst_4 : f32 to vector<24x1xf32>
    %14 = arith.divf %12, %13 : vector<24x1xf32>
    %15 = vector.broadcast %7 : vector<24x1xf32> to vector<24x32xf32>
    %16 = arith.subf %3, %15 : vector<24x32xf32>
    %cst_5 = arith.constant 9.99999974E-6 : f32
    %17 = vector.broadcast %cst_5 : f32 to vector<24x1xf32>
    %18 = arith.addf %14, %17 : vector<24x1xf32>
    %19 = math.rsqrt %18 : vector<24x1xf32>
    %20 = vector.broadcast %19 : vector<24x1xf32> to vector<24x32xf32>
    %21 = arith.mulf %16, %20 : vector<24x32xf32>
    %c0_6 = arith.constant 0 : index
    %c0_7 = arith.constant 0 : index
    %c0_8 = arith.constant 0 : index
    %22 = vector.load %arg6[%c0_6, %c0_7, %c0_8] : memref<1x1x32xf32, #tpu.memory_space<vmem>>, vector<1x1x32xf32>
    %23 = vector.shape_cast %22 : vector<1x1x32xf32> to vector<1x32xf32>
    %24 = vector.broadcast %23 : vector<1x32xf32> to vector<24x32xf32>
    %25 = arith.mulf %21, %24 : vector<24x32xf32>
    %c0_9 = arith.constant 0 : index
    %c0_10 = arith.constant 0 : index
    %c0_11 = arith.constant 0 : index
    %26 = vector.load %arg7[%c0_9, %c0_10, %c0_11] : memref<1x1x32xf32, #tpu.memory_space<vmem>>, vector<1x1x32xf32>
    %27 = vector.shape_cast %26 : vector<1x1x32xf32> to vector<1x32xf32>
    %28 = vector.broadcast %27 : vector<1x32xf32> to vector<24x32xf32>
    %29 = arith.addf %25, %28 : vector<24x32xf32>
    %30 = arith.truncf %29 : vector<24x32xf32> to vector<24x32xbf16>
    %31 = vector.shape_cast %30 : vector<24x32xbf16> to vector<1x24x32xbf16>
    %32 = vector.shape_cast %31 : vector<1x24x32xbf16> to vector<1x24x32xbf16>
    %33 = vector.broadcast %32 : vector<1x24x32xbf16> to vector<12x24x32xbf16>
    %c0_12 = arith.constant 0 : index
    %c0_13 = arith.constant 0 : index
    %c0_14 = arith.constant 0 : index
    %c0_15 = arith.constant 0 : index
    %34 = vector.load %arg3[%c0_12, %c0_13, %c0_14, %c0_15] : memref<1x12x32x8xbf16, #tpu.memory_space<vmem>>, vector<1x12x32x8xbf16>
    %35 = vector.shape_cast %34 : vector<1x12x32x8xbf16> to vector<12x32x8xbf16>
    %cst_16 = arith.constant dense<0.000000e+00> : vector<12x24x8xf32>
    %36 = tpu.matmul %33, %35, %cst_16 {dimension_numbers = #tpu.dot_dimension_numbers<[2], [1], [1], [2], [0, 0, 0, 1, 1, 2], [0], [0]>} : vector<12x24x32xbf16>, vector<12x32x8xbf16>, vector<12x24x8xf32> -> vector<12x24x8xf32>
    %37 = vector.extract_strided_slice %36 {offsets = [0, 0, 0], sizes = [4, 24, 8], strides = [1, 1, 1]} : vector<12x24x8xf32> to vector<4x24x8xf32>
    %38 = arith.truncf %37 : vector<4x24x8xf32> to vector<4x24x8xbf16>
    %39 = vector.extract_strided_slice %36 {offsets = [4, 0, 0], sizes = [4, 24, 8], strides = [1, 1, 1]} : vector<12x24x8xf32> to vector<4x24x8xf32>
    %40 = arith.truncf %39 : vector<4x24x8xf32> to vector<4x24x8xbf16>
    %41 = vector.extract_strided_slice %36 {offsets = [8, 0, 0], sizes = [4, 24, 8], strides = [1, 1, 1]} : vector<12x24x8xf32> to vector<4x24x8xf32>
    %42 = arith.truncf %41 : vector<4x24x8xf32> to vector<4x24x8xbf16>
    %cst_17 = arith.constant dense<0.000000e+00> : vector<4x24x24xf32>
    %43 = tpu.matmul %38, %40, %cst_17 {dimension_numbers = #tpu.dot_dimension_numbers<[2], [2], [1], [1], [0, 0, 0, 1, 1, 1], [0], [0]>} : vector<4x24x8xbf16>, vector<4x24x8xbf16>, vector<4x24x24xf32> -> vector<4x24x24xf32>
    %44 = tpu.iota {dimensions = array<i32: 2>} : vector<1x1x24xi32>
    %c17_i32 = arith.constant 17 : i32
    %45 = vector.broadcast %c17_i32 : i32 to vector<1x1x24xi32>
    %46 = arith.cmpi slt, %44, %45 : vector<1x1x24xi32>
    %cst_18 = arith.constant -1.000000e+30 : f32
    %47 = vector.shape_cast %46 : vector<1x1x24xi1> to vector<1x1x24xi1>
    %48 = vector.broadcast %47 : vector<1x1x24xi1> to vector<4x24x24xi1>
    %49 = vector.broadcast %cst_18 : f32 to vector<4x24x24xf32>
    %50 = arith.select %48, %43, %49 : vector<4x24x24xi1>, vector<4x24x24xf32>
    %cst_19 = arith.constant dense<0xFF800000> : vector<4x24xf32>
    %51 = vector.multi_reduction <maximumf>, %50, %cst_19 [2] : vector<4x24x24xf32> to vector<4x24xf32>
    %52 = vector.shape_cast %51 : vector<4x24xf32> to vector<4x24x1xf32>
    %53 = vector.broadcast %52 : vector<4x24x1xf32> to vector<4x24x24xf32>
    %54 = arith.subf %50, %53 : vector<4x24x24xf32>
    %55 = math.exp %54 : vector<4x24x24xf32>
    %cst_20 = arith.constant dense<0.000000e+00> : vector<4x24xf32>
    %56 = vector.multi_reduction <add>, %55, %cst_20 [2] : vector<4x24x24xf32> to vector<4x24xf32>
    %57 = vector.shape_cast %56 : vector<4x24xf32> to vector<4x24x1xf32>
    %58 = tpu.reciprocal %57 {approx = true} : vector<4x24x1xf32> -> vector<4x24x1xf32>
    %59 = vector.broadcast %58 : vector<4x24x1xf32> to vector<4x24x24xf32>
    %60 = arith.mulf %55, %59 : vector<4x24x24xf32>
    %61 = arith.truncf %60 : vector<4x24x24xf32> to vector<4x24x24xbf16>
    %cst_21 = arith.constant dense<0.000000e+00> : vector<4x24x8xf32>
    %62 = tpu.matmul %61, %42, %cst_21 {dimension_numbers = #tpu.dot_dimension_numbers<[2], [1], [1], [2], [0, 0, 0, 1, 1, 2], [0], [0]>} : vector<4x24x24xbf16>, vector<4x24x8xbf16>, vector<4x24x8xf32> -> vector<4x24x8xf32>
    %63 = arith.truncf %62 : vector<4x24x8xf32> to vector<4x24x8xbf16>
    %c0_22 = arith.constant 0 : index
    %c0_23 = arith.constant 0 : index
    %c0_24 = arith.constant 0 : index
    %c0_25 = arith.constant 0 : index
    %64 = vector.load %arg4[%c0_22, %c0_23, %c0_24, %c0_25] : memref<1x4x8x32xbf16, #tpu.memory_space<vmem>>, vector<1x4x8x32xbf16>
    %65 = vector.shape_cast %64 : vector<1x4x8x32xbf16> to vector<4x8x32xbf16>
    %cst_26 = arith.constant dense<0.000000e+00> : vector<4x24x32xf32>
    %66 = tpu.matmul %63, %65, %cst_26 {dimension_numbers = #tpu.dot_dimension_numbers<[2], [1], [1], [2], [0, 0, 0, 1, 1, 2], [0], [0]>} : vector<4x24x8xbf16>, vector<4x8x32xbf16>, vector<4x24x32xf32> -> vector<4x24x32xf32>
    %cst_27 = arith.constant dense<0.000000e+00> : vector<24x32xf32>
    %67 = vector.multi_reduction <add>, %66, %cst_27 [0] : vector<4x24x32xf32> to vector<24x32xf32>
    %68 = arith.addf %3, %67 : vector<24x32xf32>
    %c0_28 = arith.constant 0 : index
    %c0_29 = arith.constant 0 : index
    %c0_30 = arith.constant 0 : index
    %69 = vector.load %arg5[%c0_28, %c0_29, %c0_30] : memref<1x1x32xf32, #tpu.memory_space<vmem>>, vector<1x1x32xf32>
    %70 = vector.shape_cast %69 : vector<1x1x32xf32> to vector<1x32xf32>
    %71 = vector.broadcast %70 : vector<1x32xf32> to vector<24x32xf32>
    %72 = arith.addf %68, %71 : vector<24x32xf32>
    %cst_31 = arith.constant dense<0.000000e+00> : vector<24xf32>
    %73 = vector.multi_reduction <add>, %72, %cst_31 [1] : vector<24x32xf32> to vector<24xf32>
    %74 = vector.shape_cast %73 : vector<24xf32> to vector<24x1xf32>
    %cst_32 = arith.constant 3.200000e+01 : f32
    %75 = vector.broadcast %cst_32 : f32 to vector<24x1xf32>
    %76 = arith.divf %74, %75 : vector<24x1xf32>
    %77 = vector.broadcast %76 : vector<24x1xf32> to vector<24x32xf32>
    %78 = arith.subf %72, %77 : vector<24x32xf32>
    %79 = arith.mulf %78, %78 : vector<24x32xf32>
    %cst_33 = arith.constant dense<0.000000e+00> : vector<24xf32>
    %80 = vector.multi_reduction <add>, %79, %cst_33 [1] : vector<24x32xf32> to vector<24xf32>
    %81 = vector.shape_cast %80 : vector<24xf32> to vector<24x1xf32>
    %cst_34 = arith.constant 3.200000e+01 : f32
    %82 = vector.broadcast %cst_34 : f32 to vector<24x1xf32>
    %83 = arith.divf %81, %82 : vector<24x1xf32>
    %84 = vector.broadcast %76 : vector<24x1xf32> to vector<24x32xf32>
    %85 = arith.subf %72, %84 : vector<24x32xf32>
    %cst_35 = arith.constant 9.99999974E-6 : f32
    %86 = vector.broadcast %cst_35 : f32 to vector<24x1xf32>
    %87 = arith.addf %83, %86 : vector<24x1xf32>
    %88 = math.rsqrt %87 : vector<24x1xf32>
    %89 = vector.broadcast %88 : vector<24x1xf32> to vector<24x32xf32>
    %90 = arith.mulf %85, %89 : vector<24x32xf32>
    %c0_36 = arith.constant 0 : index
    %c0_37 = arith.constant 0 : index
    %c0_38 = arith.constant 0 : index
    %91 = vector.load %arg8[%c0_36, %c0_37, %c0_38] : memref<1x1x32xf32, #tpu.memory_space<vmem>>, vector<1x1x32xf32>
    %92 = vector.shape_cast %91 : vector<1x1x32xf32> to vector<1x32xf32>
    %93 = vector.broadcast %92 : vector<1x32xf32> to vector<24x32xf32>
    %94 = arith.mulf %90, %93 : vector<24x32xf32>
    %c0_39 = arith.constant 0 : index
    %c0_40 = arith.constant 0 : index
    %c0_41 = arith.constant 0 : index
    %95 = vector.load %arg9[%c0_39, %c0_40, %c0_41] : memref<1x1x32xf32, #tpu.memory_space<vmem>>, vector<1x1x32xf32>
    %96 = vector.shape_cast %95 : vector<1x1x32xf32> to vector<1x32xf32>
    %97 = vector.broadcast %96 : vector<1x32xf32> to vector<24x32xf32>
    %98 = arith.addf %94, %97 : vector<24x32xf32>
    %99 = arith.truncf %98 : vector<24x32xf32> to vector<24x32xbf16>
    %c0_42 = arith.constant 0 : index
    %c0_43 = arith.constant 0 : index
    %c0_44 = arith.constant 0 : index
    %100 = vector.load %arg10[%c0_42, %c0_43, %c0_44] : memref<1x32x64xbf16, #tpu.memory_space<vmem>>, vector<1x32x64xbf16>
    %101 = vector.shape_cast %100 : vector<1x32x64xbf16> to vector<32x64xbf16>
    %cst_45 = arith.constant dense<0.000000e+00> : vector<24x64xf32>
    %102 = tpu.matmul %99, %101, %cst_45 {dimension_numbers = #tpu.dot_dimension_numbers<[1], [0], [0], [1], [0, 0, 1, 1], [], []>} : vector<24x32xbf16>, vector<32x64xbf16>, vector<24x64xf32> -> vector<24x64xf32>
    %c0_46 = arith.constant 0 : index
    %c0_47 = arith.constant 0 : index
    %c0_48 = arith.constant 0 : index
    %103 = vector.load %arg11[%c0_46, %c0_47, %c0_48] : memref<1x1x64xf32, #tpu.memory_space<vmem>>, vector<1x1x64xf32>
    %104 = vector.shape_cast %103 : vector<1x1x64xf32> to vector<1x64xf32>
    %105 = vector.broadcast %104 : vector<1x64xf32> to vector<24x64xf32>
    %106 = arith.addf %102, %105 : vector<24x64xf32>
    %cst_49 = arith.constant 5.000000e-01 : f32
    %107 = vector.broadcast %cst_49 : f32 to vector<24x64xf32>
    %108 = arith.mulf %107, %106 : vector<24x64xf32>
    %cst_50 = arith.constant 4.471500e-02 : f32
    %109 = vector.broadcast %cst_50 : f32 to vector<24x64xf32>
    %110 = arith.mulf %109, %106 : vector<24x64xf32>
    %111 = arith.mulf %110, %106 : vector<24x64xf32>
    %112 = arith.mulf %111, %106 : vector<24x64xf32>
    %113 = arith.addf %106, %112 : vector<24x64xf32>
    %cst_51 = arith.constant 0.797884583 : f32
    %114 = vector.broadcast %cst_51 : f32 to vector<24x64xf32>
    %115 = arith.mulf %114, %113 : vector<24x64xf32>
    %116 = math.tanh %115 : vector<24x64xf32>
    %cst_52 = arith.constant 1.000000e+00 : f32
    %117 = vector.broadcast %cst_52 : f32 to vector<24x64xf32>
    %118 = arith.addf %117, %116 : vector<24x64xf32>
    %119 = arith.mulf %108, %118 : vector<24x64xf32>
    %120 = arith.truncf %119 : vector<24x64xf32> to vector<24x64xbf16>
    %c0_53 = arith.constant 0 : index
    %c0_54 = arith.constant 0 : index
    %c0_55 = arith.constant 0 : index
    %121 = vector.load %arg12[%c0_53, %c0_54, %c0_55] : memref<1x64x32xbf16, #tpu.memory_space<vmem>>, vector<1x64x32xbf16>
    %122 = vector.shape_cast %121 : vector<1x64x32xbf16> to vector<64x32xbf16>
    %cst_56 = arith.constant dense<0.000000e+00> : vector<24x32xf32>
    %123 = tpu.matmul %120, %122, %cst_56 {dimension_numbers = #tpu.dot_dimension_numbers<[1], [0], [0], [1], [0, 0, 1, 1], [], []>} : vector<24x64xbf16>, vector<64x32xbf16>, vector<24x32xf32> -> vector<24x32xf32>
    %c0_57 = arith.constant 0 : index
    %c0_58 = arith.constant 0 : index
    %c0_59 = arith.constant 0 : index
    %124 = vector.load %arg13[%c0_57, %c0_58, %c0_59] : memref<1x1x32xf32, #tpu.memory_space<vmem>>, vector<1x1x32xf32>
    %125 = vector.shape_cast %124 : vector<1x1x32xf32> to vector<1x32xf32>
    %126 = vector.broadcast %125 : vector<1x32xf32> to vector<24x32xf32>
    %127 = arith.addf %123, %126 : vector<24x32xf32>
    %128 = arith.addf %72, %127 : vector<24x32xf32>
    %c0_60 = arith.constant 0 : index
    %c0_61 = arith.constant 0 : index
    %129 = vector.load %arg17[%c0_60, %c0_61] : memref<24x32xf32, #tpu.memory_space<vmem>>, vector<24x32xf32>
    tpu.vector_store %arg17[%c0_60, %c0_61], %128 {strides = array<i32>} : memref<24x32xf32, #tpu.memory_space<vmem>>, vector<24x32xf32>,
    %c1_i32 = arith.constant 1 : i32
    %130 = arith.cmpi eq, %arg1, %c1_i32 : i32
    %131 = arith.extui %130 : i1 to i32
    %c0_i32_62 = arith.constant 0 : i32
    %132 = arith.cmpi ne, %131, %c0_i32_62 : i32
    scf.if %132 {
      %133 = vector.extract_strided_slice %128 {offsets = [0, 0], sizes = [1, 32], strides = [1, 1]} : vector<24x32xf32> to vector<1x32xf32>
      %134 = arith.truncf %133 : vector<1x32xf32> to vector<1x32xbf16>
      %c0_63 = arith.constant 0 : index
      %c0_64 = arith.constant 0 : index
      %135 = vector.load %arg14[%c0_63, %c0_64] : memref<32x128xbf16, #tpu.memory_space<vmem>>, vector<32x128xbf16>
      %cst_65 = arith.constant dense<0.000000e+00> : vector<1x128xf32>
      %136 = tpu.matmul %134, %135, %cst_65 {dimension_numbers = #tpu.dot_dimension_numbers<[1], [0], [0], [1], [0, 0, 1, 1], [], []>} : vector<1x32xbf16>, vector<32x128xbf16>, vector<1x128xf32> -> vector<1x128xf32>
      %c0_66 = arith.constant 0 : index
      %c0_67 = arith.constant 0 : index
      %137 = vector.load %arg15[%c0_66, %c0_67] : memref<1x128xf32, #tpu.memory_space<vmem>>, vector<1x128xf32>
      %138 = arith.addf %136, %137 : vector<1x128xf32>
      %cst_68 = arith.constant 0.000000e+00 : f32
      %139 = vector.broadcast %cst_68 : f32 to vector<1x128xf32>
      %140 = arith.maximumf %138, %139 : vector<1x128xf32>
      %c0_69 = arith.constant 0 : index
      %c0_70 = arith.constant 0 : index
      %c0_71 = arith.constant 0 : index
      %141 = vector.load %arg16[%c0_69, %c0_70, %c0_71] : memref<1x1x128xf32, #tpu.memory_space<vmem>>, vector<1x1x128xf32>
      %142 = vector.shape_cast %141 : vector<1x1x128xf32> to vector<1x128xf32>
      %143 = vector.shape_cast %140 : vector<1x128xf32> to vector<1x1x128xf32>
      tpu.vector_store %arg16[%c0_69, %c0_70, %c0_71], %143 {strides = array<i32>} : memref<1x1x128xf32, #tpu.memory_space<vmem>>, vector<1x1x128xf32>,
    } else {
    }
    return
  }
  func.func @transform_0(%arg0: i32, %arg1: i32) -> (i32, i32, i32) {
    %c0_i32 = arith.constant 0 : i32
    %c0_i32_0 = arith.constant 0 : i32
    %c0_i32_1 = arith.constant 0 : i32
    return %arg0, %c0_i32, %c0_i32_0 : i32, i32, i32
  }
  func.func @transform_1(%arg0: i32, %arg1: i32) -> (i32, i32, i32, i32) {
    %c0_i32 = arith.constant 0 : i32
    %c0_i32_0 = arith.constant 0 : i32
    %c0_i32_1 = arith.constant 0 : i32
    %c0_i32_2 = arith.constant 0 : i32
    return %arg1, %c0_i32, %c0_i32_0, %c0_i32_1 : i32, i32, i32, i32
  }
  func.func @transform_2(%arg0: i32, %arg1: i32) -> (i32, i32, i32, i32) {
    %c0_i32 = arith.constant 0 : i32
    %c0_i32_0 = arith.constant 0 : i32
    %c0_i32_1 = arith.constant 0 : i32
    %c0_i32_2 = arith.constant 0 : i32
    return %arg1, %c0_i32, %c0_i32_0, %c0_i32_1 : i32, i32, i32, i32
  }
  func.func @transform_3(%arg0: i32, %arg1: i32) -> (i32, i32, i32) {
    %c0_i32 = arith.constant 0 : i32
    %c0_i32_0 = arith.constant 0 : i32
    %c0_i32_1 = arith.constant 0 : i32
    return %arg1, %c0_i32, %c0_i32_0 : i32, i32, i32
  }
  func.func @transform_4(%arg0: i32, %arg1: i32) -> (i32, i32, i32) {
    %c0_i32 = arith.constant 0 : i32
    %c0_i32_0 = arith.constant 0 : i32
    %c0_i32_1 = arith.constant 0 : i32
    return %arg1, %c0_i32, %c0_i32_0 : i32, i32, i32
  }
  func.func @transform_5(%arg0: i32, %arg1: i32) -> (i32, i32, i32) {
    %c0_i32 = arith.constant 0 : i32
    %c0_i32_0 = arith.constant 0 : i32
    %c0_i32_1 = arith.constant 0 : i32
    return %arg1, %c0_i32, %c0_i32_0 : i32, i32, i32
  }
  func.func @transform_6(%arg0: i32, %arg1: i32) -> (i32, i32, i32) {
    %c0_i32 = arith.constant 0 : i32
    %c0_i32_0 = arith.constant 0 : i32
    %c0_i32_1 = arith.constant 0 : i32
    return %arg1, %c0_i32, %c0_i32_0 : i32, i32, i32
  }
  func.func @transform_7(%arg0: i32, %arg1: i32) -> (i32, i32, i32) {
    %c0_i32 = arith.constant 0 : i32
    %c0_i32_0 = arith.constant 0 : i32
    %c0_i32_1 = arith.constant 0 : i32
    return %arg1, %c0_i32, %c0_i32_0 : i32, i32, i32
  }
  func.func @transform_8(%arg0: i32, %arg1: i32) -> (i32, i32, i32) {
    %c0_i32 = arith.constant 0 : i32
    %c0_i32_0 = arith.constant 0 : i32
    %c0_i32_1 = arith.constant 0 : i32
    return %arg1, %c0_i32, %c0_i32_0 : i32, i32, i32
  }
  func.func @transform_9(%arg0: i32, %arg1: i32) -> (i32, i32, i32) {
    %c0_i32 = arith.constant 0 : i32
    %c0_i32_0 = arith.constant 0 : i32
    %c0_i32_1 = arith.constant 0 : i32
    return %arg1, %c0_i32, %c0_i32_0 : i32, i32, i32
  }
  func.func @transform_10(%arg0: i32, %arg1: i32) -> (i32, i32, i32) {
    %c0_i32 = arith.constant 0 : i32
    %c0_i32_0 = arith.constant 0 : i32
    %c0_i32_1 = arith.constant 0 : i32
    return %arg1, %c0_i32, %c0_i32_0 : i32, i32, i32
  }
  func.func @transform_11(%arg0: i32, %arg1: i32) -> (i32, i32, i32) {
    %c0_i32 = arith.constant 0 : i32
    %c0_i32_0 = arith.constant 0 : i32
    %c0_i32_1 = arith.constant 0 : i32
    return %arg1, %c0_i32, %c0_i32_0 : i32, i32, i32
  }
  func.func @transform_12(%arg0: i32, %arg1: i32) -> (i32, i32) {
    %c0_i32 = arith.constant 0 : i32
    %c0_i32_0 = arith.constant 0 : i32
    %c0_i32_1 = arith.constant 0 : i32
    return %c0_i32, %c0_i32_0 : i32, i32
  }
  func.func @transform_13(%arg0: i32, %arg1: i32) -> (i32, i32) {
    %c0_i32 = arith.constant 0 : i32
    %c0_i32_0 = arith.constant 0 : i32
    %c0_i32_1 = arith.constant 0 : i32
    return %c0_i32, %c0_i32_0 : i32, i32
  }
  func.func @transform_14(%arg0: i32, %arg1: i32) -> (i32, i32, i32) {
    %c0_i32 = arith.constant 0 : i32
    %c0_i32_0 = arith.constant 0 : i32
    %c0_i32_1 = arith.constant 0 : i32
    return %arg0, %c0_i32, %c0_i32_0 : i32, i32, i32
  }
}

</mosaic_0001>

<llo_original>
// kernel: tpu_custom_call.1
$region0: #{tpu_custom_call.1}
  #allocation0 [shape = 'u32[]', space=smem, size = 0x4, offset = 0x4, fixed_abs, tag = 'smem constant byte address 0x4 - core index']
  #allocation1 [shape = 'u32[144,128]{1,0:T(1,128)}', space=vmem, size = 0x12000, scoped, tag = 'internal scratch']
  #allocation2 [shape = 'f32[24,32]{1,0:T(8,128)}', space=vmem, size = 0x3000, scoped, tag = 'scratch operand']
  %s0 = inlined_call_operand.vmem [shape: f32[2,24,32], index: 0, kind: input, shape index: {}]
  %s1 = inlined_call_operand.vmem [shape: bf16[2,12,32,8], index: 1, kind: input, shape index: {}]
  %s2 = inlined_call_operand.vmem [shape: bf16[2,4,8,32], index: 2, kind: input, shape index: {}]
  %s3 = inlined_call_operand.vmem [shape: f32[2,1,32], index: 3, kind: input, shape index: {}]
  %s4 = inlined_call_operand.vmem [shape: f32[2,1,32], index: 4, kind: input, shape index: {}]
  %s5 = inlined_call_operand.vmem [shape: f32[2,1,32], index: 5, kind: input, shape index: {}]
  %s6 = inlined_call_operand.vmem [shape: f32[2,1,32], index: 6, kind: input, shape index: {}]
  %s7 = inlined_call_operand.vmem [shape: f32[2,1,32], index: 7, kind: input, shape index: {}]
  %s8 = inlined_call_operand.vmem [shape: bf16[2,32,64], index: 8, kind: input, shape index: {}]
  %s9 = inlined_call_operand.vmem [shape: f32[2,1,64], index: 9, kind: input, shape index: {}]
  %s10 = inlined_call_operand.vmem [shape: bf16[2,64,32], index: 10, kind: input, shape index: {}]
  %s11 = inlined_call_operand.vmem [shape: f32[2,1,32], index: 11, kind: input, shape index: {}]
  %s12 = inlined_call_operand.vmem [shape: bf16[32,128], index: 12, kind: input, shape index: {}]
  %s13 = inlined_call_operand.vmem [shape: f32[1,128], index: 13, kind: input, shape index: {}]
  %s14 = inlined_call_operand.hbm [shape: f32[2,1,128], index: 14, kind: output, shape index: {}]
  %s15 = sld [smem:[#allocation0]]
  $region97: #{tpu_custom_call.1} parent=0
    _
  %s17 = ssub.s32 1, %s15
  %s18 = scalar_select 0, %s17, %s15
  $region1: #{tpu_custom_call.1} parent=0
    #allocation3 [shape = 'u8[1024]{0}', space=vmem, size = 0x400, scoped, tag = 'output window, operand 0']
    #allocation4 [shape = 's32[2]{0}', space=sflag, size = 0x8, scoped, tag = 'scoped memory for tpu_custom_call.1']
    %19 = vsyncpa [#allocation4], 0
    %s20 = scalar_lea.sflag [#allocation4], 1
    %21 = vsyncpa %s20, 0
    loop: start=0, step=1, limit=6
    $region2: #{tpu_custom_call.1} parent=1 // loop_pre_header
      _
    $region3: #{tpu_custom_call.1} parent=1 // loop_header
      %s23 = sphi 0, %s27
      %p24 = scmp.ge.s32.totalorder %s23, 6
      %s30 = sphi 0, %s42
      %s31 = sphi 0, %s38
      %s32 = sphi 0, %s30
      %s33 = sphi 0, %s31
      %s34 = sphi 0, %s32
      %s35 = sphi 0, %s33
      %s45 = sphi 0, %s47
      %s48 = sphi 0, %s45
      %s49 = sphi 0, %s48
      %s65 = sphi 0, %s49
      %s71 = sphi 0, %s73
      %s74 = sphi 0, %s71
      %s75 = sphi 0, %s74
      %s91 = sphi 0, %s75
      %s97 = sphi 0, %s99
      %s100 = sphi 0, %s97
      %s101 = sphi 0, %s100
      %s117 = sphi 0, %s101
      %s123 = sphi 0, %s125
      %s126 = sphi 0, %s123
      %s127 = sphi 0, %s126
      %s143 = sphi 0, %s127
      %s149 = sphi 0, %s151
      %s152 = sphi 0, %s149
      %s153 = sphi 0, %s152
      %s169 = sphi 0, %s153
      %s175 = sphi 0, %s177
      %s178 = sphi 0, %s175
      %s179 = sphi 0, %s178
      %s195 = sphi 0, %s179
      %s201 = sphi 0, %s203
      %s204 = sphi 0, %s201
      %s205 = sphi 0, %s204
      %s221 = sphi 0, %s205
      %s227 = sphi 0, %s229
      %s230 = sphi 0, %s227
      %s231 = sphi 0, %s230
      %s247 = sphi 0, %s231
      %s253 = sphi 0, %s255
      %s256 = sphi 0, %s253
      %s257 = sphi 0, %s256
      %s273 = sphi 0, %s257
      %s279 = sphi 0, %s281
      %s282 = sphi 0, %s279
      %s283 = sphi 0, %s282
      %s299 = sphi 0, %s283
      %s305 = sphi 0, %s307
      %s308 = sphi 0, %s305
      %s309 = sphi 0, %s308
      %s325 = sphi 0, %s309
      %s331 = sphi 0, %s333
      %s334 = sphi 0, %s331
      %s335 = sphi 0, %s334
      %s351 = sphi 0, %s335
      %s355 = sphi 0, %s355
      %s357 = sphi 0, %s355
      %s358 = sphi 0, %s357
      %s372 = sphi 0, %s358
      %s376 = sphi 0, %s376
      %s378 = sphi 0, %s376
      %s379 = sphi 0, %s378
      %s393 = sphi 0, %s379
      %s399 = sphi 0, %s401
      %s402 = sphi 0, %s399
      %s403 = sphi 0, %s402
      %s419 = sphi 0, %s403
    $region4: #{tpu_custom_call.1} parent=1 // loop_header_branch
      %26 = sbr.rel (%p24) target = $region8
    $region5: #{tpu_custom_call.1} parent=1 // loop_body
      %s28 = ssub.s32 %s23, 1
      %s29 = ssub.s32 %s23, 2
      %s36 = sadd.s32 1, %s31
      %p37 = scmp.ge.s32.totalorder %s36, 2
      %s38 = scalar_select %p37, 0, %s36
      %s39 = sadd.s32 1, %s30
      %s40 = scalar_select %p37, %s39, %s30
      %p41 = scmp.ge.s32.totalorder %s40, 2
      %s42 = scalar_select %p41, 0, %s40
      %s43 = ssub.s32 %s30, %s42
      %p44 = scmp.eq.s32.totalorder %s43, 0
      %s46 = sadd.s32 %s45, 1
      %s47 = scalar_select %p44, %s45, %s46
      %p50 = pneg %p44
      %p51 = scmp.eq.s32.totalorder %s23, 3
      %p52 = por %p50, %p51
      %p53 = scmp.ne.s32.totalorder %s45, %s48
      %p54 = scmp.eq.s32.totalorder %s23, 0
      %p55 = por %p53, %p54
      %p56 = scmp.ne.s32.totalorder %s45, %s48
      %p57 = scmp.eq.s32.totalorder %s28, 3
      %p58 = por %p56, %p57
      %p59 = scmp.ne.s32.totalorder %s48, %s49
      %p60 = scmp.eq.s32.totalorder %s28, 0
      %p61 = por %p59, %p60
      %p62 = scmp.ne.s32.totalorder %s48, %s49
      %p63 = scmp.eq.s32.totalorder %s29, 3
      %p64 = por %p62, %p63
      %p66 = scmp.ne.s32.totalorder %s49, %s65
      %p67 = scmp.eq.s32.totalorder %s29, 0
      %p68 = por %p66, %p67
      %s69 = ssub.s32 %s31, %s38
      %p70 = scmp.eq.s32.totalorder %s69, 0
      %s72 = sadd.s32 %s71, 1
      %s73 = scalar_select %p70, %s71, %s72
      %p76 = pneg %p70
      %p77 = scmp.eq.s32.totalorder %s23, 3
      %p78 = por %p76, %p77
      %p79 = scmp.ne.s32.totalorder %s71, %s74
      %p80 = scmp.eq.s32.totalorder %s23, 0
      %p81 = por %p79, %p80
      %p82 = scmp.ne.s32.totalorder %s71, %s74
      %p83 = scmp.eq.s32.totalorder %s28, 3
      %p84 = por %p82, %p83
      %p85 = scmp.ne.s32.totalorder %s74, %s75
      %p86 = scmp.eq.s32.totalorder %s28, 0
      %p87 = por %p85, %p86
      %p88 = scmp.ne.s32.totalorder %s74, %s75
      %p89 = scmp.eq.s32.totalorder %s29, 3
      %p90 = por %p88, %p89
      %p92 = scmp.ne.s32.totalorder %s75, %s91
      %p93 = scmp.eq.s32.totalorder %s29, 0
      %p94 = por %p92, %p93
      %s95 = ssub.s32 %s31, %s38
      %p96 = scmp.eq.s32.totalorder %s95, 0
      %s98 = sadd.s32 %s97, 1
      %s99 = scalar_select %p96, %s97, %s98
      %p102 = pneg %p96
      %p103 = scmp.eq.s32.totalorder %s23, 3
      %p104 = por %p102, %p103
      %p105 = scmp.ne.s32.totalorder %s97, %s100
      %p106 = scmp.eq.s32.totalorder %s23, 0
      %p107 = por %p105, %p106
      %p108 = scmp.ne.s32.totalorder %s97, %s100
      %p109 = scmp.eq.s32.totalorder %s28, 3
      %p110 = por %p108, %p109
      %p111 = scmp.ne.s32.totalorder %s100, %s101
      %p112 = scmp.eq.s32.totalorder %s28, 0
      %p113 = por %p111, %p112
      %p114 = scmp.ne.s32.totalorder %s100, %s101
      %p115 = scmp.eq.s32.totalorder %s29, 3
      %p116 = por %p114, %p115
      %p118 = scmp.ne.s32.totalorder %s101, %s117
      %p119 = scmp.eq.s32.totalorder %s29, 0
      %p120 = por %p118, %p119
      %s121 = ssub.s32 %s31, %s38
      %p122 = scmp.eq.s32.totalorder %s121, 0
      %s124 = sadd.s32 %s123, 1
      %s125 = scalar_select %p122, %s123, %s124
      %p128 = pneg %p122
      %p129 = scmp.eq.s32.totalorder %s23, 3
      %p130 = por %p128, %p129
      %p131 = scmp.ne.s32.totalorder %s123, %s126
      %p132 = scmp.eq.s32.totalorder %s23, 0
      %p133 = por %p131, %p132
      %p134 = scmp.ne.s32.totalorder %s123, %s126
      %p135 = scmp.eq.s32.totalorder %s28, 3
      %p136 = por %p134, %p135
      %p137 = scmp.ne.s32.totalorder %s126, %s127
      %p138 = scmp.eq.s32.totalorder %s28, 0
      %p139 = por %p137, %p138
      %p140 = scmp.ne.s32.totalorder %s126, %s127
      %p141 = scmp.eq.s32.totalorder %s29, 3
      %p142 = por %p140, %p141
      %p144 = scmp.ne.s32.totalorder %s127, %s143
      %p145 = scmp.eq.s32.totalorder %s29, 0
      %p146 = por %p144, %p145
      %s147 = ssub.s32 %s31, %s38
      %p148 = scmp.eq.s32.totalorder %s147, 0
      %s150 = sadd.s32 %s149, 1
      %s151 = scalar_select %p148, %s149, %s150
      %p154 = pneg %p148
      %p155 = scmp.eq.s32.totalorder %s23, 3
      %p156 = por %p154, %p155
      %p157 = scmp.ne.s32.totalorder %s149, %s152
      %p158 = scmp.eq.s32.totalorder %s23, 0
      %p159 = por %p157, %p158
      %p160 = scmp.ne.s32.totalorder %s149, %s152
      %p161 = scmp.eq.s32.totalorder %s28, 3
      %p162 = por %p160, %p161
      %p163 = scmp.ne.s32.totalorder %s152, %s153
      %p164 = scmp.eq.s32.totalorder %s28, 0
      %p165 = por %p163, %p164
      %p166 = scmp.ne.s32.totalorder %s152, %s153
      %p167 = scmp.eq.s32.totalorder %s29, 3
      %p168 = por %p166, %p167
      %p170 = scmp.ne.s32.totalorder %s153, %s169
      %p171 = scmp.eq.s32.totalorder %s29, 0
      %p172 = por %p170, %p171
      %s173 = ssub.s32 %s31, %s38
      %p174 = scmp.eq.s32.totalorder %s173, 0
      %s176 = sadd.s32 %s175, 1
      %s177 = scalar_select %p174, %s175, %s176
      %p180 = pneg %p174
      %p181 = scmp.eq.s32.totalorder %s23, 3
      %p182 = por %p180, %p181
      %p183 = scmp.ne.s32.totalorder %s175, %s178
      %p184 = scmp.eq.s32.totalorder %s23, 0
      %p185 = por %p183, %p184
      %p186 = scmp.ne.s32.totalorder %s175, %s178
      %p187 = scmp.eq.s32.totalorder %s28, 3
      %p188 = por %p186, %p187
      %p189 = scmp.ne.s32.totalorder %s178, %s179
      %p190 = scmp.eq.s32.totalorder %s28, 0
      %p191 = por %p189, %p190
      %p192 = scmp.ne.s32.totalorder %s178, %s179
      %p193 = scmp.eq.s32.totalorder %s29, 3
      %p194 = por %p192, %p193
      %p196 = scmp.ne.s32.totalorder %s179, %s195
      %p197 = scmp.eq.s32.totalorder %s29, 0
      %p198 = por %p196, %p197
      %s199 = ssub.s32 %s31, %s38
      %p200 = scmp.eq.s32.totalorder %s199, 0
      %s202 = sadd.s32 %s201, 1
      %s203 = scalar_select %p200, %s201, %s202
      %p206 = pneg %p200
      %p207 = scmp.eq.s32.totalorder %s23, 3
      %p208 = por %p206, %p207
      %p209 = scmp.ne.s32.totalorder %s201, %s204
      %p210 = scmp.eq.s32.totalorder %s23, 0
      %p211 = por %p209, %p210
      %p212 = scmp.ne.s32.totalorder %s201, %s204
      %p213 = scmp.eq.s32.totalorder %s28, 3
      %p214 = por %p212, %p213
      %p215 = scmp.ne.s32.totalorder %s204, %s205
      %p216 = scmp.eq.s32.totalorder %s28, 0
      %p217 = por %p215, %p216
      %p218 = scmp.ne.s32.totalorder %s204, %s205
      %p219 = scmp.eq.s32.totalorder %s29, 3
      %p220 = por %p218, %p219
      %p222 = scmp.ne.s32.totalorder %s205, %s221
      %p223 = scmp.eq.s32.totalorder %s29, 0
      %p224 = por %p222, %p223
      %s225 = ssub.s32 %s31, %s38
      %p226 = scmp.eq.s32.totalorder %s225, 0
      %s228 = sadd.s32 %s227, 1
      %s229 = scalar_select %p226, %s227, %s228
      %p232 = pneg %p226
      %p233 = scmp.eq.s32.totalorder %s23, 3
      %p234 = por %p232, %p233
      %p235 = scmp.ne.s32.totalorder %s227, %s230
      %p236 = scmp.eq.s32.totalorder %s23, 0
      %p237 = por %p235, %p236
      %p238 = scmp.ne.s32.totalorder %s227, %s230
      %p239 = scmp.eq.s32.totalorder %s28, 3
      %p240 = por %p238, %p239
      %p241 = scmp.ne.s32.totalorder %s230, %s231
      %p242 = scmp.eq.s32.totalorder %s28, 0
      %p243 = por %p241, %p242
      %p244 = scmp.ne.s32.totalorder %s230, %s231
      %p245 = scmp.eq.s32.totalorder %s29, 3
      %p246 = por %p244, %p245
      %p248 = scmp.ne.s32.totalorder %s231, %s247
      %p249 = scmp.eq.s32.totalorder %s29, 0
      %p250 = por %p248, %p249
      %s251 = ssub.s32 %s31, %s38
      %p252 = scmp.eq.s32.totalorder %s251, 0
      %s254 = sadd.s32 %s253, 1
      %s255 = scalar_select %p252, %s253, %s254
      %p258 = pneg %p252
      %p259 = scmp.eq.s32.totalorder %s23, 3
      %p260 = por %p258, %p259
      %p261 = scmp.ne.s32.totalorder %s253, %s256
      %p262 = scmp.eq.s32.totalorder %s23, 0
      %p263 = por %p261, %p262
      %p264 = scmp.ne.s32.totalorder %s253, %s256
      %p265 = scmp.eq.s32.totalorder %s28, 3
      %p266 = por %p264, %p265
      %p267 = scmp.ne.s32.totalorder %s256, %s257
      %p268 = scmp.eq.s32.totalorder %s28, 0
      %p269 = por %p267, %p268
      %p270 = scmp.ne.s32.totalorder %s256, %s257
      %p271 = scmp.eq.s32.totalorder %s29, 3
      %p272 = por %p270, %p271
      %p274 = scmp.ne.s32.totalorder %s257, %s273
      %p275 = scmp.eq.s32.totalorder %s29, 0
      %p276 = por %p274, %p275
      %s277 = ssub.s32 %s31, %s38
      %p278 = scmp.eq.s32.totalorder %s277, 0
      %s280 = sadd.s32 %s279, 1
      %s281 = scalar_select %p278, %s279, %s280
      %p284 = pneg %p278
      %p285 = scmp.eq.s32.totalorder %s23, 3
      %p286 = por %p284, %p285
      %p287 = scmp.ne.s32.totalorder %s279, %s282
      %p288 = scmp.eq.s32.totalorder %s23, 0
      %p289 = por %p287, %p288
      %p290 = scmp.ne.s32.totalorder %s279, %s282
      %p291 = scmp.eq.s32.totalorder %s28, 3
      %p292 = por %p290, %p291
      %p293 = scmp.ne.s32.totalorder %s282, %s283
      %p294 = scmp.eq.s32.totalorder %s28, 0
      %p295 = por %p293, %p294
      %p296 = scmp.ne.s32.totalorder %s282, %s283
      %p297 = scmp.eq.s32.totalorder %s29, 3
      %p298 = por %p296, %p297
      %p300 = scmp.ne.s32.totalorder %s283, %s299
      %p301 = scmp.eq.s32.totalorder %s29, 0
      %p302 = por %p300, %p301
      %s303 = ssub.s32 %s31, %s38
      %p304 = scmp.eq.s32.totalorder %s303, 0
      %s306 = sadd.s32 %s305, 1
      %s307 = scalar_select %p304, %s305, %s306
      %p310 = pneg %p304
      %p311 = scmp.eq.s32.totalorder %s23, 3
      %p312 = por %p310, %p311
      %p313 = scmp.ne.s32.totalorder %s305, %s308
      %p314 = scmp.eq.s32.totalorder %s23, 0
      %p315 = por %p313, %p314
      %p316 = scmp.ne.s32.totalorder %s305, %s308
      %p317 = scmp.eq.s32.totalorder %s28, 3
      %p318 = por %p316, %p317
      %p319 = scmp.ne.s32.totalorder %s308, %s309
      %p320 = scmp.eq.s32.totalorder %s28, 0
      %p321 = por %p319, %p320
      %p322 = scmp.ne.s32.totalorder %s308, %s309
      %p323 = scmp.eq.s32.totalorder %s29, 3
      %p324 = por %p322, %p323
      %p326 = scmp.ne.s32.totalorder %s309, %s325
      %p327 = scmp.eq.s32.totalorder %s29, 0
      %p328 = por %p326, %p327
      %s329 = ssub.s32 %s31, %s38
      %p330 = scmp.eq.s32.totalorder %s329, 0
      %s332 = sadd.s32 %s331, 1
      %s333 = scalar_select %p330, %s331, %s332
      %p336 = pneg %p330
      %p337 = scmp.eq.s32.totalorder %s23, 3
      %p338 = por %p336, %p337
      %p339 = scmp.ne.s32.totalorder %s331, %s334
      %p340 = scmp.eq.s32.totalorder %s23, 0
      %p341 = por %p339, %p340
      %p342 = scmp.ne.s32.totalorder %s331, %s334
      %p343 = scmp.eq.s32.totalorder %s28, 3
      %p344 = por %p342, %p343
      %p345 = scmp.ne.s32.totalorder %s334, %s335
      %p346 = scmp.eq.s32.totalorder %s28, 0
      %p347 = por %p345, %p346
      %p348 = scmp.ne.s32.totalorder %s334, %s335
      %p349 = scmp.eq.s32.totalorder %s29, 3
      %p350 = por %p348, %p349
      %p352 = scmp.ne.s32.totalorder %s335, %s351
      %p353 = scmp.eq.s32.totalorder %s29, 0
      %p354 = por %p352, %p353
      %s356 = sadd.s32 %s355, 1
      %p359 = scmp.eq.s32.totalorder %s23, 3
      %p360 = scmp.ne.s32.totalorder %s355, %s357
      %p361 = scmp.eq.s32.totalorder %s23, 0
      %p362 = por %p360, %p361
      %p363 = scmp.ne.s32.totalorder %s355, %s357
      %p364 = scmp.eq.s32.totalorder %s28, 3
      %p365 = por %p363, %p364
      %p366 = scmp.ne.s32.totalorder %s357, %s358
      %p367 = scmp.eq.s32.totalorder %s28, 0
      %p368 = por %p366, %p367
      %p369 = scmp.ne.s32.totalorder %s357, %s358
      %p370 = scmp.eq.s32.totalorder %s29, 3
      %p371 = por %p369, %p370
      %p373 = scmp.ne.s32.totalorder %s358, %s372
      %p374 = scmp.eq.s32.totalorder %s29, 0
      %p375 = por %p373, %p374
      %s377 = sadd.s32 %s376, 1
      %p380 = scmp.eq.s32.totalorder %s23, 3
      %p381 = scmp.ne.s32.totalorder %s376, %s378
      %p382 = scmp.eq.s32.totalorder %s23, 0
      %p383 = por %p381, %p382
      %p384 = scmp.ne.s32.totalorder %s376, %s378
      %p385 = scmp.eq.s32.totalorder %s28, 3
      %p386 = por %p384, %p385
      %p387 = scmp.ne.s32.totalorder %s378, %s379
      %p388 = scmp.eq.s32.totalorder %s28, 0
      %p389 = por %p387, %p388
      %p390 = scmp.ne.s32.totalorder %s378, %s379
      %p391 = scmp.eq.s32.totalorder %s29, 3
      %p392 = por %p390, %p391
      %p394 = scmp.ne.s32.totalorder %s379, %s393
      %p395 = scmp.eq.s32.totalorder %s29, 0
      %p396 = por %p394, %p395
      %s397 = ssub.s32 %s30, %s42
      %p398 = scmp.eq.s32.totalorder %s397, 0
      %s400 = sadd.s32 %s399, 1
      %s401 = scalar_select %p398, %s399, %s400
      %p404 = pneg %p398
      %p405 = scmp.eq.s32.totalorder %s23, 3
      %p406 = por %p404, %p405
      %p407 = scmp.ne.s32.totalorder %s399, %s402
      %p408 = scmp.eq.s32.totalorder %s23, 0
      %p409 = por %p407, %p408
      %p410 = scmp.ne.s32.totalorder %s399, %s402
      %p411 = scmp.eq.s32.totalorder %s28, 3
      %p412 = por %p410, %p411
      %p413 = scmp.ne.s32.totalorder %s402, %s403
      %p414 = scmp.eq.s32.totalorder %s28, 0
      %p415 = por %p413, %p414
      %p416 = scmp.ne.s32.totalorder %s402, %s403
      %p417 = scmp.eq.s32.totalorder %s29, 3
      %p418 = por %p416, %p417
      %p420 = scmp.ne.s32.totalorder %s403, %s419
      %p421 = scmp.eq.s32.totalorder %s29, 0
      %p422 = por %p420, %p421
      %p423 = scmp.le.s32.totalorder 1, %s23
      %p424 = scmp.lt.s32.totalorder %s23, 5
      %p425 = pnand %p423, %p424
      %p426 = pneg %p425
      // Predicated region
      $region9: #{tpu_custom_call.1} parent=5 // pred_check
        _
      $region10: #{tpu_custom_call.1} parent=5 // pred_check_branch
        %428 = sbr.rel (%p425) target = $region12
      $region11: #{tpu_custom_call.1} parent=5 // pred_region
        %s429 = ssub.s32 %s23, 1
        // Predicated region
        $region13: #{tpu_custom_call.1} parent=11 // pred_check
          %p430 = pneg %p368
        $region14: #{tpu_custom_call.1} parent=11 // pred_check_branch
          %432 = sbr.rel (%p430) target = $region16
        $region15: #{tpu_custom_call.1} parent=11 // pred_region
          _
        $region16: #{tpu_custom_call.1} parent=11 // pred_fallthru
          _
        // Predicated region
        $region17: #{tpu_custom_call.1} parent=11 // pred_check
          %p433 = pneg %p389
        $region18: #{tpu_custom_call.1} parent=11 // pred_check_branch
          %435 = sbr.rel (%p433) target = $region20
        $region19: #{tpu_custom_call.1} parent=11 // pred_region
          _
        $region20: #{tpu_custom_call.1} parent=11 // pred_fallthru
          _
      $region12: #{tpu_custom_call.1} parent=5 // pred_fallthru
        _
      %p436 = scmp.lt.s32.totalorder %s23, 4
      // Predicated region
      $region21: #{tpu_custom_call.1} parent=5 // pred_check
        %p437 = pneg %p436
      $region22: #{tpu_custom_call.1} parent=5 // pred_check_branch
        %439 = sbr.rel (%p437) target = $region24
      $region23: #{tpu_custom_call.1} parent=5 // pred_region
        // Predicated region
        $region25: #{tpu_custom_call.1} parent=23 // pred_check
          %p440 = pneg %p55
        $region26: #{tpu_custom_call.1} parent=23 // pred_check_branch
          %442 = sbr.rel (%p440) target = $region28
        $region27: #{tpu_custom_call.1} parent=23 // pred_region
          %p443 = scmp.lt.s32.totalorder %s30, 1
          %s444 = scalar_select %p443, %s30, 1
          %s445 = smul.addr %s444, 3
          %s446 = smul.addr %s445, 8
          %s447 = scalar_lea.vmem %s0, %s446
        $region28: #{tpu_custom_call.1} parent=23 // pred_fallthru
          _
        // Predicated region
        $region29: #{tpu_custom_call.1} parent=23 // pred_check
          %p448 = pneg %p81
        $region30: #{tpu_custom_call.1} parent=23 // pred_check_branch
          %450 = sbr.rel (%p448) target = $region32
        $region31: #{tpu_custom_call.1} parent=23 // pred_region
          %p451 = scmp.lt.s32.totalorder %s31, 1
          %s452 = scalar_select %p451, %s31, 1
          %s453 = smul.addr %s452, 48
          %s454 = smul.addr %s453, 4
          %s455 = scalar_lea.vmem %s1, %s454
        $region32: #{tpu_custom_call.1} parent=23 // pred_fallthru
          _
        // Predicated region
        $region33: #{tpu_custom_call.1} parent=23 // pred_check
          %p456 = pneg %p107
        $region34: #{tpu_custom_call.1} parent=23 // pred_check_branch
          %458 = sbr.rel (%p456) target = $region36
        $region35: #{tpu_custom_call.1} parent=23 // pred_region
          %p459 = scmp.lt.s32.totalorder %s31, 1
          %s460 = scalar_select %p459, %s31, 1
          %s461 = smul.addr %s460, 4
          %s462 = smul.addr %s461, 4
          %s463 = scalar_lea.vmem %s2, %s462
        $region36: #{tpu_custom_call.1} parent=23 // pred_fallthru
          _
        // Predicated region
        $region37: #{tpu_custom_call.1} parent=23 // pred_check
          %p464 = pneg %p133
        $region38: #{tpu_custom_call.1} parent=23 // pred_check_branch
          %466 = sbr.rel (%p464) target = $region40
        $region39: #{tpu_custom_call.1} parent=23 // pred_region
          %p467 = scmp.lt.s32.totalorder %s31, 1
          %s468 = scalar_select %p467, %s31, 1
          %s469 = scalar_lea.vmem %s3, %s468
        $region40: #{tpu_custom_call.1} parent=23 // pred_fallthru
          _
        // Predicated region
        $region41: #{tpu_custom_call.1} parent=23 // pred_check
          %p470 = pneg %p159
        $region42: #{tpu_custom_call.1} parent=23 // pred_check_branch
          %472 = sbr.rel (%p470) target = $region44
        $region43: #{tpu_custom_call.1} parent=23 // pred_region
          %p473 = scmp.lt.s32.totalorder %s31, 1
          %s474 = scalar_select %p473, %s31, 1
          %s475 = scalar_lea.vmem %s4, %s474
        $region44: #{tpu_custom_call.1} parent=23 // pred_fallthru
          _
        // Predicated region
        $region45: #{tpu_custom_call.1} parent=23 // pred_check
          %p476 = pneg %p185
        $region46: #{tpu_custom_call.1} parent=23 // pred_check_branch
          %478 = sbr.rel (%p476) target = $region48
        $region47: #{tpu_custom_call.1} parent=23 // pred_region
          %p479 = scmp.lt.s32.totalorder %s31, 1
          %s480 = scalar_select %p479, %s31, 1
          %s481 = scalar_lea.vmem %s5, %s480
        $region48: #{tpu_custom_call.1} parent=23 // pred_fallthru
          _
        // Predicated region
        $region49: #{tpu_custom_call.1} parent=23 // pred_check
          %p482 = pneg %p211
        $region50: #{tpu_custom_call.1} parent=23 // pred_check_branch
          %484 = sbr.rel (%p482) target = $region52
        $region51: #{tpu_custom_call.1} parent=23 // pred_region
          %p485 = scmp.lt.s32.totalorder %s31, 1
          %s486 = scalar_select %p485, %s31, 1
          %s487 = scalar_lea.vmem %s6, %s486
        $region52: #{tpu_custom_call.1} parent=23 // pred_fallthru
          _
        // Predicated region
        $region53: #{tpu_custom_call.1} parent=23 // pred_check
          %p488 = pneg %p237
        $region54: #{tpu_custom_call.1} parent=23 // pred_check_branch
          %490 = sbr.rel (%p488) target = $region56
        $region55: #{tpu_custom_call.1} parent=23 // pred_region
          %p491 = scmp.lt.s32.totalorder %s31, 1
          %s492 = scalar_select %p491, %s31, 1
          %s493 = scalar_lea.vmem %s7, %s492
        $region56: #{tpu_custom_call.1} parent=23 // pred_fallthru
          _
        // Predicated region
        $region57: #{tpu_custom_call.1} parent=23 // pred_check
          %p494 = pneg %p263
        $region58: #{tpu_custom_call.1} parent=23 // pred_check_branch
          %496 = sbr.rel (%p494) target = $region60
        $region59: #{tpu_custom_call.1} parent=23 // pred_region
          %p497 = scmp.lt.s32.totalorder %s31, 1
          %s498 = scalar_select %p497, %s31, 1
          %s499 = smul.addr %s498, 4
          %s500 = smul.addr %s499, 4
          %s501 = scalar_lea.vmem %s8, %s500
        $region60: #{tpu_custom_call.1} parent=23 // pred_fallthru
          _
        // Predicated region
        $region61: #{tpu_custom_call.1} parent=23 // pred_check
          %p502 = pneg %p289
        $region62: #{tpu_custom_call.1} parent=23 // pred_check_branch
          %504 = sbr.rel (%p502) target = $region64
        $region63: #{tpu_custom_call.1} parent=23 // pred_region
          %p505 = scmp.lt.s32.totalorder %s31, 1
          %s506 = scalar_select %p505, %s31, 1
          %s507 = scalar_lea.vmem %s9, %s506
        $region64: #{tpu_custom_call.1} parent=23 // pred_fallthru
          _
        // Predicated region
        $region65: #{tpu_custom_call.1} parent=23 // pred_check
          %p508 = pneg %p315
        $region66: #{tpu_custom_call.1} parent=23 // pred_check_branch
          %510 = sbr.rel (%p508) target = $region68
        $region67: #{tpu_custom_call.1} parent=23 // pred_region
          %p511 = scmp.lt.s32.totalorder %s31, 1
          %s512 = scalar_select %p511, %s31, 1
          %s513 = smul.addr %s512, 8
          %s514 = smul.addr %s513, 4
          %s515 = scalar_lea.vmem %s10, %s514
        $region68: #{tpu_custom_call.1} parent=23 // pred_fallthru
          _
        // Predicated region
        $region69: #{tpu_custom_call.1} parent=23 // pred_check
          %p516 = pneg %p341
        $region70: #{tpu_custom_call.1} parent=23 // pred_check_branch
          %518 = sbr.rel (%p516) target = $region72
        $region71: #{tpu_custom_call.1} parent=23 // pred_region
          %p519 = scmp.lt.s32.totalorder %s31, 1
          %s520 = scalar_select %p519, %s31, 1
          %s521 = scalar_lea.vmem %s11, %s520
        $region72: #{tpu_custom_call.1} parent=23 // pred_fallthru
          _
      $region24: #{tpu_custom_call.1} parent=5 // pred_fallthru
        _
      %p522 = scmp.le.s32.totalorder 1, %s23
      %p523 = scmp.lt.s32.totalorder %s23, 5
      %p524 = pnand %p522, %p523
      %p525 = pneg %p524
      // Predicated region
      $region73: #{tpu_custom_call.1} parent=5 // pred_check
        _
      $region74: #{tpu_custom_call.1} parent=5 // pred_check_branch
        %527 = sbr.rel (%p524) target = $region76
      $region75: #{tpu_custom_call.1} parent=5 // pred_region
        %s528 = ssub.s32 %s23, 1
        %p529 = scmp.lt.s32.totalorder %s32, 1
        %s530 = scalar_select %p529, %s32, 1
        %s531 = smul.addr %s530, 3
        %s532 = smul.addr %s531, 8
        %s533 = scalar_lea.vmem %s0, %s532
        %p534 = pneg %p61
        %p535 = pneg %p58
        %p536 = scmp.lt.s32.totalorder %s33, 1
        %s537 = scalar_select %p536, %s33, 1
        %s538 = smul.addr %s537, 48
        %s539 = smul.addr %s538, 4
        %s540 = scalar_lea.vmem %s1, %s539
        %p541 = pneg %p87
        %p542 = pneg %p84
        %p543 = scmp.lt.s32.totalorder %s33, 1
        %s544 = scalar_select %p543, %s33, 1
        %s545 = smul.addr %s544, 4
        %s546 = smul.addr %s545, 4
        %s547 = scalar_lea.vmem %s2, %s546
        %p548 = pneg %p113
        %p549 = pneg %p110
        %p550 = scmp.lt.s32.totalorder %s33, 1
        %s551 = scalar_select %p550, %s33, 1
        %s552 = scalar_lea.vmem %s3, %s551
        %p553 = pneg %p139
        %p554 = pneg %p136
        %p555 = scmp.lt.s32.totalorder %s33, 1
        %s556 = scalar_select %p555, %s33, 1
        %s557 = scalar_lea.vmem %s4, %s556
        %p558 = pneg %p165
        %p559 = pneg %p162
        %p560 = scmp.lt.s32.totalorder %s33, 1
        %s561 = scalar_select %p560, %s33, 1
        %s562 = scalar_lea.vmem %s5, %s561
        %p563 = pneg %p191
        %p564 = pneg %p188
        %p565 = scmp.lt.s32.totalorder %s33, 1
        %s566 = scalar_select %p565, %s33, 1
        %s567 = scalar_lea.vmem %s6, %s566
        %p568 = pneg %p217
        %p569 = pneg %p214
        %p570 = scmp.lt.s32.totalorder %s33, 1
        %s571 = scalar_select %p570, %s33, 1
        %s572 = scalar_lea.vmem %s7, %s571
        %p573 = pneg %p243
        %p574 = pneg %p240
        %p575 = scmp.lt.s32.totalorder %s33, 1
        %s576 = scalar_select %p575, %s33, 1
        %s577 = smul.addr %s576, 4
        %s578 = smul.addr %s577, 4
        %s579 = scalar_lea.vmem %s8, %s578
        %p580 = pneg %p269
        %p581 = pneg %p266
        %p582 = scmp.lt.s32.totalorder %s33, 1
        %s583 = scalar_select %p582, %s33, 1
        %s584 = scalar_lea.vmem %s9, %s583
        %p585 = pneg %p295
        %p586 = pneg %p292
        %p587 = scmp.lt.s32.totalorder %s33, 1
        %s588 = scalar_select %p587, %s33, 1
        %s589 = smul.addr %s588, 8
        %s590 = smul.addr %s589, 4
        %s591 = scalar_lea.vmem %s10, %s590
        %p592 = pneg %p321
        %p593 = pneg %p318
        %p594 = scmp.lt.s32.totalorder %s33, 1
        %s595 = scalar_select %p594, %s33, 1
        %s596 = scalar_lea.vmem %s11, %s595
        %p597 = pneg %p347
        %p598 = pneg %p344
        %p599 = pneg %p368
        %p600 = pneg %p365
        %p601 = pneg %p389
        %p602 = pneg %p386
        %p603 = pneg %p415
        %p604 = pneg %p412
        %s605 = sand.u32 %s402, 1
        %s606 = scalar_lea.sflag [#allocation4], %s605
        %s607 = sand.u32 %s402, 1
        %s608 = scalar_lea.vmem [#allocation3], %s607
        %p609 = scmp.lt.s32.totalorder %s32, 1
        %s610 = scalar_select %p609, %s32, 1
        %s611 = smul.addr %s610, 3
        %s612 = smul.addr %s611, 8
        %s613 = scalar_lea.vmem %s0, %s612
        %p614 = scmp.lt.s32.totalorder %s33, 1
        %s615 = scalar_select %p614, %s33, 1
        %s616 = smul.addr %s615, 48
        %s617 = smul.addr %s616, 4
        %s618 = scalar_lea.vmem %s1, %s617
        %p619 = scmp.lt.s32.totalorder %s33, 1
        %s620 = scalar_select %p619, %s33, 1
        %s621 = smul.addr %s620, 4
        %s622 = smul.addr %s621, 4
        %s623 = scalar_lea.vmem %s2, %s622
        %p624 = scmp.lt.s32.totalorder %s33, 1
        %s625 = scalar_select %p624, %s33, 1
        %s626 = scalar_lea.vmem %s3, %s625
        %p627 = scmp.lt.s32.totalorder %s33, 1
        %s628 = scalar_select %p627, %s33, 1
        %s629 = scalar_lea.vmem %s4, %s628
        %p630 = scmp.lt.s32.totalorder %s33, 1
        %s631 = scalar_select %p630, %s33, 1
        %s632 = scalar_lea.vmem %s5, %s631
        %p633 = scmp.lt.s32.totalorder %s33, 1
        %s634 = scalar_select %p633, %s33, 1
        %s635 = scalar_lea.vmem %s6, %s634
        %p636 = scmp.lt.s32.totalorder %s33, 1
        %s637 = scalar_select %p636, %s33, 1
        %s638 = scalar_lea.vmem %s7, %s637
        %p639 = scmp.lt.s32.totalorder %s33, 1
        %s640 = scalar_select %p639, %s33, 1
        %s641 = smul.addr %s640, 4
        %s642 = smul.addr %s641, 4
        %s643 = scalar_lea.vmem %s8, %s642
        %p644 = scmp.lt.s32.totalorder %s33, 1
        %s645 = scalar_select %p644, %s33, 1
        %s646 = scalar_lea.vmem %s9, %s645
        %p647 = scmp.lt.s32.totalorder %s33, 1
        %s648 = scalar_select %p647, %s33, 1
        %s649 = smul.addr %s648, 8
        %s650 = smul.addr %s649, 4
        %s651 = scalar_lea.vmem %s10, %s650
        %p652 = scmp.lt.s32.totalorder %s33, 1
        %s653 = scalar_select %p652, %s33, 1
        %s654 = scalar_lea.vmem %s11, %s653
        %p656 = scmp.eq.s32.totalorder %s33, 0
        // Predicated region
        $region77: #{tpu_custom_call.1} parent=75 // pred_check
          %p657 = pneg %p656
        $region78: #{tpu_custom_call.1} parent=75 // pred_check_branch
          %659 = sbr.rel (%p657) target = $region80
        $region79: #{tpu_custom_call.1} parent=75 // pred_region
          %v660 = vld [vmem:[%s613] sm:$0xff]
          %v661 = vld [vmem:[%s613 + $0x8] sm:$0xff]
          %v662 = vld [vmem:[%s613 + $0x10] sm:$0xff]
          %vm663 = vcmask 261120
          %664 = vst.msk [vmem:[#allocation2] sm:$0xff] %vm663, %v660
          %665 = vst.msk [vmem:[#allocation2 + $0x8] sm:$0xff] %vm663, %v661
          %666 = vst.msk [vmem:[#allocation2 + $0x10] sm:$0xff] %vm663, %v662
        $region80: #{tpu_custom_call.1} parent=75 // pred_fallthru
          _
        %v667 = vld [vmem:[#allocation2] sm:$0xff]
        %v668 = vld [vmem:[#allocation2 + $0x8] sm:$0xff]
        %v669 = vld [vmem:[#allocation2 + $0x10] sm:$0xff]
        %vm670 = vcmask 261120
        %v671 = vsel %vm670, %v667, 0.0
        %672 = vadd.xlane.f32.xlu0 %v671
        %v673 = vpop.xlane.xlu0 %672
        %v674 = vsel %vm670, %v668, 0.0
        %675 = vadd.xlane.f32.xlu0 %v674
        %v676 = vpop.xlane.xlu0 %675
        %v677 = vsel %vm670, %v669, 0.0
        %678 = vadd.xlane.f32.xlu0 %v677
        %v679 = vpop.xlane.xlu0 %678
        %v680 = vrcp.pop 32.0
        %v681 = vmul.f32 %v673, %v680
        %v682 = vmul.f32 %v676, %v680
        %v683 = vmul.f32 %v679, %v680
        %v684 = vsub.f32 %v667, %v681
        %v685 = vsub.f32 %v668, %v682
        %v686 = vsub.f32 %v669, %v683
        %v687 = vmul.f32 %v684, %v684
        %v688 = vmul.f32 %v685, %v685
        %v689 = vmul.f32 %v686, %v686
        %v690 = vsel %vm670, %v687, 0.0
        %691 = vadd.xlane.f32.xlu0 %v690
        %v692 = vpop.xlane.xlu0 %691
        %v693 = vsel %vm670, %v688, 0.0
        %694 = vadd.xlane.f32.xlu0 %v693
        %v695 = vpop.xlane.xlu0 %694
        %v696 = vsel %vm670, %v689, 0.0
        %697 = vadd.xlane.f32.xlu0 %v696
        %v698 = vpop.xlane.xlu0 %697
        %v699 = vmul.f32 %v692, %v680
        %v700 = vmul.f32 %v695, %v680
        %v701 = vmul.f32 %v698, %v680
        %v702 = vadd.f32 %v699, 1e-05
        %v703 = vadd.f32 %v700, 1e-05
        %v704 = vadd.f32 %v701, 1e-05
        %v705 = vrsqrt.pop %v702
        %v706 = vrsqrt.pop %v703
        %v707 = vrsqrt.pop %v704
        %v708 = vmul.f32 %v684, %v705
        %v709 = vmul.f32 %v685, %v706
        %v710 = vmul.f32 %v686, %v707
        %v711 = vld [vmem:[%s629] sm:$0x1]
        %v713 = vlaneseq
        %v714 = vshrl.u32 %v713, 7
        %v715 = vsub.s32 0, %v714
        %v716 = vrot.slane %v711, %v715
        %v718 = vmul.f32 %v708, %v716
        %v719 = vmul.f32 %v709, %v716
        %v720 = vmul.f32 %v710, %v716
        %v721 = vld [vmem:[%s632] sm:$0x1]
        %v723 = vlaneseq
        %v724 = vshrl.u32 %v723, 7
        %v725 = vsub.s32 0, %v724
        %v726 = vrot.slane %v721, %v725
        %v728 = vadd.f32 %v718, %v726
        %v729 = vadd.f32 %v719, %v726
        %v730 = vadd.f32 %v720, %v726
        %v731 = vpack.c.bf16 %v729, %v728
        %v732 = vpack.c.bf16 %v730, %v730
        %v733 = vld [vmem:[%s618] sm:$0xf]
        %v734 = vld [vmem:[%s618 + $0x4] sm:$0xf]
        %v735 = vld [vmem:[%s618 + $0x8] sm:$0xf]
        %v736 = vld [vmem:[%s618 + $0xc] sm:$0xf]
        %v737 = vld [vmem:[%s618 + $0x10] sm:$0xf]
        %v738 = vld [vmem:[%s618 + $0x14] sm:$0xf]
        %v739 = vld [vmem:[%s618 + $0x18] sm:$0xf]
        %v740 = vld [vmem:[%s618 + $0x1c] sm:$0xf]
        %v741 = vld [vmem:[%s618 + $0x20] sm:$0xf]
        %v742 = vld [vmem:[%s618 + $0x24] sm:$0xf]
        %v743 = vld [vmem:[%s618 + $0x28] sm:$0xf]
        %v744 = vld [vmem:[%s618 + $0x2c] sm:$0xf]
        %v745 = vld [vmem:[%s618 + $0x30] sm:$0xf]
        %v746 = vld [vmem:[%s618 + $0x34] sm:$0xf]
        %v747 = vld [vmem:[%s618 + $0x38] sm:$0xf]
        %v748 = vld [vmem:[%s618 + $0x3c] sm:$0xf]
        %v749 = vld [vmem:[%s618 + $0x40] sm:$0xf]
        %v750 = vld [vmem:[%s618 + $0x44] sm:$0xf]
        %v751 = vld [vmem:[%s618 + $0x48] sm:$0xf]
        %v752 = vld [vmem:[%s618 + $0x4c] sm:$0xf]
        %v753 = vld [vmem:[%s618 + $0x50] sm:$0xf]
        %v754 = vld [vmem:[%s618 + $0x54] sm:$0xf]
        %v755 = vld [vmem:[%s618 + $0x58] sm:$0xf]
        %v756 = vld [vmem:[%s618 + $0x5c] sm:$0xf]
        %v757 = vld [vmem:[%s618 + $0x60] sm:$0xf]
        %v758 = vld [vmem:[%s618 + $0x64] sm:$0xf]
        %v759 = vld [vmem:[%s618 + $0x68] sm:$0xf]
        %v760 = vld [vmem:[%s618 + $0x6c] sm:$0xf]
        %v761 = vld [vmem:[%s618 + $0x70] sm:$0xf]
        %v762 = vld [vmem:[%s618 + $0x74] sm:$0xf]
        %v763 = vld [vmem:[%s618 + $0x78] sm:$0xf]
        %v764 = vld [vmem:[%s618 + $0x7c] sm:$0xf]
        %v765 = vld [vmem:[%s618 + $0x80] sm:$0xf]
        %v766 = vld [vmem:[%s618 + $0x84] sm:$0xf]
        %v767 = vld [vmem:[%s618 + $0x88] sm:$0xf]
        %v768 = vld [vmem:[%s618 + $0x8c] sm:$0xf]
        %v769 = vld [vmem:[%s618 + $0x90] sm:$0xf]
        %v770 = vld [vmem:[%s618 + $0x94] sm:$0xf]
        %v771 = vld [vmem:[%s618 + $0x98] sm:$0xf]
        %v772 = vld [vmem:[%s618 + $0x9c] sm:$0xf]
        %v773 = vld [vmem:[%s618 + $0xa0] sm:$0xf]
        %v774 = vld [vmem:[%s618 + $0xa4] sm:$0xf]
        %v775 = vld [vmem:[%s618 + $0xa8] sm:$0xf]
        %v776 = vld [vmem:[%s618 + $0xac] sm:$0xf]
        %v777 = vld [vmem:[%s618 + $0xb0] sm:$0xf]
        %v778 = vld [vmem:[%s618 + $0xb4] sm:$0xf]
        %v779 = vld [vmem:[%s618 + $0xb8] sm:$0xf]
        %v780 = vld [vmem:[%s618 + $0xbc] sm:$0xf]
        %v785 = vunpack.c.l.b16 %v733
        %v786 = vunpack.c.l.b16 %v734
        %v787 = vunpack.c.l.b16 %v735
        %v788 = vunpack.c.l.b16 %v736
        %v789 = vpack.c.b16 %v786, %v785
        %v790 = vpack.c.b16 %v788, %v787
        %v794 = vsel %vm670, %v731, 0
        %v797 = vsel %vm670, %v732, 0
        %799 = vmatprep.subr.bf16.mxu0 0
        %800 = vmatpush1.bf16.msra.mxu0 %v789
        %801 = vmatprep.subr.bf16.mxu0 0
        %802 = vmatpush1.bf16.msra.mxu0 %v790
        %803 = vmatprep.subr.bf16.mxu0 0
        %804 = vmatpush1.bf16.msra.mxu0 0
        %805 = vmatprep.subr.bf16.mxu0 0
        %806 = vmatpush1.bf16.msra.mxu0 0
        %807 = vmatprep.subr.bf16.mxu0 0
        %808 = vmatpush1.bf16.msra.mxu0 0
        %809 = vmatprep.subr.bf16.mxu0 0
        %810 = vmatpush1.bf16.msra.mxu0 0
        %811 = vmatprep.subr.bf16.mxu0 0
        %812 = vmatpush1.bf16.msra.mxu0 0
        %813 = vmatprep.subr.bf16.mxu0 0
        %814 = vmatpush1.bf16.msra.mxu0 0
        %815 = vmatprep.subr.bf16.mxu0 0
        %816 = vmatpush1.bf16.msra.mxu0 0
        %817 = vmatprep.subr.bf16.mxu0 0
        %818 = vmatpush1.bf16.msra.mxu0 0
        %819 = vmatprep.subr.bf16.mxu0 0
        %820 = vmatpush1.bf16.msra.mxu0 0
        %821 = vmatprep.subr.bf16.mxu0 0
        %822 = vmatpush1.bf16.msra.mxu0 0
        %823 = vmatprep.subr.bf16.mxu0 0
        %824 = vmatpush1.bf16.msra.mxu0 0
        %825 = vmatprep.subr.bf16.mxu0 0
        %826 = vmatpush1.bf16.msra.mxu0 0
        %827 = vmatprep.subr.bf16.mxu0 0
        %828 = vmatpush1.bf16.msra.mxu0 0
        %829 = vmatprep.subr.bf16.mxu0 0
        %830 = vmatpush1.bf16.msra.mxu0 0
        %831 = vmatprep.mubr.bf16.mxu0 0
        %832 = vmatmul.mubr.bf16.gmra.mrb[0].mxu0 %v794
        %v833 = vpop.f32.mrb[0].mxu0
        %v834 = vadd.f32 0.0, %v833
        %v835 = vpop.f32.mrb[0].mxu0
        %v836 = vpop.f32.mrb[0].mxu0
        %v837 = vadd.f32 0.0, %v836
        %v838 = vpop.f32.mrb[0].mxu0
        %839 = vmatprep.mubr.bf16.mxu0 0
        %840 = vmatmul.mubr.bf16.gmra.mrb[0].mxu0 %v797
        %v841 = vpop.f32.mrb[0].mxu0
        %v842 = vadd.f32 0.0, %v841
        %v843 = vpop.f32.mrb[0].mxu0
        %v844 = vpop.f32.mrb[0].mxu0
        %v845 = vpop.f32.mrb[0].mxu0
        %846 = vdwg.mxu0
        %v851 = vunpack.c.l.b16 %v737
        %v852 = vunpack.c.l.b16 %v738
        %v853 = vunpack.c.l.b16 %v739
        %v854 = vunpack.c.l.b16 %v740
        %v855 = vpack.c.b16 %v852, %v851
        %v856 = vpack.c.b16 %v854, %v853
        %859 = vmatprep.subr.bf16.mxu0 0
        %860 = vmatpush1.bf16.msra.mxu0 %v855
        %861 = vmatprep.subr.bf16.mxu0 0
        %862 = vmatpush1.bf16.msra.mxu0 %v856
        %863 = vmatprep.subr.bf16.mxu0 0
        %864 = vmatpush1.bf16.msra.mxu0 0
        %865 = vmatprep.subr.bf16.mxu0 0
        %866 = vmatpush1.bf16.msra.mxu0 0
        %867 = vmatprep.subr.bf16.mxu0 0
        %868 = vmatpush1.bf16.msra.mxu0 0
        %869 = vmatprep.subr.bf16.mxu0 0
        %870 = vmatpush1.bf16.msra.mxu0 0
        %871 = vmatprep.subr.bf16.mxu0 0
        %872 = vmatpush1.bf16.msra.mxu0 0
        %873 = vmatprep.subr.bf16.mxu0 0
        %874 = vmatpush1.bf16.msra.mxu0 0
        %875 = vmatprep.subr.bf16.mxu0 0
        %876 = vmatpush1.bf16.msra.mxu0 0
        %877 = vmatprep.subr.bf16.mxu0 0
        %878 = vmatpush1.bf16.msra.mxu0 0
        %879 = vmatprep.subr.bf16.mxu0 0
        %880 = vmatpush1.bf16.msra.mxu0 0
        %881 = vmatprep.subr.bf16.mxu0 0
        %882 = vmatpush1.bf16.msra.mxu0 0
        %883 = vmatprep.subr.bf16.mxu0 0
        %884 = vmatpush1.bf16.msra.mxu0 0
        %885 = vmatprep.subr.bf16.mxu0 0
        %886 = vmatpush1.bf16.msra.mxu0 0
        %887 = vmatprep.subr.bf16.mxu0 0
        %888 = vmatpush1.bf16.msra.mxu0 0
        %889 = vmatprep.subr.bf16.mxu0 0
        %890 = vmatpush1.bf16.msra.mxu0 0
        %891 = vmatprep.mubr.bf16.mxu0 0
        %892 = vmatmul.mubr.bf16.gmra.mrb[0].mxu0 %v794
        %v893 = vpop.f32.mrb[0].mxu0
        %v894 = vadd.f32 0.0, %v893
        %v895 = vpop.f32.mrb[0].mxu0
        %v896 = vpop.f32.mrb[0].mxu0
        %v897 = vadd.f32 0.0, %v896
        %v898 = vpop.f32.mrb[0].mxu0
        %899 = vmatprep.mubr.bf16.mxu0 0
        %900 = vmatmul.mubr.bf16.gmra.mrb[0].mxu0 %v797
        %v901 = vpop.f32.mrb[0].mxu0
        %v902 = vadd.f32 0.0, %v901
        %v903 = vpop.f32.mrb[0].mxu0
        %v904 = vpop.f32.mrb[0].mxu0
        %v905 = vpop.f32.mrb[0].mxu0
        %906 = vdwg.mxu0
        %v911 = vunpack.c.l.b16 %v741
        %v912 = vunpack.c.l.b16 %v742
        %v913 = vunpack.c.l.b16 %v743
        %v914 = vunpack.c.l.b16 %v744
        %v915 = vpack.c.b16 %v912, %v911
        %v916 = vpack.c.b16 %v914, %v913
        %919 = vmatprep.subr.bf16.mxu0 0
        %920 = vmatpush1.bf16.msra.mxu0 %v915
        %921 = vmatprep.subr.bf16.mxu0 0
        %922 = vmatpush1.bf16.msra.mxu0 %v916
        %923 = vmatprep.subr.bf16.mxu0 0
        %924 = vmatpush1.bf16.msra.mxu0 0
        %925 = vmatprep.subr.bf16.mxu0 0
        %926 = vmatpush1.bf16.msra.mxu0 0
        %927 = vmatprep.subr.bf16.mxu0 0
        %928 = vmatpush1.bf16.msra.mxu0 0
        %929 = vmatprep.subr.bf16.mxu0 0
        %930 = vmatpush1.bf16.msra.mxu0 0
        %931 = vmatprep.subr.bf16.mxu0 0
        %932 = vmatpush1.bf16.msra.mxu0 0
        %933 = vmatprep.subr.bf16.mxu0 0
        %934 = vmatpush1.bf16.msra.mxu0 0
        %935 = vmatprep.subr.bf16.mxu0 0
        %936 = vmatpush1.bf16.msra.mxu0 0
        %937 = vmatprep.subr.bf16.mxu0 0
        %938 = vmatpush1.bf16.msra.mxu0 0
        %939 = vmatprep.subr.bf16.mxu0 0
        %940 = vmatpush1.bf16.msra.mxu0 0
        %941 = vmatprep.subr.bf16.mxu0 0
        %942 = vmatpush1.bf16.msra.mxu0 0
        %943 = vmatprep.subr.bf16.mxu0 0
        %944 = vmatpush1.bf16.msra.mxu0 0
        %945 = vmatprep.subr.bf16.mxu0 0
        %946 = vmatpush1.bf16.msra.mxu0 0
        %947 = vmatprep.subr.bf16.mxu0 0
        %948 = vmatpush1.bf16.msra.mxu0 0
        %949 = vmatprep.subr.bf16.mxu0 0
        %950 = vmatpush1.bf16.msra.mxu0 0
        %951 = vmatprep.mubr.bf16.mxu0 0
        %952 = vmatmul.mubr.bf16.gmra.mrb[0].mxu0 %v794
        %v953 = vpop.f32.mrb[0].mxu0
        %v954 = vadd.f32 0.0, %v953
        %v955 = vpop.f32.mrb[0].mxu0
        %v956 = vpop.f32.mrb[0].mxu0
        %v957 = vadd.f32 0.0, %v956
        %v958 = vpop.f32.mrb[0].mxu0
        %959 = vmatprep.mubr.bf16.mxu0 0
        %960 = vmatmul.mubr.bf16.gmra.mrb[0].mxu0 %v797
        %v961 = vpop.f32.mrb[0].mxu0
        %v962 = vadd.f32 0.0, %v961
        %v963 = vpop.f32.mrb[0].mxu0
        %v964 = vpop.f32.mrb[0].mxu0
        %v965 = vpop.f32.mrb[0].mxu0
        %966 = vdwg.mxu0
        %v971 = vunpack.c.l.b16 %v745
        %v972 = vunpack.c.l.b16 %v746
        %v973 = vunpack.c.l.b16 %v747
        %v974 = vunpack.c.l.b16 %v748
        %v975 = vpack.c.b16 %v972, %v971
        %v976 = vpack.c.b16 %v974, %v973
        %979 = vmatprep.subr.bf16.mxu0 0
        %980 = vmatpush1.bf16.msra.mxu0 %v975
        %981 = vmatprep.subr.bf16.mxu0 0
        %982 = vmatpush1.bf16.msra.mxu0 %v976
        %983 = vmatprep.subr.bf16.mxu0 0
        %984 = vmatpush1.bf16.msra.mxu0 0
        %985 = vmatprep.subr.bf16.mxu0 0
        %986 = vmatpush1.bf16.msra.mxu0 0
        %987 = vmatprep.subr.bf16.mxu0 0
        %988 = vmatpush1.bf16.msra.mxu0 0
        %989 = vmatprep.subr.bf16.mxu0 0
        %990 = vmatpush1.bf16.msra.mxu0 0
        %991 = vmatprep.subr.bf16.mxu0 0
        %992 = vmatpush1.bf16.msra.mxu0 0
        %993 = vmatprep.subr.bf16.mxu0 0
        %994 = vmatpush1.bf16.msra.mxu0 0
        %995 = vmatprep.subr.bf16.mxu0 0
        %996 = vmatpush1.bf16.msra.mxu0 0
        %997 = vmatprep.subr.bf16.mxu0 0
        %998 = vmatpush1.bf16.msra.mxu0 0
        %999 = vmatprep.subr.bf16.mxu0 0
        %1000 = vmatpush1.bf16.msra.mxu0 0
        %1001 = vmatprep.subr.bf16.mxu0 0
        %1002 = vmatpush1.bf16.msra.mxu0 0
        %1003 = vmatprep.subr.bf16.mxu0 0
        %1004 = vmatpush1.bf16.msra.mxu0 0
        %1005 = vmatprep.subr.bf16.mxu0 0
        %1006 = vmatpush1.bf16.msra.mxu0 0
        %1007 = vmatprep.subr.bf16.mxu0 0
        %1008 = vmatpush1.bf16.msra.mxu0 0
        %1009 = vmatprep.subr.bf16.mxu0 0
        %1010 = vmatpush1.bf16.msra.mxu0 0
        %1011 = vmatprep.mubr.bf16.mxu0 0
        %1012 = vmatmul.mubr.bf16.gmra.mrb[0].mxu0 %v794
        %v1013 = vpop.f32.mrb[0].mxu0
        %v1014 = vadd.f32 0.0, %v1013
        %v1015 = vpop.f32.mrb[0].mxu0
        %v1016 = vpop.f32.mrb[0].mxu0
        %v1017 = vadd.f32 0.0, %v1016
        %v1018 = vpop.f32.mrb[0].mxu0
        %1019 = vmatprep.mubr.bf16.mxu0 0
        %1020 = vmatmul.mubr.bf16.gmra.mrb[0].mxu0 %v797
        %v1021 = vpop.f32.mrb[0].mxu0
        %v1022 = vadd.f32 0.0, %v1021
        %v1023 = vpop.f32.mrb[0].mxu0
        %v1024 = vpop.f32.mrb[0].mxu0
        %v1025 = vpop.f32.mrb[0].mxu0
        %1026 = vdwg.mxu0
        %v1031 = vunpack.c.l.b16 %v749
        %v1032 = vunpack.c.l.b16 %v750
        %v1033 = vunpack.c.l.b16 %v751
        %v1034 = vunpack.c.l.b16 %v752
        %v1035 = vpack.c.b16 %v1032, %v1031
        %v1036 = vpack.c.b16 %v1034, %v1033
        %1039 = vmatprep.subr.bf16.mxu0 0
        %1040 = vmatpush1.bf16.msra.mxu0 %v1035
        %1041 = vmatprep.subr.bf16.mxu0 0
        %1042 = vmatpush1.bf16.msra.mxu0 %v1036
        %1043 = vmatprep.subr.bf16.mxu0 0
        %1044 = vmatpush1.bf16.msra.mxu0 0
        %1045 = vmatprep.subr.bf16.mxu0 0
        %1046 = vmatpush1.bf16.msra.mxu0 0
        %1047 = vmatprep.subr.bf16.mxu0 0
        %1048 = vmatpush1.bf16.msra.mxu0 0
        %1049 = vmatprep.subr.bf16.mxu0 0
        %1050 = vmatpush1.bf16.msra.mxu0 0
        %1051 = vmatprep.subr.bf16.mxu0 0
        %1052 = vmatpush1.bf16.msra.mxu0 0
        %1053 = vmatprep.subr.bf16.mxu0 0
        %1054 = vmatpush1.bf16.msra.mxu0 0
        %1055 = vmatprep.subr.bf16.mxu0 0
        %1056 = vmatpush1.bf16.msra.mxu0 0
        %1057 = vmatprep.subr.bf16.mxu0 0
        %1058 = vmatpush1.bf16.msra.mxu0 0
        %1059 = vmatprep.subr.bf16.mxu0 0
        %1060 = vmatpush1.bf16.msra.mxu0 0
        %1061 = vmatprep.subr.bf16.mxu0 0
        %1062 = vmatpush1.bf16.msra.mxu0 0
        %1063 = vmatprep.subr.bf16.mxu0 0
        %1064 = vmatpush1.bf16.msra.mxu0 0
        %1065 = vmatprep.subr.bf16.mxu0 0
        %1066 = vmatpush1.bf16.msra.mxu0 0
        %1067 = vmatprep.subr.bf16.mxu0 0
        %1068 = vmatpush1.bf16.msra.mxu0 0
        %1069 = vmatprep.subr.bf16.mxu0 0
        %1070 = vmatpush1.bf16.msra.mxu0 0
        %1071 = vmatprep.mubr.bf16.mxu0 0
        %1072 = vmatmul.mubr.bf16.gmra.mrb[0].mxu0 %v794
        %v1073 = vpop.f32.mrb[0].mxu0
        %v1074 = vadd.f32 0.0, %v1073
        %v1075 = vpop.f32.mrb[0].mxu0
        %v1076 = vpop.f32.mrb[0].mxu0
        %v1077 = vadd.f32 0.0, %v1076
        %v1078 = vpop.f32.mrb[0].mxu0
        %1079 = vmatprep.mubr.bf16.mxu0 0
        %1080 = vmatmul.mubr.bf16.gmra.mrb[0].mxu0 %v797
        %v1081 = vpop.f32.mrb[0].mxu0
        %v1082 = vadd.f32 0.0, %v1081
        %v1083 = vpop.f32.mrb[0].mxu0
        %v1084 = vpop.f32.mrb[0].mxu0
        %v1085 = vpop.f32.mrb[0].mxu0
        %1086 = vdwg.mxu0
        %v1091 = vunpack.c.l.b16 %v753
        %v1092 = vunpack.c.l.b16 %v754
        %v1093 = vunpack.c.l.b16 %v755
        %v1094 = vunpack.c.l.b16 %v756
        %v1095 = vpack.c.b16 %v1092, %v1091
        %v1096 = vpack.c.b16 %v1094, %v1093
        %1099 = vmatprep.subr.bf16.mxu0 0
        %1100 = vmatpush1.bf16.msra.mxu0 %v1095
        %1101 = vmatprep.subr.bf16.mxu0 0
        %1102 = vmatpush1.bf16.msra.mxu0 %v1096
        %1103 = vmatprep.subr.bf16.mxu0 0
        %1104 = vmatpush1.bf16.msra.mxu0 0
        %1105 = vmatprep.subr.bf16.mxu0 0
        %1106 = vmatpush1.bf16.msra.mxu0 0
        %1107 = vmatprep.subr.bf16.mxu0 0
        %1108 = vmatpush1.bf16.msra.mxu0 0
        %1109 = vmatprep.subr.bf16.mxu0 0
        %1110 = vmatpush1.bf16.msra.mxu0 0
        %1111 = vmatprep.subr.bf16.mxu0 0
        %1112 = vmatpush1.bf16.msra.mxu0 0
        %1113 = vmatprep.subr.bf16.mxu0 0
        %1114 = vmatpush1.bf16.msra.mxu0 0
        %1115 = vmatprep.subr.bf16.mxu0 0
        %1116 = vmatpush1.bf16.msra.mxu0 0
        %1117 = vmatprep.subr.bf16.mxu0 0
        %1118 = vmatpush1.bf16.msra.mxu0 0
        %1119 = vmatprep.subr.bf16.mxu0 0
        %1120 = vmatpush1.bf16.msra.mxu0 0
        %1121 = vmatprep.subr.bf16.mxu0 0
        %1122 = vmatpush1.bf16.msra.mxu0 0
        %1123 = vmatprep.subr.bf16.mxu0 0
        %1124 = vmatpush1.bf16.msra.mxu0 0
        %1125 = vmatprep.subr.bf16.mxu0 0
        %1126 = vmatpush1.bf16.msra.mxu0 0
        %1127 = vmatprep.subr.bf16.mxu0 0
        %1128 = vmatpush1.bf16.msra.mxu0 0
        %1129 = vmatprep.subr.bf16.mxu0 0
        %1130 = vmatpush1.bf16.msra.mxu0 0
        %1131 = vmatprep.mubr.bf16.mxu0 0
        %1132 = vmatmul.mubr.bf16.gmra.mrb[0].mxu0 %v794
        %v1133 = vpop.f32.mrb[0].mxu0
        %v1134 = vadd.f32 0.0, %v1133
        %v1135 = vpop.f32.mrb[0].mxu0
        %v1136 = vpop.f32.mrb[0].mxu0
        %v1137 = vadd.f32 0.0, %v1136
        %v1138 = vpop.f32.mrb[0].mxu0
        %1139 = vmatprep.mubr.bf16.mxu0 0
        %1140 = vmatmul.mubr.bf16.gmra.mrb[0].mxu0 %v797
        %v1141 = vpop.f32.mrb[0].mxu0
        %v1142 = vadd.f32 0.0, %v1141
        %v1143 = vpop.f32.mrb[0].mxu0
        %v1144 = vpop.f32.mrb[0].mxu0
        %v1145 = vpop.f32.mrb[0].mxu0
        %1146 = vdwg.mxu0
        %v1151 = vunpack.c.l.b16 %v757
        %v1152 = vunpack.c.l.b16 %v758
        %v1153 = vunpack.c.l.b16 %v759
        %v1154 = vunpack.c.l.b16 %v760
        %v1155 = vpack.c.b16 %v1152, %v1151
        %v1156 = vpack.c.b16 %v1154, %v1153
        %1159 = vmatprep.subr.bf16.mxu0 0
        %1160 = vmatpush1.bf16.msra.mxu0 %v1155
        %1161 = vmatprep.subr.bf16.mxu0 0
        %1162 = vmatpush1.bf16.msra.mxu0 %v1156
        %1163 = vmatprep.subr.bf16.mxu0 0
        %1164 = vmatpush1.bf16.msra.mxu0 0
        %1165 = vmatprep.subr.bf16.mxu0 0
        %1166 = vmatpush1.bf16.msra.mxu0 0
        %1167 = vmatprep.subr.bf16.mxu0 0
        %1168 = vmatpush1.bf16.msra.mxu0 0
        %1169 = vmatprep.subr.bf16.mxu0 0
        %1170 = vmatpush1.bf16.msra.mxu0 0
        %1171 = vmatprep.subr.bf16.mxu0 0
        %1172 = vmatpush1.bf16.msra.mxu0 0
        %1173 = vmatprep.subr.bf16.mxu0 0
        %1174 = vmatpush1.bf16.msra.mxu0 0
        %1175 = vmatprep.subr.bf16.mxu0 0
        %1176 = vmatpush1.bf16.msra.mxu0 0
        %1177 = vmatprep.subr.bf16.mxu0 0
        %1178 = vmatpush1.bf16.msra.mxu0 0
        %1179 = vmatprep.subr.bf16.mxu0 0
        %1180 = vmatpush1.bf16.msra.mxu0 0
        %1181 = vmatprep.subr.bf16.mxu0 0
        %1182 = vmatpush1.bf16.msra.mxu0 0
        %1183 = vmatprep.subr.bf16.mxu0 0
        %1184 = vmatpush1.bf16.msra.mxu0 0
        %1185 = vmatprep.subr.bf16.mxu0 0
        %1186 = vmatpush1.bf16.msra.mxu0 0
        %1187 = vmatprep.subr.bf16.mxu0 0
        %1188 = vmatpush1.bf16.msra.mxu0 0
        %1189 = vmatprep.subr.bf16.mxu0 0
        %1190 = vmatpush1.bf16.msra.mxu0 0
        %1191 = vmatprep.mubr.bf16.mxu0 0
        %1192 = vmatmul.mubr.bf16.gmra.mrb[0].mxu0 %v794
        %v1193 = vpop.f32.mrb[0].mxu0
        %v1194 = vadd.f32 0.0, %v1193
        %v1195 = vpop.f32.mrb[0].mxu0
        %v1196 = vpop.f32.mrb[0].mxu0
        %v1197 = vadd.f32 0.0, %v1196
        %v1198 = vpop.f32.mrb[0].mxu0
        %1199 = vmatprep.mubr.bf16.mxu0 0
        %1200 = vmatmul.mubr.bf16.gmra.mrb[0].mxu0 %v797
        %v1201 = vpop.f32.mrb[0].mxu0
        %v1202 = vadd.f32 0.0, %v1201
        %v1203 = vpop.f32.mrb[0].mxu0
        %v1204 = vpop.f32.mrb[0].mxu0
        %v1205 = vpop.f32.mrb[0].mxu0
        %1206 = vdwg.mxu0
        %v1211 = vunpack.c.l.b16 %v761
        %v1212 = vunpack.c.l.b16 %v762
        %v1213 = vunpack.c.l.b16 %v763
        %v1214 = vunpack.c.l.b16 %v764
        %v1215 = vpack.c.b16 %v1212, %v1211
        %v1216 = vpack.c.b16 %v1214, %v1213
        %1219 = vmatprep.subr.bf16.mxu0 0
        %1220 = vmatpush1.bf16.msra.mxu0 %v1215
        %1221 = vmatprep.subr.bf16.mxu0 0
        %1222 = vmatpush1.bf16.msra.mxu0 %v1216
        %1223 = vmatprep.subr.bf16.mxu0 0
        %1224 = vmatpush1.bf16.msra.mxu0 0
        %1225 = vmatprep.subr.bf16.mxu0 0
        %1226 = vmatpush1.bf16.msra.mxu0 0
        %1227 = vmatprep.subr.bf16.mxu0 0
        %1228 = vmatpush1.bf16.msra.mxu0 0
        %1229 = vmatprep.subr.bf16.mxu0 0
        %1230 = vmatpush1.bf16.msra.mxu0 0
        %1231 = vmatprep.subr.bf16.mxu0 0
        %1232 = vmatpush1.bf16.msra.mxu0 0
        %1233 = vmatprep.subr.bf16.mxu0 0
        %1234 = vmatpush1.bf16.msra.mxu0 0
        %1235 = vmatprep.subr.bf16.mxu0 0
        %1236 = vmatpush1.bf16.msra.mxu0 0
        %1237 = vmatprep.subr.bf16.mxu0 0
        %1238 = vmatpush1.bf16.msra.mxu0 0
        %1239 = vmatprep.subr.bf16.mxu0 0
        %1240 = vmatpush1.bf16.msra.mxu0 0
        %1241 = vmatprep.subr.bf16.mxu0 0
        %1242 = vmatpush1.bf16.msra.mxu0 0
        %1243 = vmatprep.subr.bf16.mxu0 0
        %1244 = vmatpush1.bf16.msra.mxu0 0
        %1245 = vmatprep.subr.bf16.mxu0 0
        %1246 = vmatpush1.bf16.msra.mxu0 0
        %1247 = vmatprep.subr.bf16.mxu0 0
        %1248 = vmatpush1.bf16.msra.mxu0 0
        %1249 = vmatprep.subr.bf16.mxu0 0
        %1250 = vmatpush1.bf16.msra.mxu0 0
        %1251 = vmatprep.mubr.bf16.mxu0 0
        %1252 = vmatmul.mubr.bf16.gmra.mrb[0].mxu0 %v794
        %v1253 = vpop.f32.mrb[0].mxu0
        %v1254 = vadd.f32 0.0, %v1253
        %v1255 = vpop.f32.mrb[0].mxu0
        %v1256 = vpop.f32.mrb[0].mxu0
        %v1257 = vadd.f32 0.0, %v1256
        %v1258 = vpop.f32.mrb[0].mxu0
        %1259 = vmatprep.mubr.bf16.mxu0 0
        %1260 = vmatmul.mubr.bf16.gmra.mrb[0].mxu0 %v797
        %v1261 = vpop.f32.mrb[0].mxu0
        %v1262 = vadd.f32 0.0, %v1261
        %v1263 = vpop.f32.mrb[0].mxu0
        %v1264 = vpop.f32.mrb[0].mxu0
        %v1265 = vpop.f32.mrb[0].mxu0
        %1266 = vdwg.mxu0
        %v1271 = vunpack.c.l.b16 %v765
        %v1272 = vunpack.c.l.b16 %v766
        %v1273 = vunpack.c.l.b16 %v767
        %v1274 = vunpack.c.l.b16 %v768
        %v1275 = vpack.c.b16 %v1272, %v1271
        %v1276 = vpack.c.b16 %v1274, %v1273
        %1279 = vmatprep.subr.bf16.mxu0 0
        %1280 = vmatpush1.bf16.msra.mxu0 %v1275
        %1281 = vmatprep.subr.bf16.mxu0 0
        %1282 = vmatpush1.bf16.msra.mxu0 %v1276
        %1283 = vmatprep.subr.bf16.mxu0 0
        %1284 = vmatpush1.bf16.msra.mxu0 0
        %1285 = vmatprep.subr.bf16.mxu0 0
        %1286 = vmatpush1.bf16.msra.mxu0 0
        %1287 = vmatprep.subr.bf16.mxu0 0
        %1288 = vmatpush1.bf16.msra.mxu0 0
        %1289 = vmatprep.subr.bf16.mxu0 0
        %1290 = vmatpush1.bf16.msra.mxu0 0
        %1291 = vmatprep.subr.bf16.mxu0 0
        %1292 = vmatpush1.bf16.msra.mxu0 0
        %1293 = vmatprep.subr.bf16.mxu0 0
        %1294 = vmatpush1.bf16.msra.mxu0 0
        %1295 = vmatprep.subr.bf16.mxu0 0
        %1296 = vmatpush1.bf16.msra.mxu0 0
        %1297 = vmatprep.subr.bf16.mxu0 0
        %1298 = vmatpush1.bf16.msra.mxu0 0
        %1299 = vmatprep.subr.bf16.mxu0 0
        %1300 = vmatpush1.bf16.msra.mxu0 0
        %1301 = vmatprep.subr.bf16.mxu0 0
        %1302 = vmatpush1.bf16.msra.mxu0 0
        %1303 = vmatprep.subr.bf16.mxu0 0
        %1304 = vmatpush1.bf16.msra.mxu0 0
        %1305 = vmatprep.subr.bf16.mxu0 0
        %1306 = vmatpush1.bf16.msra.mxu0 0
        %1307 = vmatprep.subr.bf16.mxu0 0
        %1308 = vmatpush1.bf16.msra.mxu0 0
        %1309 = vmatprep.subr.bf16.mxu0 0
        %1310 = vmatpush1.bf16.msra.mxu0 0
        %1311 = vmatprep.mubr.bf16.mxu0 0
        %1312 = vmatmul.mubr.bf16.gmra.mrb[0].mxu0 %v794
        %v1313 = vpop.f32.mrb[0].mxu0
        %v1314 = vadd.f32 0.0, %v1313
        %v1315 = vpop.f32.mrb[0].mxu0
        %v1316 = vpop.f32.mrb[0].mxu0
        %v1317 = vadd.f32 0.0, %v1316
        %v1318 = vpop.f32.mrb[0].mxu0
        %1319 = vmatprep.mubr.bf16.mxu0 0
        %1320 = vmatmul.mubr.bf16.gmra.mrb[0].mxu0 %v797
        %v1321 = vpop.f32.mrb[0].mxu0
        %v1322 = vadd.f32 0.0, %v1321
        %v1323 = vpop.f32.mrb[0].mxu0
        %v1324 = vpop.f32.mrb[0].mxu0
        %v1325 = vpop.f32.mrb[0].mxu0
        %1326 = vdwg.mxu0
        %v1331 = vunpack.c.l.b16 %v769
        %v1332 = vunpack.c.l.b16 %v770
        %v1333 = vunpack.c.l.b16 %v771
        %v1334 = vunpack.c.l.b16 %v772
        %v1335 = vpack.c.b16 %v1332, %v1331
        %v1336 = vpack.c.b16 %v1334, %v1333
        %1339 = vmatprep.subr.bf16.mxu0 0
        %1340 = vmatpush1.bf16.msra.mxu0 %v1335
        %1341 = vmatprep.subr.bf16.mxu0 0
        %1342 = vmatpush1.bf16.msra.mxu0 %v1336
        %1343 = vmatprep.subr.bf16.mxu0 0
        %1344 = vmatpush1.bf16.msra.mxu0 0
        %1345 = vmatprep.subr.bf16.mxu0 0
        %1346 = vmatpush1.bf16.msra.mxu0 0
        %1347 = vmatprep.subr.bf16.mxu0 0
        %1348 = vmatpush1.bf16.msra.mxu0 0
        %1349 = vmatprep.subr.bf16.mxu0 0
        %1350 = vmatpush1.bf16.msra.mxu0 0
        %1351 = vmatprep.subr.bf16.mxu0 0
        %1352 = vmatpush1.bf16.msra.mxu0 0
        %1353 = vmatprep.subr.bf16.mxu0 0
        %1354 = vmatpush1.bf16.msra.mxu0 0
        %1355 = vmatprep.subr.bf16.mxu0 0
        %1356 = vmatpush1.bf16.msra.mxu0 0
        %1357 = vmatprep.subr.bf16.mxu0 0
        %1358 = vmatpush1.bf16.msra.mxu0 0
        %1359 = vmatprep.subr.bf16.mxu0 0
        %1360 = vmatpush1.bf16.msra.mxu0 0
        %1361 = vmatprep.subr.bf16.mxu0 0
        %1362 = vmatpush1.bf16.msra.mxu0 0
        %1363 = vmatprep.subr.bf16.mxu0 0
        %1364 = vmatpush1.bf16.msra.mxu0 0
        %1365 = vmatprep.subr.bf16.mxu0 0
        %1366 = vmatpush1.bf16.msra.mxu0 0
        %1367 = vmatprep.subr.bf16.mxu0 0
        %1368 = vmatpush1.bf16.msra.mxu0 0
        %1369 = vmatprep.subr.bf16.mxu0 0
        %1370 = vmatpush1.bf16.msra.mxu0 0
        %1371 = vmatprep.mubr.bf16.mxu0 0
        %1372 = vmatmul.mubr.bf16.gmra.mrb[0].mxu0 %v794
        %v1373 = vpop.f32.mrb[0].mxu0
        %v1374 = vadd.f32 0.0, %v1373
        %v1375 = vpop.f32.mrb[0].mxu0
        %v1376 = vpop.f32.mrb[0].mxu0
        %v1377 = vadd.f32 0.0, %v1376
        %v1378 = vpop.f32.mrb[0].mxu0
        %1379 = vmatprep.mubr.bf16.mxu0 0
        %1380 = vmatmul.mubr.bf16.gmra.mrb[0].mxu0 %v797
        %v1381 = vpop.f32.mrb[0].mxu0
        %v1382 = vadd.f32 0.0, %v1381
        %v1383 = vpop.f32.mrb[0].mxu0
        %v1384 = vpop.f32.mrb[0].mxu0
        %v1385 = vpop.f32.mrb[0].mxu0
        %1386 = vdwg.mxu0
        %v1391 = vunpack.c.l.b16 %v773
        %v1392 = vunpack.c.l.b16 %v774
        %v1393 = vunpack.c.l.b16 %v775
        %v1394 = vunpack.c.l.b16 %v776
        %v1395 = vpack.c.b16 %v1392, %v1391
        %v1396 = vpack.c.b16 %v1394, %v1393
        %1399 = vmatprep.subr.bf16.mxu0 0
        %1400 = vmatpush1.bf16.msra.mxu0 %v1395
        %1401 = vmatprep.subr.bf16.mxu0 0
        %1402 = vmatpush1.bf16.msra.mxu0 %v1396
        %1403 = vmatprep.subr.bf16.mxu0 0
        %1404 = vmatpush1.bf16.msra.mxu0 0
        %1405 = vmatprep.subr.bf16.mxu0 0
        %1406 = vmatpush1.bf16.msra.mxu0 0
        %1407 = vmatprep.subr.bf16.mxu0 0
        %1408 = vmatpush1.bf16.msra.mxu0 0
        %1409 = vmatprep.subr.bf16.mxu0 0
        %1410 = vmatpush1.bf16.msra.mxu0 0
        %1411 = vmatprep.subr.bf16.mxu0 0
        %1412 = vmatpush1.bf16.msra.mxu0 0
        %1413 = vmatprep.subr.bf16.mxu0 0
        %1414 = vmatpush1.bf16.msra.mxu0 0
        %1415 = vmatprep.subr.bf16.mxu0 0
        %1416 = vmatpush1.bf16.msra.mxu0 0
        %1417 = vmatprep.subr.bf16.mxu0 0
        %1418 = vmatpush1.bf16.msra.mxu0 0
        %1419 = vmatprep.subr.bf16.mxu0 0
        %1420 = vmatpush1.bf16.msra.mxu0 0
        %1421 = vmatprep.subr.bf16.mxu0 0
        %1422 = vmatpush1.bf16.msra.mxu0 0
        %1423 = vmatprep.subr.bf16.mxu0 0
        %1424 = vmatpush1.bf16.msra.mxu0 0
        %1425 = vmatprep.subr.bf16.mxu0 0
        %1426 = vmatpush1.bf16.msra.mxu0 0
        %1427 = vmatprep.subr.bf16.mxu0 0
        %1428 = vmatpush1.bf16.msra.mxu0 0
        %1429 = vmatprep.subr.bf16.mxu0 0
        %1430 = vmatpush1.bf16.msra.mxu0 0
        %1431 = vmatprep.mubr.bf16.mxu0 0
        %1432 = vmatmul.mubr.bf16.gmra.mrb[0].mxu0 %v794
        %v1433 = vpop.f32.mrb[0].mxu0
        %v1434 = vadd.f32 0.0, %v1433
        %v1435 = vpop.f32.mrb[0].mxu0
        %v1436 = vpop.f32.mrb[0].mxu0
        %v1437 = vadd.f32 0.0, %v1436
        %v1438 = vpop.f32.mrb[0].mxu0
        %1439 = vmatprep.mubr.bf16.mxu0 0
        %1440 = vmatmul.mubr.bf16.gmra.mrb[0].mxu0 %v797
        %v1441 = vpop.f32.mrb[0].mxu0
        %v1442 = vadd.f32 0.0, %v1441
        %v1443 = vpop.f32.mrb[0].mxu0
        %v1444 = vpop.f32.mrb[0].mxu0
        %v1445 = vpop.f32.mrb[0].mxu0
        %1446 = vdwg.mxu0
        %v1451 = vunpack.c.l.b16 %v777
        %v1452 = vunpack.c.l.b16 %v778
        %v1453 = vunpack.c.l.b16 %v779
        %v1454 = vunpack.c.l.b16 %v780
        %v1455 = vpack.c.b16 %v1452, %v1451
        %v1456 = vpack.c.b16 %v1454, %v1453
        %1459 = vmatprep.subr.bf16.mxu0 0
        %1460 = vmatpush1.bf16.msra.mxu0 %v1455
        %1461 = vmatprep.subr.bf16.mxu0 0
        %1462 = vmatpush1.bf16.msra.mxu0 %v1456
        %1463 = vmatprep.subr.bf16.mxu0 0
        %1464 = vmatpush1.bf16.msra.mxu0 0
        %1465 = vmatprep.subr.bf16.mxu0 0
        %1466 = vmatpush1.bf16.msra.mxu0 0
        %1467 = vmatprep.subr.bf16.mxu0 0
        %1468 = vmatpush1.bf16.msra.mxu0 0
        %1469 = vmatprep.subr.bf16.mxu0 0
        %1470 = vmatpush1.bf16.msra.mxu0 0
        %1471 = vmatprep.subr.bf16.mxu0 0
        %1472 = vmatpush1.bf16.msra.mxu0 0
        %1473 = vmatprep.subr.bf16.mxu0 0
        %1474 = vmatpush1.bf16.msra.mxu0 0
        %1475 = vmatprep.subr.bf16.mxu0 0
        %1476 = vmatpush1.bf16.msra.mxu0 0
        %1477 = vmatprep.subr.bf16.mxu0 0
        %1478 = vmatpush1.bf16.msra.mxu0 0
        %1479 = vmatprep.subr.bf16.mxu0 0
        %1480 = vmatpush1.bf16.msra.mxu0 0
        %1481 = vmatprep.subr.bf16.mxu0 0
        %1482 = vmatpush1.bf16.msra.mxu0 0
        %1483 = vmatprep.subr.bf16.mxu0 0
        %1484 = vmatpush1.bf16.msra.mxu0 0
        %1485 = vmatprep.subr.bf16.mxu0 0
        %1486 = vmatpush1.bf16.msra.mxu0 0
        %1487 = vmatprep.subr.bf16.mxu0 0
        %1488 = vmatpush1.bf16.msra.mxu0 0
        %1489 = vmatprep.subr.bf16.mxu0 0
        %1490 = vmatpush1.bf16.msra.mxu0 0
        %1491 = vmatprep.mubr.bf16.mxu0 0
        %1492 = vmatmul.mubr.bf16.gmra.mrb[0].mxu0 %v794
        %v1493 = vpop.f32.mrb[0].mxu0
        %v1494 = vadd.f32 0.0, %v1493
        %v1495 = vpop.f32.mrb[0].mxu0
        %v1496 = vpop.f32.mrb[0].mxu0
        %v1497 = vadd.f32 0.0, %v1496
        %v1498 = vpop.f32.mrb[0].mxu0
        %1499 = vmatprep.mubr.bf16.mxu0 0
        %1500 = vmatmul.mubr.bf16.gmra.mrb[0].mxu0 %v797
        %v1501 = vpop.f32.mrb[0].mxu0
        %v1502 = vadd.f32 0.0, %v1501
        %v1503 = vpop.f32.mrb[0].mxu0
        %v1504 = vpop.f32.mrb[0].mxu0
        %v1505 = vpop.f32.mrb[0].mxu0
        %1506 = vdwg.mxu0
        %v1507 = vpack.c.bf16 %v837, %v834
        %v1508 = vpack.c.bf16 %v842, %v842
        %v1509 = vpack.c.bf16 %v897, %v894
        %v1510 = vpack.c.bf16 %v902, %v902
        %v1511 = vpack.c.bf16 %v957, %v954
        %v1512 = vpack.c.bf16 %v962, %v962
        %v1513 = vpack.c.bf16 %v1017, %v1014
        %v1514 = vpack.c.bf16 %v1022, %v1022
        %v1515 = vpack.c.bf16 %v1077, %v1074
        %v1516 = vpack.c.bf16 %v1082, %v1082
        %v1517 = vpack.c.bf16 %v1137, %v1134
        %v1518 = vpack.c.bf16 %v1142, %v1142
        %v1519 = vpack.c.bf16 %v1197, %v1194
        %v1520 = vpack.c.bf16 %v1202, %v1202
        %v1521 = vpack.c.bf16 %v1257, %v1254
        %v1522 = vpack.c.bf16 %v1262, %v1262
        %v1523 = vpack.c.bf16 %v1317, %v1314
        %v1524 = vpack.c.bf16 %v1322, %v1322
        %v1525 = vpack.c.bf16 %v1377, %v1374
        %v1526 = vpack.c.bf16 %v1382, %v1382
        %v1527 = vpack.c.bf16 %v1437, %v1434
        %v1528 = vpack.c.bf16 %v1442, %v1442
        %v1529 = vpack.c.bf16 %v1497, %v1494
        %v1530 = vpack.c.bf16 %v1502, %v1502
        %vm1531 = vcmask 64512
        %v1533 = vsel %vm1531, %v1507, 0
        %v1536 = vsel %vm1531, %v1508, 0
        %v1539 = vsel %vm1531, %v1515, 0
        %v1542 = vsel %vm1531, %v1516, 0
        %1544 = vmatprep.subr.bf16.mxu0 0
        %1545 = vmatpush1.bf16.xpose.msra.mxu0 %v1539
        %1546 = vmatprep.subr.bf16.mxu0 0
        %1547 = vmatpush1.bf16.xpose.msra.mxu0 %v1542
        %1548 = vmatprep.subr.bf16.mxu0 0
        %1549 = vmatpush1.bf16.xpose.msra.mxu0 0
        %1550 = vmatprep.subr.bf16.mxu0 0
        %1551 = vmatpush1.bf16.xpose.msra.mxu0 0
        %1552 = vmatprep.subr.bf16.mxu0 0
        %1553 = vmatpush1.bf16.xpose.msra.mxu0 0
        %1554 = vmatprep.subr.bf16.mxu0 0
        %1555 = vmatpush1.bf16.xpose.msra.mxu0 0
        %1556 = vmatprep.subr.bf16.mxu0 0
        %1557 = vmatpush1.bf16.xpose.msra.mxu0 0
        %1558 = vmatprep.subr.bf16.mxu0 0
        %1559 = vmatpush1.bf16.xpose.msra.mxu0 0
        %1560 = vmatprep.subr.bf16.mxu0 0
        %1561 = vmatpush1.bf16.xpose.msra.mxu0 0
        %1562 = vmatprep.subr.bf16.mxu0 0
        %1563 = vmatpush1.bf16.xpose.msra.mxu0 0
        %1564 = vmatprep.subr.bf16.mxu0 0
        %1565 = vmatpush1.bf16.xpose.msra.mxu0 0
        %1566 = vmatprep.subr.bf16.mxu0 0
        %1567 = vmatpush1.bf16.xpose.msra.mxu0 0
        %1568 = vmatprep.subr.bf16.mxu0 0
        %1569 = vmatpush1.bf16.xpose.msra.mxu0 0
        %1570 = vmatprep.subr.bf16.mxu0 0
        %1571 = vmatpush1.bf16.xpose.msra.mxu0 0
        %1572 = vmatprep.subr.bf16.mxu0 0
        %1573 = vmatpush1.bf16.xpose.msra.mxu0 0
        %1574 = vmatprep.subr.bf16.mxu0 0
        %1575 = vmatpush1.bf16.xpose.msra.mxu0 0
        %1576 = vmatprep.mubr.bf16.mxu0 0
        %1577 = vmatmul.mubr.bf16.gmra.mrb[0].mxu0 %v1533
        %v1578 = vpop.f32.mrb[0].mxu0
        %v1579 = vadd.f32 0.0, %v1578
        %v1580 = vpop.f32.mrb[0].mxu0
        %v1581 = vpop.f32.mrb[0].mxu0
        %v1582 = vadd.f32 0.0, %v1581
        %v1583 = vpop.f32.mrb[0].mxu0
        %1584 = vmatprep.mubr.bf16.mxu0 0
        %1585 = vmatmul.mubr.bf16.gmra.mrb[0].mxu0 %v1536
        %v1586 = vpop.f32.mrb[0].mxu0
        %v1587 = vadd.f32 0.0, %v1586
        %v1588 = vpop.f32.mrb[0].mxu0
        %v1589 = vpop.f32.mrb[0].mxu0
        %v1590 = vpop.f32.mrb[0].mxu0
        %1591 = vdwg.mxu0
        %v1593 = vsel %vm1531, %v1509, 0
        %v1596 = vsel %vm1531, %v1510, 0
        %v1599 = vsel %vm1531, %v1517, 0
        %v1602 = vsel %vm1531, %v1518, 0
        %1604 = vmatprep.subr.bf16.mxu0 0
        %1605 = vmatpush1.bf16.xpose.msra.mxu0 %v1599
        %1606 = vmatprep.subr.bf16.mxu0 0
        %1607 = vmatpush1.bf16.xpose.msra.mxu0 %v1602
        %1608 = vmatprep.subr.bf16.mxu0 0
        %1609 = vmatpush1.bf16.xpose.msra.mxu0 0
        %1610 = vmatprep.subr.bf16.mxu0 0
        %1611 = vmatpush1.bf16.xpose.msra.mxu0 0
        %1612 = vmatprep.subr.bf16.mxu0 0
        %1613 = vmatpush1.bf16.xpose.msra.mxu0 0
        %1614 = vmatprep.subr.bf16.mxu0 0
        %1615 = vmatpush1.bf16.xpose.msra.mxu0 0
        %1616 = vmatprep.subr.bf16.mxu0 0
        %1617 = vmatpush1.bf16.xpose.msra.mxu0 0
        %1618 = vmatprep.subr.bf16.mxu0 0
        %1619 = vmatpush1.bf16.xpose.msra.mxu0 0
        %1620 = vmatprep.subr.bf16.mxu0 0
        %1621 = vmatpush1.bf16.xpose.msra.mxu0 0
        %1622 = vmatprep.subr.bf16.mxu0 0
        %1623 = vmatpush1.bf16.xpose.msra.mxu0 0
        %1624 = vmatprep.subr.bf16.mxu0 0
        %1625 = vmatpush1.bf16.xpose.msra.mxu0 0
        %1626 = vmatprep.subr.bf16.mxu0 0
        %1627 = vmatpush1.bf16.xpose.msra.mxu0 0
        %1628 = vmatprep.subr.bf16.mxu0 0
        %1629 = vmatpush1.bf16.xpose.msra.mxu0 0
        %1630 = vmatprep.subr.bf16.mxu0 0
        %1631 = vmatpush1.bf16.xpose.msra.mxu0 0
        %1632 = vmatprep.subr.bf16.mxu0 0
        %1633 = vmatpush1.bf16.xpose.msra.mxu0 0
        %1634 = vmatprep.subr.bf16.mxu0 0
        %1635 = vmatpush1.bf16.xpose.msra.mxu0 0
        %1636 = vmatprep.mubr.bf16.mxu0 0
        %1637 = vmatmul.mubr.bf16.gmra.mrb[0].mxu0 %v1593
        %v1638 = vpop.f32.mrb[0].mxu0
        %v1639 = vadd.f32 0.0, %v1638
        %v1640 = vpop.f32.mrb[0].mxu0
        %v1641 = vpop.f32.mrb[0].mxu0
        %v1642 = vadd.f32 0.0, %v1641
        %v1643 = vpop.f32.mrb[0].mxu0
        %1644 = vmatprep.mubr.bf16.mxu0 0
        %1645 = vmatmul.mubr.bf16.gmra.mrb[0].mxu0 %v1596
        %v1646 = vpop.f32.mrb[0].mxu0
        %v1647 = vadd.f32 0.0, %v1646
        %v1648 = vpop.f32.mrb[0].mxu0
        %v1649 = vpop.f32.mrb[0].mxu0
        %v1650 = vpop.f32.mrb[0].mxu0
        %1651 = vdwg.mxu0
        %v1653 = vsel %vm1531, %v1511, 0
        %v1656 = vsel %vm1531, %v1512, 0
        %v1659 = vsel %vm1531, %v1519, 0
        %v1662 = vsel %vm1531, %v1520, 0
        %1664 = vmatprep.subr.bf16.mxu0 0
        %1665 = vmatpush1.bf16.xpose.msra.mxu0 %v1659
        %1666 = vmatprep.subr.bf16.mxu0 0
        %1667 = vmatpush1.bf16.xpose.msra.mxu0 %v1662
        %1668 = vmatprep.subr.bf16.mxu0 0
        %1669 = vmatpush1.bf16.xpose.msra.mxu0 0
        %1670 = vmatprep.subr.bf16.mxu0 0
        %1671 = vmatpush1.bf16.xpose.msra.mxu0 0
        %1672 = vmatprep.subr.bf16.mxu0 0
        %1673 = vmatpush1.bf16.xpose.msra.mxu0 0
        %1674 = vmatprep.subr.bf16.mxu0 0
        %1675 = vmatpush1.bf16.xpose.msra.mxu0 0
        %1676 = vmatprep.subr.bf16.mxu0 0
        %1677 = vmatpush1.bf16.xpose.msra.mxu0 0
        %1678 = vmatprep.subr.bf16.mxu0 0
        %1679 = vmatpush1.bf16.xpose.msra.mxu0 0
        %1680 = vmatprep.subr.bf16.mxu0 0
        %1681 = vmatpush1.bf16.xpose.msra.mxu0 0
        %1682 = vmatprep.subr.bf16.mxu0 0
        %1683 = vmatpush1.bf16.xpose.msra.mxu0 0
        %1684 = vmatprep.subr.bf16.mxu0 0
        %1685 = vmatpush1.bf16.xpose.msra.mxu0 0
        %1686 = vmatprep.subr.bf16.mxu0 0
        %1687 = vmatpush1.bf16.xpose.msra.mxu0 0
        %1688 = vmatprep.subr.bf16.mxu0 0
        %1689 = vmatpush1.bf16.xpose.msra.mxu0 0
        %1690 = vmatprep.subr.bf16.mxu0 0
        %1691 = vmatpush1.bf16.xpose.msra.mxu0 0
        %1692 = vmatprep.subr.bf16.mxu0 0
        %1693 = vmatpush1.bf16.xpose.msra.mxu0 0
        %1694 = vmatprep.subr.bf16.mxu0 0
        %1695 = vmatpush1.bf16.xpose.msra.mxu0 0
        %1696 = vmatprep.mubr.bf16.mxu0 0
        %1697 = vmatmul.mubr.bf16.gmra.mrb[0].mxu0 %v1653
        %v1698 = vpop.f32.mrb[0].mxu0
        %v1699 = vadd.f32 0.0, %v1698
        %v1700 = vpop.f32.mrb[0].mxu0
        %v1701 = vpop.f32.mrb[0].mxu0
        %v1702 = vadd.f32 0.0, %v1701
        %v1703 = vpop.f32.mrb[0].mxu0
        %1704 = vmatprep.mubr.bf16.mxu0 0
        %1705 = vmatmul.mubr.bf16.gmra.mrb[0].mxu0 %v1656
        %v1706 = vpop.f32.mrb[0].mxu0
        %v1707 = vadd.f32 0.0, %v1706
        %v1708 = vpop.f32.mrb[0].mxu0
        %v1709 = vpop.f32.mrb[0].mxu0
        %v1710 = vpop.f32.mrb[0].mxu0
        %1711 = vdwg.mxu0
        %v1713 = vsel %vm1531, %v1513, 0
        %v1716 = vsel %vm1531, %v1514, 0
        %v1719 = vsel %vm1531, %v1521, 0
        %v1722 = vsel %vm1531, %v1522, 0
        %1724 = vmatprep.subr.bf16.mxu0 0
        %1725 = vmatpush1.bf16.xpose.msra.mxu0 %v1719
        %1726 = vmatprep.subr.bf16.mxu0 0
        %1727 = vmatpush1.bf16.xpose.msra.mxu0 %v1722
        %1728 = vmatprep.subr.bf16.mxu0 0
        %1729 = vmatpush1.bf16.xpose.msra.mxu0 0
        %1730 = vmatprep.subr.bf16.mxu0 0
        %1731 = vmatpush1.bf16.xpose.msra.mxu0 0
        %1732 = vmatprep.subr.bf16.mxu0 0
        %1733 = vmatpush1.bf16.xpose.msra.mxu0 0
        %1734 = vmatprep.subr.bf16.mxu0 0
        %1735 = vmatpush1.bf16.xpose.msra.mxu0 0
        %1736 = vmatprep.subr.bf16.mxu0 0
        %1737 = vmatpush1.bf16.xpose.msra.mxu0 0
        %1738 = vmatprep.subr.bf16.mxu0 0
        %1739 = vmatpush1.bf16.xpose.msra.mxu0 0
        %1740 = vmatprep.subr.bf16.mxu0 0
        %1741 = vmatpush1.bf16.xpose.msra.mxu0 0
        %1742 = vmatprep.subr.bf16.mxu0 0
        %1743 = vmatpush1.bf16.xpose.msra.mxu0 0
        %1744 = vmatprep.subr.bf16.mxu0 0
        %1745 = vmatpush1.bf16.xpose.msra.mxu0 0
        %1746 = vmatprep.subr.bf16.mxu0 0
        %1747 = vmatpush1.bf16.xpose.msra.mxu0 0
        %1748 = vmatprep.subr.bf16.mxu0 0
        %1749 = vmatpush1.bf16.xpose.msra.mxu0 0
        %1750 = vmatprep.subr.bf16.mxu0 0
        %1751 = vmatpush1.bf16.xpose.msra.mxu0 0
        %1752 = vmatprep.subr.bf16.mxu0 0
        %1753 = vmatpush1.bf16.xpose.msra.mxu0 0
        %1754 = vmatprep.subr.bf16.mxu0 0
        %1755 = vmatpush1.bf16.xpose.msra.mxu0 0
        %1756 = vmatprep.mubr.bf16.mxu0 0
        %1757 = vmatmul.mubr.bf16.gmra.mrb[0].mxu0 %v1713
        %v1758 = vpop.f32.mrb[0].mxu0
        %v1759 = vadd.f32 0.0, %v1758
        %v1760 = vpop.f32.mrb[0].mxu0
        %v1761 = vpop.f32.mrb[0].mxu0
        %v1762 = vadd.f32 0.0, %v1761
        %v1763 = vpop.f32.mrb[0].mxu0
        %1764 = vmatprep.mubr.bf16.mxu0 0
        %1765 = vmatmul.mubr.bf16.gmra.mrb[0].mxu0 %v1716
        %v1766 = vpop.f32.mrb[0].mxu0
        %v1767 = vadd.f32 0.0, %v1766
        %v1768 = vpop.f32.mrb[0].mxu0
        %v1769 = vpop.f32.mrb[0].mxu0
        %v1770 = vpop.f32.mrb[0].mxu0
        %1771 = vdwg.mxu0
        %v1772 = vlaneseq
        %v1773 = vand.u32 %v1772, 127
        %vm1774 = vcmp.lt.s32.totalorder %v1773, 17
        %v1775 = vsel %vm1774, 1, 0
        %vm1776 = vcmp.eq.s32.totalorder %v1775, 1
        %v1777 = vsel %vm1776, %v1579, -1e+30
        %v1778 = vsel %vm1776, %v1582, -1e+30
        %v1779 = vsel %vm1776, %v1587, -1e+30
        %v1780 = vsel %vm1776, %v1639, -1e+30
        %v1781 = vsel %vm1776, %v1642, -1e+30
        %v1782 = vsel %vm1776, %v1647, -1e+30
        %v1783 = vsel %vm1776, %v1699, -1e+30
        %v1784 = vsel %vm1776, %v1702, -1e+30
        %v1785 = vsel %vm1776, %v1707, -1e+30
        %v1786 = vsel %vm1776, %v1759, -1e+30
        %v1787 = vsel %vm1776, %v1762, -1e+30
        %v1788 = vsel %vm1776, %v1767, -1e+30
        %vm1789 = vcmask 195584
        %v1790 = vsel %vm1789, %v1777, -inf
        %1791 = vmax.xlane.f32.xlu0 %v1790
        %v1792 = vpop.xlane.xlu0 %1791
        %v1793 = vsel %vm1789, %v1778, -inf
        %1794 = vmax.xlane.f32.xlu0 %v1793
        %v1795 = vpop.xlane.xlu0 %1794
        %v1796 = vsel %vm1789, %v1779, -inf
        %1797 = vmax.xlane.f32.xlu0 %v1796
        %v1798 = vpop.xlane.xlu0 %1797
        %v1799 = vsel %vm1789, %v1780, -inf
        %1800 = vmax.xlane.f32.xlu0 %v1799
        %v1801 = vpop.xlane.xlu0 %1800
        %v1802 = vsel %vm1789, %v1781, -inf
        %1803 = vmax.xlane.f32.xlu0 %v1802
        %v1804 = vpop.xlane.xlu0 %1803
        %v1805 = vsel %vm1789, %v1782, -inf
        %1806 = vmax.xlane.f32.xlu0 %v1805
        %v1807 = vpop.xlane.xlu0 %1806
        %v1808 = vsel %vm1789, %v1783, -inf
        %1809 = vmax.xlane.f32.xlu0 %v1808
        %v1810 = vpop.xlane.xlu0 %1809
        %v1811 = vsel %vm1789, %v1784, -inf
        %1812 = vmax.xlane.f32.xlu0 %v1811
        %v1813 = vpop.xlane.xlu0 %1812
        %v1814 = vsel %vm1789, %v1785, -inf
        %1815 = vmax.xlane.f32.xlu0 %v1814
        %v1816 = vpop.xlane.xlu0 %1815
        %v1817 = vsel %vm1789, %v1786, -inf
        %1818 = vmax.xlane.f32.xlu0 %v1817
        %v1819 = vpop.xlane.xlu0 %1818
        %v1820 = vsel %vm1789, %v1787, -inf
        %1821 = vmax.xlane.f32.xlu0 %v1820
        %v1822 = vpop.xlane.xlu0 %1821
        %v1823 = vsel %vm1789, %v1788, -inf
        %1824 = vmax.xlane.f32.xlu0 %v1823
        %v1825 = vpop.xlane.xlu0 %1824
        %v1826 = vsub.f32 %v1777, %v1792
        %v1827 = vsub.f32 %v1778, %v1795
        %v1828 = vsub.f32 %v1779, %v1798
        %v1829 = vsub.f32 %v1780, %v1801
        %v1830 = vsub.f32 %v1781, %v1804
        %v1831 = vsub.f32 %v1782, %v1807
        %v1832 = vsub.f32 %v1783, %v1810
        %v1833 = vsub.f32 %v1784, %v1813
        %v1834 = vsub.f32 %v1785, %v1816
        %v1835 = vsub.f32 %v1786, %v1819
        %v1836 = vsub.f32 %v1787, %v1822
        %v1837 = vsub.f32 %v1788, %v1825
        %v1838 = vmul.f32 %v1826, 1.442695
        %v1839 = vpow.pop %v1838
        %v1840 = vmul.f32 %v1827, 1.442695
        %v1841 = vpow.pop %v1840
        %v1842 = vmul.f32 %v1828, 1.442695
        %v1843 = vpow.pop %v1842
        %v1844 = vmul.f32 %v1829, 1.442695
        %v1845 = vpow.pop %v1844
        %v1846 = vmul.f32 %v1830, 1.442695
        %v1847 = vpow.pop %v1846
        %v1848 = vmul.f32 %v1831, 1.442695
        %v1849 = vpow.pop %v1848
        %v1850 = vmul.f32 %v1832, 1.442695
        %v1851 = vpow.pop %v1850
        %v1852 = vmul.f32 %v1833, 1.442695
        %v1853 = vpow.pop %v1852
        %v1854 = vmul.f32 %v1834, 1.442695
        %v1855 = vpow.pop %v1854
        %v1856 = vmul.f32 %v1835, 1.442695
        %v1857 = vpow.pop %v1856
        %v1858 = vmul.f32 %v1836, 1.442695
        %v1859 = vpow.pop %v1858
        %v1860 = vmul.f32 %v1837, 1.442695
        %v1861 = vpow.pop %v1860
        %v1862 = vsel %vm1789, %v1839, 0.0
        %1863 = vadd.xlane.f32.xlu0 %v1862
        %v1864 = vpop.xlane.xlu0 %1863
        %v1865 = vsel %vm1789, %v1841, 0.0
        %1866 = vadd.xlane.f32.xlu0 %v1865
        %v1867 = vpop.xlane.xlu0 %1866
        %v1868 = vsel %vm1789, %v1843, 0.0
        %1869 = vadd.xlane.f32.xlu0 %v1868
        %v1870 = vpop.xlane.xlu0 %1869
        %v1871 = vsel %vm1789, %v1845, 0.0
        %1872 = vadd.xlane.f32.xlu0 %v1871
        %v1873 = vpop.xlane.xlu0 %1872
        %v1874 = vsel %vm1789, %v1847, 0.0
        %1875 = vadd.xlane.f32.xlu0 %v1874
        %v1876 = vpop.xlane.xlu0 %1875
        %v1877 = vsel %vm1789, %v1849, 0.0
        %1878 = vadd.xlane.f32.xlu0 %v1877
        %v1879 = vpop.xlane.xlu0 %1878
        %v1880 = vsel %vm1789, %v1851, 0.0
        %1881 = vadd.xlane.f32.xlu0 %v1880
        %v1882 = vpop.xlane.xlu0 %1881
        %v1883 = vsel %vm1789, %v1853, 0.0
        %1884 = vadd.xlane.f32.xlu0 %v1883
        %v1885 = vpop.xlane.xlu0 %1884
        %v1886 = vsel %vm1789, %v1855, 0.0
        %1887 = vadd.xlane.f32.xlu0 %v1886
        %v1888 = vpop.xlane.xlu0 %1887
        %v1889 = vsel %vm1789, %v1857, 0.0
        %1890 = vadd.xlane.f32.xlu0 %v1889
        %v1891 = vpop.xlane.xlu0 %1890
        %v1892 = vsel %vm1789, %v1859, 0.0
        %1893 = vadd.xlane.f32.xlu0 %v1892
        %v1894 = vpop.xlane.xlu0 %1893
        %v1895 = vsel %vm1789, %v1861, 0.0
        %1896 = vadd.xlane.f32.xlu0 %v1895
        %v1897 = vpop.xlane.xlu0 %1896
        %v1898 = vrcp.pop %v1864
        %v1899 = vrcp.pop %v1867
        %v1900 = vrcp.pop %v1870
        %v1901 = vrcp.pop %v1873
        %v1902 = vrcp.pop %v1876
        %v1903 = vrcp.pop %v1879
        %v1904 = vrcp.pop %v1882
        %v1905 = vrcp.pop %v1885
        %v1906 = vrcp.pop %v1888
        %v1907 = vrcp.pop %v1891
        %v1908 = vrcp.pop %v1894
        %v1909 = vrcp.pop %v1897
        %v1910 = vmul.f32 %v1839, %v1898
        %v1911 = vmul.f32 %v1841, %v1899
        %v1912 = vmul.f32 %v1843, %v1900
        %v1913 = vmul.f32 %v1845, %v1901
        %v1914 = vmul.f32 %v1847, %v1902
        %v1915 = vmul.f32 %v1849, %v1903
        %v1916 = vmul.f32 %v1851, %v1904
        %v1917 = vmul.f32 %v1853, %v1905
        %v1918 = vmul.f32 %v1855, %v1906
        %v1919 = vmul.f32 %v1857, %v1907
        %v1920 = vmul.f32 %v1859, %v1908
        %v1921 = vmul.f32 %v1861, %v1909
        %v1922 = vpack.c.bf16 %v1911, %v1910
        %v1923 = vpack.c.bf16 %v1912, %v1912
        %v1924 = vpack.c.bf16 %v1914, %v1913
        %v1925 = vpack.c.bf16 %v1915, %v1915
        %v1926 = vpack.c.bf16 %v1917, %v1916
        %v1927 = vpack.c.bf16 %v1918, %v1918
        %v1928 = vpack.c.bf16 %v1920, %v1919
        %v1929 = vpack.c.bf16 %v1921, %v1921
        %v1931 = vsel %vm1789, %v1922, 0
        %v1934 = vsel %vm1789, %v1923, 0
        %vm1936 = vcmask 1043456
        %v1938 = vsel %vm1936, %v1524, 0
        %1940 = vmatprep.subr.bf16.mxu0 0
        %1941 = vmatpush1.bf16.msra.mxu0 %v1523
        %1942 = vmatprep.subr.bf16.mxu0 0
        %1943 = vmatpush1.bf16.msra.mxu0 %v1938
        %1944 = vmatprep.subr.bf16.mxu0 0
        %1945 = vmatpush1.bf16.msra.mxu0 0
        %1946 = vmatprep.subr.bf16.mxu0 0
        %1947 = vmatpush1.bf16.msra.mxu0 0
        %1948 = vmatprep.subr.bf16.mxu0 0
        %1949 = vmatpush1.bf16.msra.mxu0 0
        %1950 = vmatprep.subr.bf16.mxu0 0
        %1951 = vmatpush1.bf16.msra.mxu0 0
        %1952 = vmatprep.subr.bf16.mxu0 0
        %1953 = vmatpush1.bf16.msra.mxu0 0
        %1954 = vmatprep.subr.bf16.mxu0 0
        %1955 = vmatpush1.bf16.msra.mxu0 0
        %1956 = vmatprep.subr.bf16.mxu0 0
        %1957 = vmatpush1.bf16.msra.mxu0 0
        %1958 = vmatprep.subr.bf16.mxu0 0
        %1959 = vmatpush1.bf16.msra.mxu0 0
        %1960 = vmatprep.subr.bf16.mxu0 0
        %1961 = vmatpush1.bf16.msra.mxu0 0
        %1962 = vmatprep.subr.bf16.mxu0 0
        %1963 = vmatpush1.bf16.msra.mxu0 0
        %1964 = vmatprep.subr.bf16.mxu0 0
        %1965 = vmatpush1.bf16.msra.mxu0 0
        %1966 = vmatprep.subr.bf16.mxu0 0
        %1967 = vmatpush1.bf16.msra.mxu0 0
        %1968 = vmatprep.subr.bf16.mxu0 0
        %1969 = vmatpush1.bf16.msra.mxu0 0
        %1970 = vmatprep.subr.bf16.mxu0 0
        %1971 = vmatpush1.bf16.msra.mxu0 0
        %1972 = vmatprep.mubr.bf16.mxu0 0
        %1973 = vmatmul.mubr.bf16.gmra.mrb[0].mxu0 %v1931
        %v1974 = vpop.f32.mrb[0].mxu0
        %v1975 = vadd.f32 0.0, %v1974
        %v1976 = vpop.f32.mrb[0].mxu0
        %v1977 = vpop.f32.mrb[0].mxu0
        %v1978 = vadd.f32 0.0, %v1977
        %v1979 = vpop.f32.mrb[0].mxu0
        %1980 = vmatprep.mubr.bf16.mxu0 0
        %1981 = vmatmul.mubr.bf16.gmra.mrb[0].mxu0 %v1934
        %v1982 = vpop.f32.mrb[0].mxu0
        %v1983 = vadd.f32 0.0, %v1982
        %v1984 = vpop.f32.mrb[0].mxu0
        %v1985 = vpop.f32.mrb[0].mxu0
        %v1986 = vpop.f32.mrb[0].mxu0
        %1987 = vdwg.mxu0
        %v1989 = vsel %vm1789, %v1924, 0
        %v1992 = vsel %vm1789, %v1925, 0
        %v1995 = vsel %vm1936, %v1526, 0
        %1997 = vmatprep.subr.bf16.mxu0 0
        %1998 = vmatpush1.bf16.msra.mxu0 %v1525
        %1999 = vmatprep.subr.bf16.mxu0 0
        %2000 = vmatpush1.bf16.msra.mxu0 %v1995
        %2001 = vmatprep.subr.bf16.mxu0 0
        %2002 = vmatpush1.bf16.msra.mxu0 0
        %2003 = vmatprep.subr.bf16.mxu0 0
        %2004 = vmatpush1.bf16.msra.mxu0 0
        %2005 = vmatprep.subr.bf16.mxu0 0
        %2006 = vmatpush1.bf16.msra.mxu0 0
        %2007 = vmatprep.subr.bf16.mxu0 0
        %2008 = vmatpush1.bf16.msra.mxu0 0
        %2009 = vmatprep.subr.bf16.mxu0 0
        %2010 = vmatpush1.bf16.msra.mxu0 0
        %2011 = vmatprep.subr.bf16.mxu0 0
        %2012 = vmatpush1.bf16.msra.mxu0 0
        %2013 = vmatprep.subr.bf16.mxu0 0
        %2014 = vmatpush1.bf16.msra.mxu0 0
        %2015 = vmatprep.subr.bf16.mxu0 0
        %2016 = vmatpush1.bf16.msra.mxu0 0
        %2017 = vmatprep.subr.bf16.mxu0 0
        %2018 = vmatpush1.bf16.msra.mxu0 0
        %2019 = vmatprep.subr.bf16.mxu0 0
        %2020 = vmatpush1.bf16.msra.mxu0 0
        %2021 = vmatprep.subr.bf16.mxu0 0
        %2022 = vmatpush1.bf16.msra.mxu0 0
        %2023 = vmatprep.subr.bf16.mxu0 0
        %2024 = vmatpush1.bf16.msra.mxu0 0
        %2025 = vmatprep.subr.bf16.mxu0 0
        %2026 = vmatpush1.bf16.msra.mxu0 0
        %2027 = vmatprep.subr.bf16.mxu0 0
        %2028 = vmatpush1.bf16.msra.mxu0 0
        %2029 = vmatprep.mubr.bf16.mxu0 0
        %2030 = vmatmul.mubr.bf16.gmra.mrb[0].mxu0 %v1989
        %v2031 = vpop.f32.mrb[0].mxu0
        %v2032 = vadd.f32 0.0, %v2031
        %v2033 = vpop.f32.mrb[0].mxu0
        %v2034 = vpop.f32.mrb[0].mxu0
        %v2035 = vadd.f32 0.0, %v2034
        %v2036 = vpop.f32.mrb[0].mxu0
        %2037 = vmatprep.mubr.bf16.mxu0 0
        %2038 = vmatmul.mubr.bf16.gmra.mrb[0].mxu0 %v1992
        %v2039 = vpop.f32.mrb[0].mxu0
        %v2040 = vadd.f32 0.0, %v2039
        %v2041 = vpop.f32.mrb[0].mxu0
        %v2042 = vpop.f32.mrb[0].mxu0
        %v2043 = vpop.f32.mrb[0].mxu0
        %2044 = vdwg.mxu0
        %v2046 = vsel %vm1789, %v1926, 0
        %v2049 = vsel %vm1789, %v1927, 0
        %v2052 = vsel %vm1936, %v1528, 0
        %2054 = vmatprep.subr.bf16.mxu0 0
        %2055 = vmatpush1.bf16.msra.mxu0 %v1527
        %2056 = vmatprep.subr.bf16.mxu0 0
        %2057 = vmatpush1.bf16.msra.mxu0 %v2052
        %2058 = vmatprep.subr.bf16.mxu0 0
        %2059 = vmatpush1.bf16.msra.mxu0 0
        %2060 = vmatprep.subr.bf16.mxu0 0
        %2061 = vmatpush1.bf16.msra.mxu0 0
        %2062 = vmatprep.subr.bf16.mxu0 0
        %2063 = vmatpush1.bf16.msra.mxu0 0
        %2064 = vmatprep.subr.bf16.mxu0 0
        %2065 = vmatpush1.bf16.msra.mxu0 0
        %2066 = vmatprep.subr.bf16.mxu0 0
        %2067 = vmatpush1.bf16.msra.mxu0 0
        %2068 = vmatprep.subr.bf16.mxu0 0
        %2069 = vmatpush1.bf16.msra.mxu0 0
        %2070 = vmatprep.subr.bf16.mxu0 0
        %2071 = vmatpush1.bf16.msra.mxu0 0
        %2072 = vmatprep.subr.bf16.mxu0 0
        %2073 = vmatpush1.bf16.msra.mxu0 0
        %2074 = vmatprep.subr.bf16.mxu0 0
        %2075 = vmatpush1.bf16.msra.mxu0 0
        %2076 = vmatprep.subr.bf16.mxu0 0
        %2077 = vmatpush1.bf16.msra.mxu0 0
        %2078 = vmatprep.subr.bf16.mxu0 0
        %2079 = vmatpush1.bf16.msra.mxu0 0
        %2080 = vmatprep.subr.bf16.mxu0 0
        %2081 = vmatpush1.bf16.msra.mxu0 0
        %2082 = vmatprep.subr.bf16.mxu0 0
        %2083 = vmatpush1.bf16.msra.mxu0 0
        %2084 = vmatprep.subr.bf16.mxu0 0
        %2085 = vmatpush1.bf16.msra.mxu0 0
        %2086 = vmatprep.mubr.bf16.mxu0 0
        %2087 = vmatmul.mubr.bf16.gmra.mrb[0].mxu0 %v2046
        %v2088 = vpop.f32.mrb[0].mxu0
        %v2089 = vadd.f32 0.0, %v2088
        %v2090 = vpop.f32.mrb[0].mxu0
        %v2091 = vpop.f32.mrb[0].mxu0
        %v2092 = vadd.f32 0.0, %v2091
        %v2093 = vpop.f32.mrb[0].mxu0
        %2094 = vmatprep.mubr.bf16.mxu0 0
        %2095 = vmatmul.mubr.bf16.gmra.mrb[0].mxu0 %v2049
        %v2096 = vpop.f32.mrb[0].mxu0
        %v2097 = vadd.f32 0.0, %v2096
        %v2098 = vpop.f32.mrb[0].mxu0
        %v2099 = vpop.f32.mrb[0].mxu0
        %v2100 = vpop.f32.mrb[0].mxu0
        %2101 = vdwg.mxu0
        %v2103 = vsel %vm1789, %v1928, 0
        %v2106 = vsel %vm1789, %v1929, 0
        %v2109 = vsel %vm1936, %v1530, 0
        %2111 = vmatprep.subr.bf16.mxu0 0
        %2112 = vmatpush1.bf16.msra.mxu0 %v1529
        %2113 = vmatprep.subr.bf16.mxu0 0
        %2114 = vmatpush1.bf16.msra.mxu0 %v2109
        %2115 = vmatprep.subr.bf16.mxu0 0
        %2116 = vmatpush1.bf16.msra.mxu0 0
        %2117 = vmatprep.subr.bf16.mxu0 0
        %2118 = vmatpush1.bf16.msra.mxu0 0
        %2119 = vmatprep.subr.bf16.mxu0 0
        %2120 = vmatpush1.bf16.msra.mxu0 0
        %2121 = vmatprep.subr.bf16.mxu0 0
        %2122 = vmatpush1.bf16.msra.mxu0 0
        %2123 = vmatprep.subr.bf16.mxu0 0
        %2124 = vmatpush1.bf16.msra.mxu0 0
        %2125 = vmatprep.subr.bf16.mxu0 0
        %2126 = vmatpush1.bf16.msra.mxu0 0
        %2127 = vmatprep.subr.bf16.mxu0 0
        %2128 = vmatpush1.bf16.msra.mxu0 0
        %2129 = vmatprep.subr.bf16.mxu0 0
        %2130 = vmatpush1.bf16.msra.mxu0 0
        %2131 = vmatprep.subr.bf16.mxu0 0
        %2132 = vmatpush1.bf16.msra.mxu0 0
        %2133 = vmatprep.subr.bf16.mxu0 0
        %2134 = vmatpush1.bf16.msra.mxu0 0
        %2135 = vmatprep.subr.bf16.mxu0 0
        %2136 = vmatpush1.bf16.msra.mxu0 0
        %2137 = vmatprep.subr.bf16.mxu0 0
        %2138 = vmatpush1.bf16.msra.mxu0 0
        %2139 = vmatprep.subr.bf16.mxu0 0
        %2140 = vmatpush1.bf16.msra.mxu0 0
        %2141 = vmatprep.subr.bf16.mxu0 0
        %2142 = vmatpush1.bf16.msra.mxu0 0
        %2143 = vmatprep.mubr.bf16.mxu0 0
        %2144 = vmatmul.mubr.bf16.gmra.mrb[0].mxu0 %v2103
        %v2145 = vpop.f32.mrb[0].mxu0
        %v2146 = vadd.f32 0.0, %v2145
        %v2147 = vpop.f32.mrb[0].mxu0
        %v2148 = vpop.f32.mrb[0].mxu0
        %v2149 = vadd.f32 0.0, %v2148
        %v2150 = vpop.f32.mrb[0].mxu0
        %2151 = vmatprep.mubr.bf16.mxu0 0
        %2152 = vmatmul.mubr.bf16.gmra.mrb[0].mxu0 %v2106
        %v2153 = vpop.f32.mrb[0].mxu0
        %v2154 = vadd.f32 0.0, %v2153
        %v2155 = vpop.f32.mrb[0].mxu0
        %v2156 = vpop.f32.mrb[0].mxu0
        %v2157 = vpop.f32.mrb[0].mxu0
        %2158 = vdwg.mxu0
        %v2159 = vpack.c.bf16 %v1978, %v1975
        %v2160 = vpack.c.bf16 %v1983, %v1983
        %v2161 = vpack.c.bf16 %v2035, %v2032
        %v2162 = vpack.c.bf16 %v2040, %v2040
        %v2163 = vpack.c.bf16 %v2092, %v2089
        %v2164 = vpack.c.bf16 %v2097, %v2097
        %v2165 = vpack.c.bf16 %v2149, %v2146
        %v2166 = vpack.c.bf16 %v2154, %v2154
        %v2167 = vld [vmem:[%s623] sm:$0xf]
        %v2168 = vld [vmem:[%s623 + $0x4] sm:$0xf]
        %v2169 = vld [vmem:[%s623 + $0x8] sm:$0xf]
        %v2170 = vld [vmem:[%s623 + $0xc] sm:$0xf]
        %v2172 = vsel %vm1531, %v2159, 0
        %v2175 = vsel %vm1531, %v2160, 0
        %v2178 = vsel %vm1936, %v2167, 0
        %2180 = vmatprep.subr.bf16.mxu0 0
        %2181 = vmatpush1.bf16.msra.mxu0 %v2178
        %2182 = vmatprep.subr.bf16.mxu0 0
        %2183 = vmatpush1.bf16.msra.mxu0 0
        %2184 = vmatprep.subr.bf16.mxu0 0
        %2185 = vmatpush1.bf16.msra.mxu0 0
        %2186 = vmatprep.subr.bf16.mxu0 0
        %2187 = vmatpush1.bf16.msra.mxu0 0
        %2188 = vmatprep.subr.bf16.mxu0 0
        %2189 = vmatpush1.bf16.msra.mxu0 0
        %2190 = vmatprep.subr.bf16.mxu0 0
        %2191 = vmatpush1.bf16.msra.mxu0 0
        %2192 = vmatprep.subr.bf16.mxu0 0
        %2193 = vmatpush1.bf16.msra.mxu0 0
        %2194 = vmatprep.subr.bf16.mxu0 0
        %2195 = vmatpush1.bf16.msra.mxu0 0
        %2196 = vmatprep.subr.bf16.mxu0 0
        %2197 = vmatpush1.bf16.msra.mxu0 0
        %2198 = vmatprep.subr.bf16.mxu0 0
        %2199 = vmatpush1.bf16.msra.mxu0 0
        %2200 = vmatprep.subr.bf16.mxu0 0
        %2201 = vmatpush1.bf16.msra.mxu0 0
        %2202 = vmatprep.subr.bf16.mxu0 0
        %2203 = vmatpush1.bf16.msra.mxu0 0
        %2204 = vmatprep.subr.bf16.mxu0 0
        %2205 = vmatpush1.bf16.msra.mxu0 0
        %2206 = vmatprep.subr.bf16.mxu0 0
        %2207 = vmatpush1.bf16.msra.mxu0 0
        %2208 = vmatprep.subr.bf16.mxu0 0
        %2209 = vmatpush1.bf16.msra.mxu0 0
        %2210 = vmatprep.subr.bf16.mxu0 0
        %2211 = vmatpush1.bf16.msra.mxu0 0
        %2212 = vmatprep.mubr.bf16.mxu0 0
        %2213 = vmatmul.mubr.bf16.gmra.mrb[0].mxu0 %v2172
        %v2214 = vpop.f32.mrb[0].mxu0
        %v2215 = vadd.f32 0.0, %v2214
        %v2216 = vpop.f32.mrb[0].mxu0
        %v2217 = vpop.f32.mrb[0].mxu0
        %v2218 = vadd.f32 0.0, %v2217
        %v2219 = vpop.f32.mrb[0].mxu0
        %2220 = vmatprep.mubr.bf16.mxu0 0
        %2221 = vmatmul.mubr.bf16.gmra.mrb[0].mxu0 %v2175
        %v2222 = vpop.f32.mrb[0].mxu0
        %v2223 = vadd.f32 0.0, %v2222
        %v2224 = vpop.f32.mrb[0].mxu0
        %v2225 = vpop.f32.mrb[0].mxu0
        %v2226 = vpop.f32.mrb[0].mxu0
        %2227 = vdwg.mxu0
        %v2229 = vsel %vm1531, %v2161, 0
        %v2232 = vsel %vm1531, %v2162, 0
        %v2235 = vsel %vm1936, %v2168, 0
        %2237 = vmatprep.subr.bf16.mxu0 0
        %2238 = vmatpush1.bf16.msra.mxu0 %v2235
        %2239 = vmatprep.subr.bf16.mxu0 0
        %2240 = vmatpush1.bf16.msra.mxu0 0
        %2241 = vmatprep.subr.bf16.mxu0 0
        %2242 = vmatpush1.bf16.msra.mxu0 0
        %2243 = vmatprep.subr.bf16.mxu0 0
        %2244 = vmatpush1.bf16.msra.mxu0 0
        %2245 = vmatprep.subr.bf16.mxu0 0
        %2246 = vmatpush1.bf16.msra.mxu0 0
        %2247 = vmatprep.subr.bf16.mxu0 0
        %2248 = vmatpush1.bf16.msra.mxu0 0
        %2249 = vmatprep.subr.bf16.mxu0 0
        %2250 = vmatpush1.bf16.msra.mxu0 0
        %2251 = vmatprep.subr.bf16.mxu0 0
        %2252 = vmatpush1.bf16.msra.mxu0 0
        %2253 = vmatprep.subr.bf16.mxu0 0
        %2254 = vmatpush1.bf16.msra.mxu0 0
        %2255 = vmatprep.subr.bf16.mxu0 0
        %2256 = vmatpush1.bf16.msra.mxu0 0
        %2257 = vmatprep.subr.bf16.mxu0 0
        %2258 = vmatpush1.bf16.msra.mxu0 0
        %2259 = vmatprep.subr.bf16.mxu0 0
        %2260 = vmatpush1.bf16.msra.mxu0 0
        %2261 = vmatprep.subr.bf16.mxu0 0
        %2262 = vmatpush1.bf16.msra.mxu0 0
        %2263 = vmatprep.subr.bf16.mxu0 0
        %2264 = vmatpush1.bf16.msra.mxu0 0
        %2265 = vmatprep.subr.bf16.mxu0 0
        %2266 = vmatpush1.bf16.msra.mxu0 0
        %2267 = vmatprep.subr.bf16.mxu0 0
        %2268 = vmatpush1.bf16.msra.mxu0 0
        %2269 = vmatprep.mubr.bf16.mxu0 0
        %2270 = vmatmul.mubr.bf16.gmra.mrb[0].mxu0 %v2229
        %v2271 = vpop.f32.mrb[0].mxu0
        %v2272 = vadd.f32 0.0, %v2271
        %v2273 = vpop.f32.mrb[0].mxu0
        %v2274 = vpop.f32.mrb[0].mxu0
        %v2275 = vadd.f32 0.0, %v2274
        %v2276 = vpop.f32.mrb[0].mxu0
        %2277 = vmatprep.mubr.bf16.mxu0 0
        %2278 = vmatmul.mubr.bf16.gmra.mrb[0].mxu0 %v2232
        %v2279 = vpop.f32.mrb[0].mxu0
        %v2280 = vadd.f32 0.0, %v2279
        %v2281 = vpop.f32.mrb[0].mxu0
        %v2282 = vpop.f32.mrb[0].mxu0
        %v2283 = vpop.f32.mrb[0].mxu0
        %2284 = vdwg.mxu0
        %v2286 = vsel %vm1531, %v2163, 0
        %v2289 = vsel %vm1531, %v2164, 0
        %v2292 = vsel %vm1936, %v2169, 0
        %2294 = vmatprep.subr.bf16.mxu0 0
        %2295 = vmatpush1.bf16.msra.mxu0 %v2292
        %2296 = vmatprep.subr.bf16.mxu0 0
        %2297 = vmatpush1.bf16.msra.mxu0 0
        %2298 = vmatprep.subr.bf16.mxu0 0
        %2299 = vmatpush1.bf16.msra.mxu0 0
        %2300 = vmatprep.subr.bf16.mxu0 0
        %2301 = vmatpush1.bf16.msra.mxu0 0
        %2302 = vmatprep.subr.bf16.mxu0 0
        %2303 = vmatpush1.bf16.msra.mxu0 0
        %2304 = vmatprep.subr.bf16.mxu0 0
        %2305 = vmatpush1.bf16.msra.mxu0 0
        %2306 = vmatprep.subr.bf16.mxu0 0
        %2307 = vmatpush1.bf16.msra.mxu0 0
        %2308 = vmatprep.subr.bf16.mxu0 0
        %2309 = vmatpush1.bf16.msra.mxu0 0
        %2310 = vmatprep.subr.bf16.mxu0 0
        %2311 = vmatpush1.bf16.msra.mxu0 0
        %2312 = vmatprep.subr.bf16.mxu0 0
        %2313 = vmatpush1.bf16.msra.mxu0 0
        %2314 = vmatprep.subr.bf16.mxu0 0
        %2315 = vmatpush1.bf16.msra.mxu0 0
        %2316 = vmatprep.subr.bf16.mxu0 0
        %2317 = vmatpush1.bf16.msra.mxu0 0
        %2318 = vmatprep.subr.bf16.mxu0 0
        %2319 = vmatpush1.bf16.msra.mxu0 0
        %2320 = vmatprep.subr.bf16.mxu0 0
        %2321 = vmatpush1.bf16.msra.mxu0 0
        %2322 = vmatprep.subr.bf16.mxu0 0
        %2323 = vmatpush1.bf16.msra.mxu0 0
        %2324 = vmatprep.subr.bf16.mxu0 0
        %2325 = vmatpush1.bf16.msra.mxu0 0
        %2326 = vmatprep.mubr.bf16.mxu0 0
        %2327 = vmatmul.mubr.bf16.gmra.mrb[0].mxu0 %v2286
        %v2328 = vpop.f32.mrb[0].mxu0
        %v2329 = vadd.f32 0.0, %v2328
        %v2330 = vpop.f32.mrb[0].mxu0
        %v2331 = vpop.f32.mrb[0].mxu0
        %v2332 = vadd.f32 0.0, %v2331
        %v2333 = vpop.f32.mrb[0].mxu0
        %2334 = vmatprep.mubr.bf16.mxu0 0
        %2335 = vmatmul.mubr.bf16.gmra.mrb[0].mxu0 %v2289
        %v2336 = vpop.f32.mrb[0].mxu0
        %v2337 = vadd.f32 0.0, %v2336
        %v2338 = vpop.f32.mrb[0].mxu0
        %v2339 = vpop.f32.mrb[0].mxu0
        %v2340 = vpop.f32.mrb[0].mxu0
        %2341 = vdwg.mxu0
        %v2343 = vsel %vm1531, %v2165, 0
        %v2346 = vsel %vm1531, %v2166, 0
        %v2349 = vsel %vm1936, %v2170, 0
        %2351 = vmatprep.subr.bf16.mxu0 0
        %2352 = vmatpush1.bf16.msra.mxu0 %v2349
        %2353 = vmatprep.subr.bf16.mxu0 0
        %2354 = vmatpush1.bf16.msra.mxu0 0
        %2355 = vmatprep.subr.bf16.mxu0 0
        %2356 = vmatpush1.bf16.msra.mxu0 0
        %2357 = vmatprep.subr.bf16.mxu0 0
        %2358 = vmatpush1.bf16.msra.mxu0 0
        %2359 = vmatprep.subr.bf16.mxu0 0
        %2360 = vmatpush1.bf16.msra.mxu0 0
        %2361 = vmatprep.subr.bf16.mxu0 0
        %2362 = vmatpush1.bf16.msra.mxu0 0
        %2363 = vmatprep.subr.bf16.mxu0 0
        %2364 = vmatpush1.bf16.msra.mxu0 0
        %2365 = vmatprep.subr.bf16.mxu0 0
        %2366 = vmatpush1.bf16.msra.mxu0 0
        %2367 = vmatprep.subr.bf16.mxu0 0
        %2368 = vmatpush1.bf16.msra.mxu0 0
        %2369 = vmatprep.subr.bf16.mxu0 0
        %2370 = vmatpush1.bf16.msra.mxu0 0
        %2371 = vmatprep.subr.bf16.mxu0 0
        %2372 = vmatpush1.bf16.msra.mxu0 0
        %2373 = vmatprep.subr.bf16.mxu0 0
        %2374 = vmatpush1.bf16.msra.mxu0 0
        %2375 = vmatprep.subr.bf16.mxu0 0
        %2376 = vmatpush1.bf16.msra.mxu0 0
        %2377 = vmatprep.subr.bf16.mxu0 0
        %2378 = vmatpush1.bf16.msra.mxu0 0
        %2379 = vmatprep.subr.bf16.mxu0 0
        %2380 = vmatpush1.bf16.msra.mxu0 0
        %2381 = vmatprep.subr.bf16.mxu0 0
        %2382 = vmatpush1.bf16.msra.mxu0 0
        %2383 = vmatprep.mubr.bf16.mxu0 0
        %2384 = vmatmul.mubr.bf16.gmra.mrb[0].mxu0 %v2343
        %v2385 = vpop.f32.mrb[0].mxu0
        %v2386 = vadd.f32 0.0, %v2385
        %v2387 = vpop.f32.mrb[0].mxu0
        %v2388 = vpop.f32.mrb[0].mxu0
        %v2389 = vadd.f32 0.0, %v2388
        %v2390 = vpop.f32.mrb[0].mxu0
        %2391 = vmatprep.mubr.bf16.mxu0 0
        %2392 = vmatmul.mubr.bf16.gmra.mrb[0].mxu0 %v2346
        %v2393 = vpop.f32.mrb[0].mxu0
        %v2394 = vadd.f32 0.0, %v2393
        %v2395 = vpop.f32.mrb[0].mxu0
        %v2396 = vpop.f32.mrb[0].mxu0
        %v2397 = vpop.f32.mrb[0].mxu0
        %2398 = vdwg.mxu0
        %v2399 = vsel %vm670, %v2215, 0.0
        %v2400 = vsel %vm670, %v2272, 0.0
        %v2401 = vadd.f32 %v2399, %v2400
        %v2402 = vsel %vm670, %v2329, 0.0
        %v2403 = vadd.f32 %v2401, %v2402
        %v2404 = vsel %vm670, %v2386, 0.0
        %v2405 = vadd.f32 %v2403, %v2404
        %v2406 = vsel %vm670, %v2218, 0.0
        %v2407 = vsel %vm670, %v2275, 0.0
        %v2408 = vadd.f32 %v2406, %v2407
        %v2409 = vsel %vm670, %v2332, 0.0
        %v2410 = vadd.f32 %v2408, %v2409
        %v2411 = vsel %vm670, %v2389, 0.0
        %v2412 = vadd.f32 %v2410, %v2411
        %v2413 = vsel %vm670, %v2223, 0.0
        %v2414 = vsel %vm670, %v2280, 0.0
        %v2415 = vadd.f32 %v2413, %v2414
        %v2416 = vsel %vm670, %v2337, 0.0
        %v2417 = vadd.f32 %v2415, %v2416
        %v2418 = vsel %vm670, %v2394, 0.0
        %v2419 = vadd.f32 %v2417, %v2418
        %v2420 = vadd.f32 %v667, %v2405
        %v2421 = vadd.f32 %v668, %v2412
        %v2422 = vadd.f32 %v669, %v2419
        %v2423 = vld [vmem:[%s626] sm:$0x1]
        %v2425 = vlaneseq
        %v2426 = vshrl.u32 %v2425, 7
        %v2427 = vsub.s32 0, %v2426
        %v2428 = vrot.slane %v2423, %v2427
        %v2430 = vadd.f32 %v2420, %v2428
        %v2431 = vadd.f32 %v2421, %v2428
        %v2432 = vadd.f32 %v2422, %v2428
        %v2433 = vsel %vm670, %v2430, 0.0
        %2434 = vadd.xlane.f32.xlu0 %v2433
        %v2435 = vpop.xlane.xlu0 %2434
        %v2436 = vsel %vm670, %v2431, 0.0
        %2437 = vadd.xlane.f32.xlu0 %v2436
        %v2438 = vpop.xlane.xlu0 %2437
        %v2439 = vsel %vm670, %v2432, 0.0
        %2440 = vadd.xlane.f32.xlu0 %v2439
        %v2441 = vpop.xlane.xlu0 %2440
        %v2442 = vmul.f32 %v2435, %v680
        %v2443 = vmul.f32 %v2438, %v680
        %v2444 = vmul.f32 %v2441, %v680
        %v2445 = vsub.f32 %v2430, %v2442
        %v2446 = vsub.f32 %v2431, %v2443
        %v2447 = vsub.f32 %v2432, %v2444
        %v2448 = vmul.f32 %v2445, %v2445
        %v2449 = vmul.f32 %v2446, %v2446
        %v2450 = vmul.f32 %v2447, %v2447
        %v2451 = vsel %vm670, %v2448, 0.0
        %2452 = vadd.xlane.f32.xlu0 %v2451
        %v2453 = vpop.xlane.xlu0 %2452
        %v2454 = vsel %vm670, %v2449, 0.0
        %2455 = vadd.xlane.f32.xlu0 %v2454
        %v2456 = vpop.xlane.xlu0 %2455
        %v2457 = vsel %vm670, %v2450, 0.0
        %2458 = vadd.xlane.f32.xlu0 %v2457
        %v2459 = vpop.xlane.xlu0 %2458
        %v2460 = vmul.f32 %v2453, %v680
        %v2461 = vmul.f32 %v2456, %v680
        %v2462 = vmul.f32 %v2459, %v680
        %v2463 = vadd.f32 %v2460, 1e-05
        %v2464 = vadd.f32 %v2461, 1e-05
        %v2465 = vadd.f32 %v2462, 1e-05
        %v2466 = vrsqrt.pop %v2463
        %v2467 = vrsqrt.pop %v2464
        %v2468 = vrsqrt.pop %v2465
        %v2469 = vmul.f32 %v2445, %v2466
        %v2470 = vmul.f32 %v2446, %v2467
        %v2471 = vmul.f32 %v2447, %v2468
        %v2472 = vld [vmem:[%s635] sm:$0x1]
        %v2474 = vlaneseq
        %v2475 = vshrl.u32 %v2474, 7
        %v2476 = vsub.s32 0, %v2475
        %v2477 = vrot.slane %v2472, %v2476
        %v2479 = vmul.f32 %v2469, %v2477
        %v2480 = vmul.f32 %v2470, %v2477
        %v2481 = vmul.f32 %v2471, %v2477
        %v2482 = vld [vmem:[%s638] sm:$0x1]
        %v2484 = vlaneseq
        %v2485 = vshrl.u32 %v2484, 7
        %v2486 = vsub.s32 0, %v2485
        %v2487 = vrot.slane %v2482, %v2486
        %v2489 = vadd.f32 %v2479, %v2487
        %v2490 = vadd.f32 %v2480, %v2487
        %v2491 = vadd.f32 %v2481, %v2487
        %v2492 = vpack.c.bf16 %v2490, %v2489
        %v2493 = vpack.c.bf16 %v2491, %v2491
        %v2494 = vld [vmem:[%s643] sm:$0xf]
        %v2495 = vld [vmem:[%s643 + $0x4] sm:$0xf]
        %v2496 = vld [vmem:[%s643 + $0x8] sm:$0xf]
        %v2497 = vld [vmem:[%s643 + $0xc] sm:$0xf]
        %v2498 = vld [vmem:[%s646] sm:$0x1]
        %v2500 = vlaneseq
        %v2501 = vshrl.u32 %v2500, 7
        %v2502 = vsub.s32 0, %v2501
        %v2503 = vrot.slane %v2498, %v2502
        %v2509 = vunpack.c.l.b16 %v2494
        %v2510 = vunpack.c.l.b16 %v2495
        %v2511 = vunpack.c.l.b16 %v2496
        %v2512 = vunpack.c.l.b16 %v2497
        %v2513 = vpack.c.b16 %v2510, %v2509
        %v2514 = vpack.c.b16 %v2512, %v2511
        %v2518 = vsel %vm670, %v2492, 0
        %v2521 = vsel %vm670, %v2493, 0
        %2523 = vmatprep.subr.bf16.mxu0 0
        %2524 = vmatpush1.bf16.msra.mxu0 %v2513
        %2525 = vmatprep.subr.bf16.mxu0 0
        %2526 = vmatpush1.bf16.msra.mxu0 %v2514
        %2527 = vmatprep.subr.bf16.mxu0 0
        %2528 = vmatpush1.bf16.msra.mxu0 0
        %2529 = vmatprep.subr.bf16.mxu0 0
        %2530 = vmatpush1.bf16.msra.mxu0 0
        %2531 = vmatprep.subr.bf16.mxu0 0
        %2532 = vmatpush1.bf16.msra.mxu0 0
        %2533 = vmatprep.subr.bf16.mxu0 0
        %2534 = vmatpush1.bf16.msra.mxu0 0
        %2535 = vmatprep.subr.bf16.mxu0 0
        %2536 = vmatpush1.bf16.msra.mxu0 0
        %2537 = vmatprep.subr.bf16.mxu0 0
        %2538 = vmatpush1.bf16.msra.mxu0 0
        %2539 = vmatprep.subr.bf16.mxu0 0
        %2540 = vmatpush1.bf16.msra.mxu0 0
        %2541 = vmatprep.subr.bf16.mxu0 0
        %2542 = vmatpush1.bf16.msra.mxu0 0
        %2543 = vmatprep.subr.bf16.mxu0 0
        %2544 = vmatpush1.bf16.msra.mxu0 0
        %2545 = vmatprep.subr.bf16.mxu0 0
        %2546 = vmatpush1.bf16.msra.mxu0 0
        %2547 = vmatprep.subr.bf16.mxu0 0
        %2548 = vmatpush1.bf16.msra.mxu0 0
        %2549 = vmatprep.subr.bf16.mxu0 0
        %2550 = vmatpush1.bf16.msra.mxu0 0
        %2551 = vmatprep.subr.bf16.mxu0 0
        %2552 = vmatpush1.bf16.msra.mxu0 0
        %2553 = vmatprep.subr.bf16.mxu0 0
        %2554 = vmatpush1.bf16.msra.mxu0 0
        %2555 = vmatprep.mubr.bf16.mxu0 0
        %2556 = vmatmul.mubr.bf16.gmra.mrb[0].mxu0 %v2518
        %v2557 = vpop.f32.mrb[0].mxu0
        %v2558 = vadd.f32 %v2503, %v2557
        %v2559 = vpop.f32.mrb[0].mxu0
        %v2560 = vpop.f32.mrb[0].mxu0
        %v2561 = vadd.f32 %v2503, %v2560
        %v2562 = vpop.f32.mrb[0].mxu0
        %2563 = vmatprep.mubr.bf16.mxu0 0
        %2564 = vmatmul.mubr.bf16.gmra.mrb[0].mxu0 %v2521
        %v2565 = vpop.f32.mrb[0].mxu0
        %v2566 = vadd.f32 %v2503, %v2565
        %v2567 = vpop.f32.mrb[0].mxu0
        %v2568 = vpop.f32.mrb[0].mxu0
        %v2569 = vpop.f32.mrb[0].mxu0
        %2570 = vdwg.mxu0
        %v2571 = vmul.f32 %v2558, 0.5
        %v2572 = vmul.f32 %v2561, 0.5
        %v2573 = vmul.f32 %v2566, 0.5
        %v2574 = vmul.f32 %v2558, 0.044715
        %v2575 = vmul.f32 %v2561, 0.044715
        %v2576 = vmul.f32 %v2566, 0.044715
        %v2577 = vmul.f32 %v2574, %v2558
        %v2578 = vmul.f32 %v2575, %v2561
        %v2579 = vmul.f32 %v2576, %v2566
        %v2580 = vmul.f32 %v2577, %v2558
        %v2581 = vmul.f32 %v2578, %v2561
        %v2582 = vmul.f32 %v2579, %v2566
        %v2583 = vadd.f32 %v2558, %v2580
        %v2584 = vadd.f32 %v2561, %v2581
        %v2585 = vadd.f32 %v2566, %v2582
        %v2586 = vmul.f32 %v2583, 0.7978846
        %v2587 = vmul.f32 %v2584, 0.7978846
        %v2588 = vmul.f32 %v2585, 0.7978846
        %v2589 = vtanh.pop %v2586
        %v2590 = vtanh.pop %v2587
        %v2591 = vtanh.pop %v2588
        %v2592 = vadd.f32 %v2589, 1.0
        %v2593 = vadd.f32 %v2590, 1.0
        %v2594 = vadd.f32 %v2591, 1.0
        %v2595 = vmul.f32 %v2571, %v2592
        %v2596 = vmul.f32 %v2572, %v2593
        %v2597 = vmul.f32 %v2573, %v2594
        %v2598 = vpack.c.bf16 %v2596, %v2595
        %v2599 = vpack.c.bf16 %v2597, %v2597
        %v2600 = vld [vmem:[%s651] sm:$0xf]
        %v2601 = vld [vmem:[%s651 + $0x4] sm:$0xf]
        %v2602 = vld [vmem:[%s651 + $0x8] sm:$0xf]
        %v2603 = vld [vmem:[%s651 + $0xc] sm:$0xf]
        %v2604 = vld [vmem:[%s651 + $0x10] sm:$0xf]
        %v2605 = vld [vmem:[%s651 + $0x14] sm:$0xf]
        %v2606 = vld [vmem:[%s651 + $0x18] sm:$0xf]
        %v2607 = vld [vmem:[%s651 + $0x1c] sm:$0xf]
        %v2608 = vld [vmem:[%s654] sm:$0x1]
        %v2610 = vlaneseq
        %v2611 = vshrl.u32 %v2610, 7
        %v2612 = vsub.s32 0, %v2611
        %v2613 = vrot.slane %v2608, %v2612
        %v2623 = vunpack.c.l.b16 %v2600
        %v2624 = vunpack.c.l.b16 %v2601
        %v2625 = vunpack.c.l.b16 %v2602
        %v2626 = vunpack.c.l.b16 %v2603
        %v2627 = vunpack.c.l.b16 %v2604
        %v2628 = vunpack.c.l.b16 %v2605
        %v2629 = vunpack.c.l.b16 %v2606
        %v2630 = vunpack.c.l.b16 %v2607
        %v2631 = vpack.c.b16 %v2624, %v2623
        %v2632 = vpack.c.b16 %v2626, %v2625
        %v2633 = vpack.c.b16 %v2628, %v2627
        %v2634 = vpack.c.b16 %v2630, %v2629
        %vm2639 = vcmask 523264
        %v2641 = vsel %vm2639, %v2598, 0
        %v2644 = vsel %vm2639, %v2599, 0
        %2646 = vmatprep.subr.bf16.mxu0 0
        %2647 = vmatpush1.bf16.msra.mxu0 %v2631
        %2648 = vmatprep.subr.bf16.mxu0 0
        %2649 = vmatpush1.bf16.msra.mxu0 %v2632
        %2650 = vmatprep.subr.bf16.mxu0 0
        %2651 = vmatpush1.bf16.msra.mxu0 %v2633
        %2652 = vmatprep.subr.bf16.mxu0 0
        %2653 = vmatpush1.bf16.msra.mxu0 %v2634
        %2654 = vmatprep.subr.bf16.mxu0 0
        %2655 = vmatpush1.bf16.msra.mxu0 0
        %2656 = vmatprep.subr.bf16.mxu0 0
        %2657 = vmatpush1.bf16.msra.mxu0 0
        %2658 = vmatprep.subr.bf16.mxu0 0
        %2659 = vmatpush1.bf16.msra.mxu0 0
        %2660 = vmatprep.subr.bf16.mxu0 0
        %2661 = vmatpush1.bf16.msra.mxu0 0
        %2662 = vmatprep.subr.bf16.mxu0 0
        %2663 = vmatpush1.bf16.msra.mxu0 0
        %2664 = vmatprep.subr.bf16.mxu0 0
        %2665 = vmatpush1.bf16.msra.mxu0 0
        %2666 = vmatprep.subr.bf16.mxu0 0
        %2667 = vmatpush1.bf16.msra.mxu0 0
        %2668 = vmatprep.subr.bf16.mxu0 0
        %2669 = vmatpush1.bf16.msra.mxu0 0
        %2670 = vmatprep.subr.bf16.mxu0 0
        %2671 = vmatpush1.bf16.msra.mxu0 0
        %2672 = vmatprep.subr.bf16.mxu0 0
        %2673 = vmatpush1.bf16.msra.mxu0 0
        %2674 = vmatprep.subr.bf16.mxu0 0
        %2675 = vmatpush1.bf16.msra.mxu0 0
        %2676 = vmatprep.subr.bf16.mxu0 0
        %2677 = vmatpush1.bf16.msra.mxu0 0
        %2678 = vmatprep.mubr.bf16.mxu0 0
        %2679 = vmatmul.mubr.bf16.gmra.mrb[0].mxu0 %v2641
        %v2680 = vpop.f32.mrb[0].mxu0
        %v2681 = vadd.f32 %v2613, %v2680
        %v2682 = vpop.f32.mrb[0].mxu0
        %v2683 = vpop.f32.mrb[0].mxu0
        %v2684 = vadd.f32 %v2613, %v2683
        %v2685 = vpop.f32.mrb[0].mxu0
        %2686 = vmatprep.mubr.bf16.mxu0 0
        %2687 = vmatmul.mubr.bf16.gmra.mrb[0].mxu0 %v2644
        %v2688 = vpop.f32.mrb[0].mxu0
        %v2689 = vadd.f32 %v2613, %v2688
        %v2690 = vpop.f32.mrb[0].mxu0
        %v2691 = vpop.f32.mrb[0].mxu0
        %v2692 = vpop.f32.mrb[0].mxu0
        %2693 = vdwg.mxu0
        %v2694 = vadd.f32 %v2430, %v2681
        %v2695 = vadd.f32 %v2431, %v2684
        %v2696 = vadd.f32 %v2432, %v2689
        %2697 = vst.msk [vmem:[#allocation2] sm:$0xff] %vm670, %v2694
        %2698 = vst.msk [vmem:[#allocation2 + $0x8] sm:$0xff] %vm670, %v2695
        %2699 = vst.msk [vmem:[#allocation2 + $0x10] sm:$0xff] %vm670, %v2696
        %p2700 = scmp.eq.s32.totalorder %s33, 1
        // Predicated region
        $region81: #{tpu_custom_call.1} parent=75 // pred_check
          %p2701 = pneg %p2700
        $region82: #{tpu_custom_call.1} parent=75 // pred_check_branch
          %2703 = sbr.rel (%p2701) target = $region84
        $region83: #{tpu_custom_call.1} parent=75 // pred_region
          %v2704 = vpack.c.bf16 %v2694, %v2694
          %v2705 = vld [vmem:[%s12] sm:$0xf]
          %v2706 = vld [vmem:[%s12 + $0x4] sm:$0xf]
          %v2707 = vld [vmem:[%s12 + $0x8] sm:$0xf]
          %v2708 = vld [vmem:[%s12 + $0xc] sm:$0xf]
          %v2709 = vld [vmem:[%s13] sm:$0x1]
          %v2714 = vunpack.c.l.b16 %v2705
          %v2715 = vunpack.c.l.b16 %v2706
          %v2716 = vunpack.c.l.b16 %v2707
          %v2717 = vunpack.c.l.b16 %v2708
          %v2718 = vpack.c.b16 %v2715, %v2714
          %v2719 = vpack.c.b16 %v2717, %v2716
          %v2723 = vsel %vm670, %v2704, 0
          %2725 = vmatprep.subr.bf16.mxu0 0
          %2726 = vmatpush1.bf16.msra.mxu0 %v2718
          %2727 = vmatprep.subr.bf16.mxu0 0
          %2728 = vmatpush1.bf16.msra.mxu0 %v2719
          %2729 = vmatprep.subr.bf16.mxu0 0
          %2730 = vmatpush1.bf16.msra.mxu0 0
          %2731 = vmatprep.subr.bf16.mxu0 0
          %2732 = vmatpush1.bf16.msra.mxu0 0
          %2733 = vmatprep.subr.bf16.mxu0 0
          %2734 = vmatpush1.bf16.msra.mxu0 0
          %2735 = vmatprep.subr.bf16.mxu0 0
          %2736 = vmatpush1.bf16.msra.mxu0 0
          %2737 = vmatprep.subr.bf16.mxu0 0
          %2738 = vmatpush1.bf16.msra.mxu0 0
          %2739 = vmatprep.subr.bf16.mxu0 0
          %2740 = vmatpush1.bf16.msra.mxu0 0
          %2741 = vmatprep.subr.bf16.mxu0 0
          %2742 = vmatpush1.bf16.msra.mxu0 0
          %2743 = vmatprep.subr.bf16.mxu0 0
          %2744 = vmatpush1.bf16.msra.mxu0 0
          %2745 = vmatprep.subr.bf16.mxu0 0
          %2746 = vmatpush1.bf16.msra.mxu0 0
          %2747 = vmatprep.subr.bf16.mxu0 0
          %2748 = vmatpush1.bf16.msra.mxu0 0
          %2749 = vmatprep.subr.bf16.mxu0 0
          %2750 = vmatpush1.bf16.msra.mxu0 0
          %2751 = vmatprep.subr.bf16.mxu0 0
          %2752 = vmatpush1.bf16.msra.mxu0 0
          %2753 = vmatprep.subr.bf16.mxu0 0
          %2754 = vmatpush1.bf16.msra.mxu0 0
          %2755 = vmatprep.subr.bf16.mxu0 0
          %2756 = vmatpush1.bf16.msra.mxu0 0
          %2757 = vmatprep.mubr.bf16.mxu0 0
          %2758 = vmatmul.mubr.bf16.gmra.mrb[0].mxu0 %v2723
          %v2759 = vpop.f32.mrb[0].mxu0
          %v2760 = vadd.f32 %v2709, %v2759
          %v2761 = vpop.f32.mrb[0].mxu0
          %v2762 = vpop.f32.mrb[0].mxu0
          %v2763 = vpop.f32.mrb[0].mxu0
          %2764 = vdwg.mxu0
          %v2765 = vmax.f32 %v2760, 0.0
          %2766 = vst [vmem:[%s608] sm:$0x1] %v2765
        $region84: #{tpu_custom_call.1} parent=75 // pred_fallthru
          _
        %s2767 = sand.u32 %s402, 1
        %s2768 = scalar_lea.sflag [#allocation4], %s2767
        %s2769 = sand.u32 %s402, 1
        %s2770 = scalar_lea.vmem [#allocation3], %s2769
        // Predicated region
        $region85: #{tpu_custom_call.1} parent=75 // pred_check
          %p2771 = pneg %p412
        $region86: #{tpu_custom_call.1} parent=75 // pred_check_branch
          %2773 = sbr.rel (%p2771) target = $region88
        $region87: #{tpu_custom_call.1} parent=75 // pred_region
          %s2775 = ssub.s32 16, 16
          %2776 = vsyncadd %s2768, %s2775
          %s2777 = smul.addr %s32, 16
          %s2778 = scalar_lea.hbm %s14, %s2777
          %s2780 = sshll.u32 %s2770, 4
          %s2781 = int_to_ptr.vmem [resolvable:$true] %s2780
          %2783 = dma.vmem_to_hbm [thread:$0]  %s2781, 16, %s2778, %s2768
        $region88: #{tpu_custom_call.1} parent=75 // pred_fallthru
          _
      $region76: #{tpu_custom_call.1} parent=5 // pred_fallthru
        _
      %p2784 = scmp.le.s32.totalorder 2, %s23
      // Predicated region
      $region89: #{tpu_custom_call.1} parent=5 // pred_check
        %p2785 = pneg %p2784
      $region90: #{tpu_custom_call.1} parent=5 // pred_check_branch
        %2787 = sbr.rel (%p2785) target = $region92
      $region91: #{tpu_custom_call.1} parent=5 // pred_region
        %s2788 = ssub.s32 %s23, 2
        // Predicated region
        $region93: #{tpu_custom_call.1} parent=91 // pred_check
          %p2789 = pneg %p418
        $region94: #{tpu_custom_call.1} parent=91 // pred_check_branch
          %2791 = sbr.rel (%p2789) target = $region96
        $region95: #{tpu_custom_call.1} parent=91 // pred_region
          %s2792 = sand.u32 %s403, 1
          %s2793 = scalar_lea.sflag [#allocation4], %s2792
          %s2794 = sand.u32 %s403, 1
          %s2795 = scalar_lea.vmem [#allocation3], %s2794
          %2796 = dma.done %s2793, 16
        $region96: #{tpu_custom_call.1} parent=91 // pred_fallthru
          _
      $region92: #{tpu_custom_call.1} parent=5 // pred_fallthru
        _
    $region6: #{tpu_custom_call.1} parent=1 // loop_footer
      %s27 = sadd.s32 1, %s23
    $region7: #{tpu_custom_call.1} parent=1 // loop_footer_branch
      %22 = sbr.rel target = $region3
    $region8: #{tpu_custom_call.1} parent=1 // loop_exit
      _
    %2797 = vsyncpa [#allocation4], 1
    %s2798 = scalar_lea.sflag [#allocation4], 1
    %2799 = vsyncpa %s2798, 1

</llo_original>
